<compile_context>
chip_gen: v7x
topology: tpu7x:2x2x1
jax: 0.10.0
libtpu: 0.0.40
codegen_flags: <defaults>
</compile_context>

<pallas_src>
import functools
import math

import jax
import jax.numpy as jnp
import numpy as np
from jax.experimental import pallas as pl
from jax.experimental.pallas import tpu as pltpu


# ----------------------------- in-kernel math helpers -----------------------------

def _erf(x):
    # Abramowitz & Stegun 7.1.26 rational approximation (max abs err ~1.5e-7).
    # Matches torch.nn.functional.gelu's exact (erf) form to f32 rounding.
    a1, a2, a3, a4, a5 = 0.254829592, -0.284496736, 1.421413741, -1.453152027, 1.061405429
    p = 0.3275911
    s = jnp.where(x >= 0.0, 1.0, -1.0)
    ax = jnp.abs(x)
    t = 1.0 / (1.0 + p * ax)
    poly = ((((a5 * t + a4) * t + a3) * t + a2) * t + a1) * t
    return s * (1.0 - poly * jnp.exp(-ax * ax))


def _gelu_exact(x):
    return 0.5 * x * (1.0 + _erf(x * (1.0 / math.sqrt(2.0))))


def _layer_norm(z, g, b, eps=1e-5):
    mu = jnp.mean(z, axis=-1, keepdims=True)
    var = jnp.mean((z - mu) ** 2, axis=-1, keepdims=True)
    return (z - mu) / jnp.sqrt(var + eps) * g + b


# ----------------------------- Pallas kernels -----------------------------

def _in_proj_pe_kernel(x_ref, w_ref, b_ref, pe_ref, o_ref):
    # input_projection + positional-encoding add; one (batch, seq-tile) block per step.
    y = jnp.dot(x_ref[0], w_ref[...], preferred_element_type=jnp.float32)
    o_ref[0] = (y + b_ref[...] + pe_ref[...]).astype(o_ref.dtype)


def _attn_block_kernel(h_ref, wq_ref, wk_ref, wv_ref, wo_ref, bo_ref, g_ref, b_ref,
                       o_ref, *, n_heads, scale):
    # Fused: QKV projection -> per-head softmax attention -> output projection
    #        -> residual add -> LayerNorm.  One batch element per grid step.
    x = h_ref[0]                                   # (S, D) bf16
    xf = x.astype(jnp.float32)
    S, D = x.shape
    inv_scale = 1.0 / scale

    y = jnp.zeros((S, D), jnp.float32)             # accumulates attn @ w_o over heads
    for hd in range(n_heads):
        qh = jnp.dot(x, wq_ref[hd], preferred_element_type=jnp.float32)   # (S, dk)
        kh = jnp.dot(x, wk_ref[hd], preferred_element_type=jnp.float32)
        vh = jnp.dot(x, wv_ref[hd], preferred_element_type=jnp.float32)

        s = jax.lax.dot_general(
            qh.astype(jnp.bfloat16), kh.astype(jnp.bfloat16),
            (((1,), (1,)), ((), ())),
            preferred_element_type=jnp.float32) * inv_scale                # (S, S)
        s = s - jnp.max(s, axis=-1, keepdims=True)
        p = jnp.exp(s)
        p = p * pl.reciprocal(jnp.sum(p, axis=-1, keepdims=True), approx=True)

        ah = jnp.dot(p.astype(jnp.bfloat16), vh.astype(jnp.bfloat16),
                     preferred_element_type=jnp.float32)                   # (S, dk)
        y = y + jnp.dot(ah.astype(jnp.bfloat16), wo_ref[hd],
                        preferred_element_type=jnp.float32)                # (S, D)

    y = y + bo_ref[...]
    o_ref[0] = _layer_norm(xf + y, g_ref[...], b_ref[...]).astype(o_ref.dtype)


def _ffn_block_kernel(x_ref, w1_ref, b1_ref, w2_ref, b2_ref, g_ref, b_ref, o_ref):
    # Fused: linear1 -> GELU -> linear2 -> residual add -> LayerNorm per row tile.
    x = x_ref[0]                                   # (tile_s, D) bf16
    xf = x.astype(jnp.float32)
    hmid = _gelu_exact(
        jnp.dot(x, w1_ref[...], preferred_element_type=jnp.float32) + b1_ref[...])
    y = jnp.dot(hmid.astype(jnp.bfloat16), w2_ref[...],
                preferred_element_type=jnp.float32) + b2_ref[...]
    o_ref[0] = _layer_norm(xf + y, g_ref[...], b_ref[...]).astype(o_ref.dtype)


def _det_head_kernel(x_ref, w1_ref, b1_ref, w2_ref, b2_ref, w3_ref, b3_ref, o_ref):
    h = jnp.maximum(
        jnp.dot(x_ref[...], w1_ref[...], preferred_element_type=jnp.float32) + b1_ref[...], 0.0)
    h = jnp.maximum(
        jnp.dot(h, w2_ref[...], preferred_element_type=jnp.float32) + b2_ref[...], 0.0)
    o_ref[...] = jnp.dot(h, w3_ref[...], preferred_element_type=jnp.float32) + b3_ref[...]


# ----------------------------- pallas_call wrappers -----------------------------

def _in_proj_pe(x, w, b, pe, tile_s):
    B, S, Din = x.shape
    D = w.shape[1]
    ns = pl.cdiv(S, tile_s)
    return pl.pallas_call(
        _in_proj_pe_kernel,
        out_shape=jax.ShapeDtypeStruct((B, S, D), jnp.bfloat16),
        grid=(B, ns),
        in_specs=[
            pl.BlockSpec((1, tile_s, Din), lambda bi, si: (bi, si, 0)),
            pl.BlockSpec((Din, D), lambda bi, si: (0, 0)),
            pl.BlockSpec((1, D), lambda bi, si: (0, 0)),
            pl.BlockSpec((tile_s, D), lambda bi, si: (si, 0)),   # PE indexed by seq tile
        ],
        out_specs=pl.BlockSpec((1, tile_s, D), lambda bi, si: (bi, si, 0)),
        compiler_params=pltpu.CompilerParams(
            dimension_semantics=("parallel", "parallel")),
    )(x, w, b, pe)


def _attn_block(h, wq_h, wk_h, wv_h, wo_h, bo, g, b, *, n_heads, scale):
    B, S, D = h.shape
    dk = D // n_heads
    act_spec = pl.BlockSpec((1, S, D), lambda bi: (bi, 0, 0))
    wqkv_spec = pl.BlockSpec((n_heads, D, dk), lambda bi: (0, 0, 0))
    wo_spec = pl.BlockSpec((n_heads, dk, D), lambda bi: (0, 0, 0))
    vec_spec = pl.BlockSpec((1, D), lambda bi: (0, 0))
    return pl.pallas_call(
        functools.partial(_attn_block_kernel, n_heads=n_heads, scale=scale),
        out_shape=jax.ShapeDtypeStruct((B, S, D), jnp.bfloat16),
        grid=(B,),
        in_specs=[act_spec, wqkv_spec, wqkv_spec, wqkv_spec, wo_spec,
                  vec_spec, vec_spec, vec_spec],
        out_specs=act_spec,
        input_output_aliases={0: 0},                 # overwrite the residual buffer
        compiler_params=pltpu.CompilerParams(dimension_semantics=("parallel",)),
    )(h, wq_h, wk_h, wv_h, wo_h, bo, g, b)


def _ffn_block(h, w1, b1, w2, b2, g, b, tile_s):
    B, S, D = h.shape
    dff = w1.shape[1]
    ns = pl.cdiv(S, tile_s)
    act_spec = pl.BlockSpec((1, tile_s, D), lambda bi, si: (bi, si, 0))
    return pl.pallas_call(
        _ffn_block_kernel,
        out_shape=jax.ShapeDtypeStruct((B, S, D), jnp.bfloat16),
        grid=(B, ns),
        in_specs=[
            act_spec,
            pl.BlockSpec((D, dff), lambda bi, si: (0, 0)),
            pl.BlockSpec((1, dff), lambda bi, si: (0, 0)),
            pl.BlockSpec((dff, D), lambda bi, si: (0, 0)),
            pl.BlockSpec((1, D), lambda bi, si: (0, 0)),
            pl.BlockSpec((1, D), lambda bi, si: (0, 0)),
            pl.BlockSpec((1, D), lambda bi, si: (0, 0)),
        ],
        out_specs=act_spec,
        input_output_aliases={0: 0},                 # overwrite the residual buffer
        compiler_params=pltpu.CompilerParams(
            dimension_semantics=("parallel", "parallel")),
    )(h, w1, b1, w2, b2, g, b)


def _det_head(last, w1, b1, w2, b2, w3, b3):
    B = last.shape[0]
    C = w3.shape[1]

    def full(a):
        nd = a.ndim
        return pl.BlockSpec(a.shape, lambda *_, nd=nd: (0,) * nd)

    return pl.pallas_call(
        _det_head_kernel,
        out_shape=jax.ShapeDtypeStruct((B, C), jnp.float32),
        in_specs=[full(a) for a in (last, w1, b1, w2, b2, w3, b3)],
        out_specs=pl.BlockSpec((B, C), lambda *_: (0, 0)),
    )(last, w1, b1, w2, b2, w3, b3)


# ----------------------------- parameters -----------------------------

def _positional_encoding(max_len, d_model):
    position = jnp.arange(max_len, dtype=jnp.float32)[:, None]
    div_term = jnp.exp(jnp.arange(0, d_model, 2, dtype=jnp.float32)
                       * (-math.log(10000.0) / d_model))
    pe = jnp.zeros((max_len, d_model), jnp.float32)
    pe = pe.at[:, 0::2].set(jnp.sin(position * div_term))
    pe = pe.at[:, 1::2].set(jnp.cos(position * div_term))
    return pe


def init_params(key, *, input_dim, d_model, n_layers, d_ff, num_classes, max_seq_len):
    keys = iter(jax.random.split(key, 64))

    def w(shape, scale=0.02):
        return (scale * jax.random.normal(next(keys), shape)).astype(jnp.float32)

    params = {
        'pe': _positional_encoding(max_seq_len, d_model),
        'in_proj_w': w((input_dim, d_model)),
        'in_proj_b': w((1, d_model)),
        'det_w1': w((d_model, d_model // 2)), 'det_b1': w((1, d_model // 2)),
        'det_w2': w((d_model // 2, d_model // 4)), 'det_b2': w((1, d_model // 4)),
        'det_w3': w((d_model // 4, num_classes)), 'det_b3': w((1, num_classes)),
        'layers': [],
    }
    for _ in range(n_layers):
        params['layers'].append({
            'wq': w((d_model, d_model)), 'wk': w((d_model, d_model)), 'wv': w((d_model, d_model)),
            'wo': w((d_model, d_model)), 'bo': w((1, d_model)),
            'w1': w((d_model, d_ff)), 'b1': w((1, d_ff)),
            'w2': w((d_ff, d_model)), 'b2': w((1, d_model)),
            'ln1_g': jnp.ones((1, d_model), jnp.float32), 'ln1_b': jnp.zeros((1, d_model), jnp.float32),
            'ln2_g': jnp.ones((1, d_model), jnp.float32), 'ln2_b': jnp.zeros((1, d_model), jnp.float32),
        })
    return params


# ----------------------------- forward passes -----------------------------

def anomaly_transformer_forward(params, x, *, d_model, n_heads, seq_tile=256):
    """Pallas forward.  x: [B, S, input_dim] float32.  Returns {'logits': [B, num_classes]}."""
    B, S, _ = x.shape
    D, H = d_model, n_heads
    dk = D // H
    # seq-tile capped at 256 rows so the (tile, d_ff) f32 FFN intermediate plus
    # double-buffered bf16 weights fit v7x's 64 MiB VMEM (32 MiB scoped).
    ts = S if S <= seq_tile else seq_tile
    bf = jnp.bfloat16

    # input projection + positional encoding (PE indexed per seq tile, not tiled to B*S)
    h = _in_proj_pe(x.astype(bf), params['in_proj_w'].astype(bf),
                    params['in_proj_b'], params['pe'][:S], ts)
    # TODO(synk): nn.Dropout layers are identity (inference); training-mode dropout not modeled.

    for L in params['layers']:
        # pre-split per-head weights so the kernel slices heads along a leading axis
        wq_h = L['wq'].astype(bf).reshape(D, H, dk).transpose(1, 0, 2)   # (H, D, dk)
        wk_h = L['wk'].astype(bf).reshape(D, H, dk).transpose(1, 0, 2)
        wv_h = L['wv'].astype(bf).reshape(D, H, dk).transpose(1, 0, 2)
        wo_h = L['wo'].astype(bf).reshape(H, dk, D)                      # (H, dk, D)

        h = _attn_block(h, wq_h, wk_h, wv_h, wo_h, L['bo'], L['ln1_g'], L['ln1_b'],
                        n_heads=H, scale=math.sqrt(dk))
        h = _ffn_block(h, L['w1'].astype(bf), L['b1'], L['w2'].astype(bf), L['b2'],
                       L['ln2_g'], L['ln2_b'], ts)

    last = h[:, -1, :].astype(jnp.float32)                               # (B, D)
    logits = _det_head(last, params['det_w1'], params['det_b1'],
                       params['det_w2'], params['det_b2'],
                       params['det_w3'], params['det_b3'])
    return {'logits': logits}


def reference_forward(params, x, *, d_model, n_heads):
    """Pure-JAX f32 reference replicating the PyTorch forward (inference)."""
    B, S, _ = x.shape
    D, H = d_model, n_heads
    dk = D // H
    h = x @ params['in_proj_w'] + params['in_proj_b']
    h = h + params['pe'][:S][None, :, :]
    for L in params['layers']:
        q = (h @ L['wq']).reshape(B, S, H, dk).transpose(0, 2, 1, 3)
        k = (h @ L['wk']).reshape(B, S, H, dk).transpose(0, 2, 1, 3)
        v = (h @ L['wv']).reshape(B, S, H, dk).transpose(0, 2, 1, 3)
        s = jnp.einsum('bhqd,bhkd->bhqk', q, k) / math.sqrt(dk)
        p = jax.nn.softmax(s, axis=-1)
        a = jnp.einsum('bhqk,bhkd->bhqd', p, v).transpose(0, 2, 1, 3).reshape(B, S, D)
        a = a @ L['wo'] + L['bo']
        h = _layer_norm(h + a, L['ln1_g'], L['ln1_b'])
        f = jax.nn.gelu(h @ L['w1'] + L['b1'], approximate=False) @ L['w2'] + L['b2']
        h = _layer_norm(h + f, L['ln2_g'], L['ln2_b'])
    last = h[:, -1, :]
    z = jax.nn.relu(last @ params['det_w1'] + params['det_b1'])
    z = jax.nn.relu(z @ params['det_w2'] + params['det_b2'])
    return z @ params['det_w3'] + params['det_b3']


# ----------------------------- main -----------------------------

if __name__ == "__main__":
    B, S = 2, 8
    input_dim, d_model, n_heads, n_layers, d_ff = 16, 32, 4, 2, 64
    num_classes, max_seq_len = 2, 100

    key = jax.random.PRNGKey(0)
    pkey, xkey = jax.random.split(key)
    params = init_params(pkey, input_dim=input_dim, d_model=d_model, n_layers=n_layers,
                         d_ff=d_ff, num_classes=num_classes, max_seq_len=max_seq_len)
    x = jax.random.normal(xkey, (B, S, input_dim), dtype=jnp.float32)

    fwd = jax.jit(functools.partial(anomaly_transformer_forward,
                                    d_model=d_model, n_heads=n_heads))
    logits = jax.block_until_ready(fwd(params, x)['logits'])

    ref = jax.block_until_ready(reference_forward(params, x, d_model=d_model, n_heads=n_heads))
    # bf16 matmul inputs + approx softmax reciprocal vs f32 reference -> slightly
    # relaxed tolerance (logits themselves are computed in an f32 detection head).
    np.testing.assert_allclose(np.asarray(logits), np.asarray(ref), atol=2e-3, rtol=2e-2)

    print("KERNEL_OK")
</pallas_src>

<mosaic_0001>
module attributes {stable_mosaic.version = 11 : i64} {
  func.func @_in_proj_pe_kernel(%arg0: i32, %arg1: i32, %arg2: memref<1x8x16xbf16, #tpu.memory_space<vmem>>, %arg3: memref<16x32xbf16, #tpu.memory_space<vmem>>, %arg4: memref<1x32xf32, #tpu.memory_space<vmem>>, %arg5: memref<8x32xf32, #tpu.memory_space<vmem>>, %arg6: memref<1x8x32xbf16, #tpu.memory_space<vmem>>) attributes {dimension_semantics = [#tpu.dimension_semantics<parallel>, #tpu.dimension_semantics<parallel>], iteration_bounds = array<i64: 2, 1>, scalar_prefetch = 0 : i64, scratch_operands = 0 : i64, tpu.core_type = #tpu.core_type<tc>, window_params = [{transform_indices = @transform_0, window_bounds = array<i64: 1, 8, 16>}, {pipeline_mode = #tpu.pipeline_mode<synchronous>, transform_indices = @transform_1, window_bounds = array<i64: 16, 32>}, {pipeline_mode = #tpu.pipeline_mode<synchronous>, transform_indices = @transform_2, window_bounds = array<i64: 1, 32>}, {transform_indices = @transform_3, window_bounds = array<i64: 8, 32>}, {transform_indices = @transform_4, window_bounds = array<i64: 1, 8, 32>}]} {
    %c0 = arith.constant 0 : index
    %c0_0 = arith.constant 0 : index
    %c0_1 = arith.constant 0 : index
    %0 = vector.load %arg2[%c0, %c0_0, %c0_1] : memref<1x8x16xbf16, #tpu.memory_space<vmem>>, vector<1x8x16xbf16>
    %1 = vector.shape_cast %0 : vector<1x8x16xbf16> to vector<8x16xbf16>
    %c0_2 = arith.constant 0 : index
    %c0_3 = arith.constant 0 : index
    %2 = vector.load %arg3[%c0_2, %c0_3] : memref<16x32xbf16, #tpu.memory_space<vmem>>, vector<16x32xbf16>
    %cst = arith.constant dense<0.000000e+00> : vector<8x32xf32>
    %3 = tpu.matmul %1, %2, %cst {dimension_numbers = #tpu.dot_dimension_numbers<[1], [0], [0], [1], [0, 0, 1, 1], [], []>} : vector<8x16xbf16>, vector<16x32xbf16>, vector<8x32xf32> -> vector<8x32xf32>
    %c0_4 = arith.constant 0 : index
    %c0_5 = arith.constant 0 : index
    %4 = vector.load %arg4[%c0_4, %c0_5] : memref<1x32xf32, #tpu.memory_space<vmem>>, vector<1x32xf32>
    %5 = vector.broadcast %4 : vector<1x32xf32> to vector<8x32xf32>
    %6 = arith.addf %3, %5 : vector<8x32xf32>
    %c0_6 = arith.constant 0 : index
    %c0_7 = arith.constant 0 : index
    %7 = vector.load %arg5[%c0_6, %c0_7] : memref<8x32xf32, #tpu.memory_space<vmem>>, vector<8x32xf32>
    %8 = arith.addf %6, %7 : vector<8x32xf32>
    %9 = arith.truncf %8 : vector<8x32xf32> to vector<8x32xbf16>
    %c0_8 = arith.constant 0 : index
    %c0_9 = arith.constant 0 : index
    %c0_10 = arith.constant 0 : index
    %10 = vector.load %arg6[%c0_8, %c0_9, %c0_10] : memref<1x8x32xbf16, #tpu.memory_space<vmem>>, vector<1x8x32xbf16>
    %11 = vector.shape_cast %10 : vector<1x8x32xbf16> to vector<8x32xbf16>
    %12 = vector.shape_cast %9 : vector<8x32xbf16> to vector<1x8x32xbf16>
    tpu.vector_store %arg6[%c0_8, %c0_9, %c0_10], %12 {strides = array<i32>} : memref<1x8x32xbf16, #tpu.memory_space<vmem>>, vector<1x8x32xbf16>,
    return
  }
  func.func @transform_0(%arg0: i32, %arg1: i32) -> (i32, i32, i32) {
    %c0_i32 = arith.constant 0 : i32
    %c0_i32_0 = arith.constant 0 : i32
    return %arg0, %arg1, %c0_i32 : i32, i32, i32
  }
  func.func @transform_1(%arg0: i32, %arg1: i32) -> (i32, i32) {
    %c0_i32 = arith.constant 0 : i32
    %c0_i32_0 = arith.constant 0 : i32
    %c0_i32_1 = arith.constant 0 : i32
    return %c0_i32, %c0_i32_0 : i32, i32
  }
  func.func @transform_2(%arg0: i32, %arg1: i32) -> (i32, i32) {
    %c0_i32 = arith.constant 0 : i32
    %c0_i32_0 = arith.constant 0 : i32
    %c0_i32_1 = arith.constant 0 : i32
    return %c0_i32, %c0_i32_0 : i32, i32
  }
  func.func @transform_3(%arg0: i32, %arg1: i32) -> (i32, i32) {
    %c0_i32 = arith.constant 0 : i32
    %c0_i32_0 = arith.constant 0 : i32
    return %arg1, %c0_i32 : i32, i32
  }
  func.func @transform_4(%arg0: i32, %arg1: i32) -> (i32, i32, i32) {
    %c0_i32 = arith.constant 0 : i32
    %c0_i32_0 = arith.constant 0 : i32
    return %arg0, %arg1, %c0_i32 : i32, i32, i32
  }
}

module attributes {stable_mosaic.version = 11 : i64} {
  func.func @_ffn_block_kernel(%arg0: i32, %arg1: i32, %arg2: memref<1x8x32xbf16, #tpu.memory_space<vmem>>, %arg3: memref<32x64xbf16, #tpu.memory_space<vmem>>, %arg4: memref<1x64xf32, #tpu.memory_space<vmem>>, %arg5: memref<64x32xbf16, #tpu.memory_space<vmem>>, %arg6: memref<1x32xf32, #tpu.memory_space<vmem>>, %arg7: memref<1x32xf32, #tpu.memory_space<vmem>>, %arg8: memref<1x32xf32, #tpu.memory_space<vmem>>, %arg9: memref<1x8x32xbf16, #tpu.memory_space<vmem>>) attributes {dimension_semantics = [#tpu.dimension_semantics<parallel>, #tpu.dimension_semantics<parallel>], iteration_bounds = array<i64: 2, 1>, scalar_prefetch = 0 : i64, scratch_operands = 0 : i64, tpu.core_type = #tpu.core_type<tc>, window_params = [{transform_indices = @transform_0, window_bounds = array<i64: 1, 8, 32>}, {pipeline_mode = #tpu.pipeline_mode<synchronous>, transform_indices = @transform_1, window_bounds = array<i64: 32, 64>}, {pipeline_mode = #tpu.pipeline_mode<synchronous>, transform_indices = @transform_2, window_bounds = array<i64: 1, 64>}, {pipeline_mode = #tpu.pipeline_mode<synchronous>, transform_indices = @transform_3, window_bounds = array<i64: 64, 32>}, {pipeline_mode = #tpu.pipeline_mode<synchronous>, transform_indices = @transform_4, window_bounds = array<i64: 1, 32>}, {pipeline_mode = #tpu.pipeline_mode<synchronous>, transform_indices = @transform_5, window_bounds = array<i64: 1, 32>}, {pipeline_mode = #tpu.pipeline_mode<synchronous>, transform_indices = @transform_6, window_bounds = array<i64: 1, 32>}, {transform_indices = @transform_7, window_bounds = array<i64: 1, 8, 32>}]} {
    %c0 = arith.constant 0 : index
    %c0_0 = arith.constant 0 : index
    %c0_1 = arith.constant 0 : index
    %0 = vector.load %arg2[%c0, %c0_0, %c0_1] : memref<1x8x32xbf16, #tpu.memory_space<vmem>>, vector<1x8x32xbf16>
    %1 = vector.shape_cast %0 : vector<1x8x32xbf16> to vector<8x32xbf16>
    %2 = arith.extf %1 : vector<8x32xbf16> to vector<8x32xf32>
    %c0_2 = arith.constant 0 : index
    %c0_3 = arith.constant 0 : index
    %3 = vector.load %arg3[%c0_2, %c0_3] : memref<32x64xbf16, #tpu.memory_space<vmem>>, vector<32x64xbf16>
    %cst = arith.constant dense<0.000000e+00> : vector<8x64xf32>
    %4 = tpu.matmul %1, %3, %cst {dimension_numbers = #tpu.dot_dimension_numbers<[1], [0], [0], [1], [0, 0, 1, 1], [], []>} : vector<8x32xbf16>, vector<32x64xbf16>, vector<8x64xf32> -> vector<8x64xf32>
    %c0_4 = arith.constant 0 : index
    %c0_5 = arith.constant 0 : index
    %5 = vector.load %arg4[%c0_4, %c0_5] : memref<1x64xf32, #tpu.memory_space<vmem>>, vector<1x64xf32>
    %6 = vector.broadcast %5 : vector<1x64xf32> to vector<8x64xf32>
    %7 = arith.addf %4, %6 : vector<8x64xf32>
    %cst_6 = arith.constant 5.000000e-01 : f32
    %8 = vector.broadcast %cst_6 : f32 to vector<8x64xf32>
    %9 = arith.mulf %8, %7 : vector<8x64xf32>
    %cst_7 = arith.constant 0.707106769 : f32
    %10 = vector.broadcast %cst_7 : f32 to vector<8x64xf32>
    %11 = arith.mulf %7, %10 : vector<8x64xf32>
    %cst_8 = arith.constant 0.000000e+00 : f32
    %12 = vector.broadcast %cst_8 : f32 to vector<8x64xf32>
    %13 = arith.cmpf oge, %11, %12 : vector<8x64xf32>
    %cst_9 = arith.constant 1.000000e+00 : f32
    %cst_10 = arith.constant -1.000000e+00 : f32
    %14 = vector.broadcast %cst_9 : f32 to vector<8x64xf32>
    %15 = vector.broadcast %cst_10 : f32 to vector<8x64xf32>
    %16 = arith.select %13, %14, %15 : vector<8x64xi1>, vector<8x64xf32>
    %17 = math.absf %11 : vector<8x64xf32>
    %cst_11 = arith.constant 0.327591091 : f32
    %18 = vector.broadcast %cst_11 : f32 to vector<8x64xf32>
    %19 = arith.mulf %18, %17 : vector<8x64xf32>
    %cst_12 = arith.constant 1.000000e+00 : f32
    %20 = vector.broadcast %cst_12 : f32 to vector<8x64xf32>
    %21 = arith.addf %20, %19 : vector<8x64xf32>
    %cst_13 = arith.constant 1.000000e+00 : f32
    %22 = vector.broadcast %cst_13 : f32 to vector<8x64xf32>
    %23 = arith.divf %22, %21 : vector<8x64xf32>
    %cst_14 = arith.constant 1.06140542 : f32
    %24 = vector.broadcast %cst_14 : f32 to vector<8x64xf32>
    %25 = arith.mulf %24, %23 : vector<8x64xf32>
    %cst_15 = arith.constant -1.45315206 : f32
    %26 = vector.broadcast %cst_15 : f32 to vector<8x64xf32>
    %27 = arith.addf %25, %26 : vector<8x64xf32>
    %28 = arith.mulf %27, %23 : vector<8x64xf32>
    %cst_16 = arith.constant 1.42141378 : f32
    %29 = vector.broadcast %cst_16 : f32 to vector<8x64xf32>
    %30 = arith.addf %28, %29 : vector<8x64xf32>
    %31 = arith.mulf %30, %23 : vector<8x64xf32>
    %cst_17 = arith.constant -0.284496725 : f32
    %32 = vector.broadcast %cst_17 : f32 to vector<8x64xf32>
    %33 = arith.addf %31, %32 : vector<8x64xf32>
    %34 = arith.mulf %33, %23 : vector<8x64xf32>
    %cst_18 = arith.constant 0.254829586 : f32
    %35 = vector.broadcast %cst_18 : f32 to vector<8x64xf32>
    %36 = arith.addf %34, %35 : vector<8x64xf32>
    %37 = arith.mulf %36, %23 : vector<8x64xf32>
    %cst_19 = arith.constant 0.000000e+00 : f32
    %38 = vector.broadcast %cst_19 : f32 to vector<8x64xf32>
    %39 = arith.subf %38, %17 : vector<8x64xf32>
    %40 = arith.mulf %39, %17 : vector<8x64xf32>
    %41 = math.exp %40 : vector<8x64xf32>
    %42 = arith.mulf %37, %41 : vector<8x64xf32>
    %cst_20 = arith.constant 1.000000e+00 : f32
    %43 = vector.broadcast %cst_20 : f32 to vector<8x64xf32>
    %44 = arith.subf %43, %42 : vector<8x64xf32>
    %45 = arith.mulf %16, %44 : vector<8x64xf32>
    %cst_21 = arith.constant 1.000000e+00 : f32
    %46 = vector.broadcast %cst_21 : f32 to vector<8x64xf32>
    %47 = arith.addf %46, %45 : vector<8x64xf32>
    %48 = arith.mulf %9, %47 : vector<8x64xf32>
    %49 = arith.truncf %48 : vector<8x64xf32> to vector<8x64xbf16>
    %c0_22 = arith.constant 0 : index
    %c0_23 = arith.constant 0 : index
    %50 = vector.load %arg5[%c0_22, %c0_23] : memref<64x32xbf16, #tpu.memory_space<vmem>>, vector<64x32xbf16>
    %cst_24 = arith.constant dense<0.000000e+00> : vector<8x32xf32>
    %51 = tpu.matmul %49, %50, %cst_24 {dimension_numbers = #tpu.dot_dimension_numbers<[1], [0], [0], [1], [0, 0, 1, 1], [], []>} : vector<8x64xbf16>, vector<64x32xbf16>, vector<8x32xf32> -> vector<8x32xf32>
    %c0_25 = arith.constant 0 : index
    %c0_26 = arith.constant 0 : index
    %52 = vector.load %arg6[%c0_25, %c0_26] : memref<1x32xf32, #tpu.memory_space<vmem>>, vector<1x32xf32>
    %53 = vector.broadcast %52 : vector<1x32xf32> to vector<8x32xf32>
    %54 = arith.addf %51, %53 : vector<8x32xf32>
    %55 = arith.addf %2, %54 : vector<8x32xf32>
    %c0_27 = arith.constant 0 : index
    %c0_28 = arith.constant 0 : index
    %56 = vector.load %arg7[%c0_27, %c0_28] : memref<1x32xf32, #tpu.memory_space<vmem>>, vector<1x32xf32>
    %c0_29 = arith.constant 0 : index
    %c0_30 = arith.constant 0 : index
    %57 = vector.load %arg8[%c0_29, %c0_30] : memref<1x32xf32, #tpu.memory_space<vmem>>, vector<1x32xf32>
    %cst_31 = arith.constant dense<0.000000e+00> : vector<8xf32>
    %58 = vector.multi_reduction <add>, %55, %cst_31 [1] : vector<8x32xf32> to vector<8xf32>
    %59 = vector.shape_cast %58 : vector<8xf32> to vector<8x1xf32>
    %cst_32 = arith.constant 3.200000e+01 : f32
    %60 = vector.broadcast %cst_32 : f32 to vector<8x1xf32>
    %61 = arith.divf %59, %60 : vector<8x1xf32>
    %62 = vector.broadcast %61 : vector<8x1xf32> to vector<8x32xf32>
    %63 = arith.subf %55, %62 : vector<8x32xf32>
    %64 = arith.mulf %63, %63 : vector<8x32xf32>
    %cst_33 = arith.constant dense<0.000000e+00> : vector<8xf32>
    %65 = vector.multi_reduction <add>, %64, %cst_33 [1] : vector<8x32xf32> to vector<8xf32>
    %66 = vector.shape_cast %65 : vector<8xf32> to vector<8x1xf32>
    %cst_34 = arith.constant 3.200000e+01 : f32
    %67 = vector.broadcast %cst_34 : f32 to vector<8x1xf32>
    %68 = arith.divf %66, %67 : vector<8x1xf32>
    %69 = vector.broadcast %61 : vector<8x1xf32> to vector<8x32xf32>
    %70 = arith.subf %55, %69 : vector<8x32xf32>
    %cst_35 = arith.constant 9.99999974E-6 : f32
    %71 = vector.broadcast %cst_35 : f32 to vector<8x1xf32>
    %72 = arith.addf %68, %71 : vector<8x1xf32>
    %73 = math.sqrt %72 : vector<8x1xf32>
    %74 = vector.broadcast %73 : vector<8x1xf32> to vector<8x32xf32>
    %75 = arith.divf %70, %74 : vector<8x32xf32>
    %76 = vector.broadcast %56 : vector<1x32xf32> to vector<8x32xf32>
    %77 = arith.mulf %75, %76 : vector<8x32xf32>
    %78 = vector.broadcast %57 : vector<1x32xf32> to vector<8x32xf32>
    %79 = arith.addf %77, %78 : vector<8x32xf32>
    %80 = arith.truncf %79 : vector<8x32xf32> to vector<8x32xbf16>
    %c0_36 = arith.constant 0 : index
    %c0_37 = arith.constant 0 : index
    %c0_38 = arith.constant 0 : index
    %81 = vector.load %arg9[%c0_36, %c0_37, %c0_38] : memref<1x8x32xbf16, #tpu.memory_space<vmem>>, vector<1x8x32xbf16>
    %82 = vector.shape_cast %81 : vector<1x8x32xbf16> to vector<8x32xbf16>
    %83 = vector.shape_cast %80 : vector<8x32xbf16> to vector<1x8x32xbf16>
    tpu.vector_store %arg9[%c0_36, %c0_37, %c0_38], %83 {strides = array<i32>} : memref<1x8x32xbf16, #tpu.memory_space<vmem>>, vector<1x8x32xbf16>,
    return
  }
  func.func @transform_0(%arg0: i32, %arg1: i32) -> (i32, i32, i32) {
    %c0_i32 = arith.constant 0 : i32
    %c0_i32_0 = arith.constant 0 : i32
    return %arg0, %arg1, %c0_i32 : i32, i32, i32
  }
  func.func @transform_1(%arg0: i32, %arg1: i32) -> (i32, i32) {
    %c0_i32 = arith.constant 0 : i32
    %c0_i32_0 = arith.constant 0 : i32
    %c0_i32_1 = arith.constant 0 : i32
    return %c0_i32, %c0_i32_0 : i32, i32
  }
  func.func @transform_2(%arg0: i32, %arg1: i32) -> (i32, i32) {
    %c0_i32 = arith.constant 0 : i32
    %c0_i32_0 = arith.constant 0 : i32
    %c0_i32_1 = arith.constant 0 : i32
    return %c0_i32, %c0_i32_0 : i32, i32
  }
  func.func @transform_3(%arg0: i32, %arg1: i32) -> (i32, i32) {
    %c0_i32 = arith.constant 0 : i32
    %c0_i32_0 = arith.constant 0 : i32
    %c0_i32_1 = arith.constant 0 : i32
    return %c0_i32, %c0_i32_0 : i32, i32
  }
  func.func @transform_4(%arg0: i32, %arg1: i32) -> (i32, i32) {
    %c0_i32 = arith.constant 0 : i32
    %c0_i32_0 = arith.constant 0 : i32
    %c0_i32_1 = arith.constant 0 : i32
    return %c0_i32, %c0_i32_0 : i32, i32
  }
  func.func @transform_5(%arg0: i32, %arg1: i32) -> (i32, i32) {
    %c0_i32 = arith.constant 0 : i32
    %c0_i32_0 = arith.constant 0 : i32
    %c0_i32_1 = arith.constant 0 : i32
    return %c0_i32, %c0_i32_0 : i32, i32
  }
  func.func @transform_6(%arg0: i32, %arg1: i32) -> (i32, i32) {
    %c0_i32 = arith.constant 0 : i32
    %c0_i32_0 = arith.constant 0 : i32
    %c0_i32_1 = arith.constant 0 : i32
    return %c0_i32, %c0_i32_0 : i32, i32
  }
  func.func @transform_7(%arg0: i32, %arg1: i32) -> (i32, i32, i32) {
    %c0_i32 = arith.constant 0 : i32
    %c0_i32_0 = arith.constant 0 : i32
    return %arg0, %arg1, %c0_i32 : i32, i32, i32
  }
}

module attributes {stable_mosaic.version = 11 : i64} {
  func.func @_attn_block_kernel(%arg0: i32, %arg1: memref<1x8x32xbf16, #tpu.memory_space<vmem>>, %arg2: memref<4x32x8xbf16, #tpu.memory_space<vmem>>, %arg3: memref<4x32x8xbf16, #tpu.memory_space<vmem>>, %arg4: memref<4x32x8xbf16, #tpu.memory_space<vmem>>, %arg5: memref<4x8x32xbf16, #tpu.memory_space<vmem>>, %arg6: memref<1x32xf32, #tpu.memory_space<vmem>>, %arg7: memref<1x32xf32, #tpu.memory_space<vmem>>, %arg8: memref<1x32xf32, #tpu.memory_space<vmem>>, %arg9: memref<1x8x32xbf16, #tpu.memory_space<vmem>>) attributes {dimension_semantics = [#tpu.dimension_semantics<parallel>], iteration_bounds = array<i64: 2>, scalar_prefetch = 0 : i64, scratch_operands = 0 : i64, tpu.core_type = #tpu.core_type<tc>, window_params = [{transform_indices = @transform_0, window_bounds = array<i64: 1, 8, 32>}, {pipeline_mode = #tpu.pipeline_mode<synchronous>, transform_indices = @transform_1, window_bounds = array<i64: 4, 32, 8>}, {pipeline_mode = #tpu.pipeline_mode<synchronous>, transform_indices = @transform_2, window_bounds = array<i64: 4, 32, 8>}, {pipeline_mode = #tpu.pipeline_mode<synchronous>, transform_indices = @transform_3, window_bounds = array<i64: 4, 32, 8>}, {pipeline_mode = #tpu.pipeline_mode<synchronous>, transform_indices = @transform_4, window_bounds = array<i64: 4, 8, 32>}, {pipeline_mode = #tpu.pipeline_mode<synchronous>, transform_indices = @transform_5, window_bounds = array<i64: 1, 32>}, {pipeline_mode = #tpu.pipeline_mode<synchronous>, transform_indices = @transform_6, window_bounds = array<i64: 1, 32>}, {pipeline_mode = #tpu.pipeline_mode<synchronous>, transform_indices = @transform_7, window_bounds = array<i64: 1, 32>}, {transform_indices = @transform_8, window_bounds = array<i64: 1, 8, 32>}]} {
    %c0 = arith.constant 0 : index
    %c0_0 = arith.constant 0 : index
    %c0_1 = arith.constant 0 : index
    %0 = vector.load %arg1[%c0, %c0_0, %c0_1] : memref<1x8x32xbf16, #tpu.memory_space<vmem>>, vector<1x8x32xbf16>
    %1 = vector.shape_cast %0 : vector<1x8x32xbf16> to vector<8x32xbf16>
    %2 = arith.extf %1 : vector<8x32xbf16> to vector<8x32xf32>
    %cst = arith.constant 0.000000e+00 : f32
    %3 = vector.broadcast %cst : f32 to vector<8x32xf32>
    %c0_2 = arith.constant 0 : index
    %c0_3 = arith.constant 0 : index
    %c0_4 = arith.constant 0 : index
    %4 = vector.load %arg2[%c0_2, %c0_3, %c0_4] : memref<4x32x8xbf16, #tpu.memory_space<vmem>>, vector<1x32x8xbf16>
    %5 = vector.shape_cast %4 : vector<1x32x8xbf16> to vector<32x8xbf16>
    %cst_5 = arith.constant dense<0.000000e+00> : vector<8x8xf32>
    %6 = tpu.matmul %1, %5, %cst_5 {dimension_numbers = #tpu.dot_dimension_numbers<[1], [0], [0], [1], [0, 0, 1, 1], [], []>} : vector<8x32xbf16>, vector<32x8xbf16>, vector<8x8xf32> -> vector<8x8xf32>
    %c0_6 = arith.constant 0 : index
    %c0_7 = arith.constant 0 : index
    %c0_8 = arith.constant 0 : index
    %7 = vector.load %arg3[%c0_6, %c0_7, %c0_8] : memref<4x32x8xbf16, #tpu.memory_space<vmem>>, vector<1x32x8xbf16>
    %8 = vector.shape_cast %7 : vector<1x32x8xbf16> to vector<32x8xbf16>
    %cst_9 = arith.constant dense<0.000000e+00> : vector<8x8xf32>
    %9 = tpu.matmul %1, %8, %cst_9 {dimension_numbers = #tpu.dot_dimension_numbers<[1], [0], [0], [1], [0, 0, 1, 1], [], []>} : vector<8x32xbf16>, vector<32x8xbf16>, vector<8x8xf32> -> vector<8x8xf32>
    %c0_10 = arith.constant 0 : index
    %c0_11 = arith.constant 0 : index
    %c0_12 = arith.constant 0 : index
    %10 = vector.load %arg4[%c0_10, %c0_11, %c0_12] : memref<4x32x8xbf16, #tpu.memory_space<vmem>>, vector<1x32x8xbf16>
    %11 = vector.shape_cast %10 : vector<1x32x8xbf16> to vector<32x8xbf16>
    %cst_13 = arith.constant dense<0.000000e+00> : vector<8x8xf32>
    %12 = tpu.matmul %1, %11, %cst_13 {dimension_numbers = #tpu.dot_dimension_numbers<[1], [0], [0], [1], [0, 0, 1, 1], [], []>} : vector<8x32xbf16>, vector<32x8xbf16>, vector<8x8xf32> -> vector<8x8xf32>
    %13 = arith.truncf %6 : vector<8x8xf32> to vector<8x8xbf16>
    %14 = arith.truncf %9 : vector<8x8xf32> to vector<8x8xbf16>
    %cst_14 = arith.constant dense<0.000000e+00> : vector<8x8xf32>
    %15 = tpu.matmul %13, %14, %cst_14 {dimension_numbers = #tpu.dot_dimension_numbers<[1], [1], [0], [0], [0, 0, 1, 0], [], []>} : vector<8x8xbf16>, vector<8x8xbf16>, vector<8x8xf32> -> vector<8x8xf32>
    %cst_15 = arith.constant 0.353553385 : f32
    %16 = vector.broadcast %cst_15 : f32 to vector<8x8xf32>
    %17 = arith.mulf %15, %16 : vector<8x8xf32>
    %cst_16 = arith.constant dense<0xFF800000> : vector<8xf32>
    %18 = vector.multi_reduction <maximumf>, %17, %cst_16 [1] : vector<8x8xf32> to vector<8xf32>
    %19 = vector.shape_cast %18 : vector<8xf32> to vector<8x1xf32>
    %20 = vector.broadcast %19 : vector<8x1xf32> to vector<8x8xf32>
    %21 = arith.subf %17, %20 : vector<8x8xf32>
    %22 = math.exp %21 : vector<8x8xf32>
    %cst_17 = arith.constant dense<0.000000e+00> : vector<8xf32>
    %23 = vector.multi_reduction <add>, %22, %cst_17 [1] : vector<8x8xf32> to vector<8xf32>
    %24 = vector.shape_cast %23 : vector<8xf32> to vector<8x1xf32>
    %25 = tpu.reciprocal %24 {approx = true} : vector<8x1xf32> -> vector<8x1xf32>
    %26 = vector.broadcast %25 : vector<8x1xf32> to vector<8x8xf32>
    %27 = arith.mulf %22, %26 : vector<8x8xf32>
    %28 = arith.truncf %27 : vector<8x8xf32> to vector<8x8xbf16>
    %29 = arith.truncf %12 : vector<8x8xf32> to vector<8x8xbf16>
    %cst_18 = arith.constant dense<0.000000e+00> : vector<8x8xf32>
    %30 = tpu.matmul %28, %29, %cst_18 {dimension_numbers = #tpu.dot_dimension_numbers<[1], [0], [0], [1], [0, 0, 1, 1], [], []>} : vector<8x8xbf16>, vector<8x8xbf16>, vector<8x8xf32> -> vector<8x8xf32>
    %31 = arith.truncf %30 : vector<8x8xf32> to vector<8x8xbf16>
    %c0_19 = arith.constant 0 : index
    %c0_20 = arith.constant 0 : index
    %c0_21 = arith.constant 0 : index
    %32 = vector.load %arg5[%c0_19, %c0_20, %c0_21] : memref<4x8x32xbf16, #tpu.memory_space<vmem>>, vector<1x8x32xbf16>
    %33 = vector.shape_cast %32 : vector<1x8x32xbf16> to vector<8x32xbf16>
    %cst_22 = arith.constant dense<0.000000e+00> : vector<8x32xf32>
    %34 = tpu.matmul %31, %33, %cst_22 {dimension_numbers = #tpu.dot_dimension_numbers<[1], [0], [0], [1], [0, 0, 1, 1], [], []>} : vector<8x8xbf16>, vector<8x32xbf16>, vector<8x32xf32> -> vector<8x32xf32>
    %35 = arith.addf %3, %34 : vector<8x32xf32>
    %c1 = arith.constant 1 : index
    %c0_23 = arith.constant 0 : index
    %c0_24 = arith.constant 0 : index
    %36 = vector.load %arg2[%c1, %c0_23, %c0_24] : memref<4x32x8xbf16, #tpu.memory_space<vmem>>, vector<1x32x8xbf16>
    %37 = vector.shape_cast %36 : vector<1x32x8xbf16> to vector<32x8xbf16>
    %cst_25 = arith.constant dense<0.000000e+00> : vector<8x8xf32>
    %38 = tpu.matmul %1, %37, %cst_25 {dimension_numbers = #tpu.dot_dimension_numbers<[1], [0], [0], [1], [0, 0, 1, 1], [], []>} : vector<8x32xbf16>, vector<32x8xbf16>, vector<8x8xf32> -> vector<8x8xf32>
    %c1_26 = arith.constant 1 : index
    %c0_27 = arith.constant 0 : index
    %c0_28 = arith.constant 0 : index
    %39 = vector.load %arg3[%c1_26, %c0_27, %c0_28] : memref<4x32x8xbf16, #tpu.memory_space<vmem>>, vector<1x32x8xbf16>
    %40 = vector.shape_cast %39 : vector<1x32x8xbf16> to vector<32x8xbf16>
    %cst_29 = arith.constant dense<0.000000e+00> : vector<8x8xf32>
    %41 = tpu.matmul %1, %40, %cst_29 {dimension_numbers = #tpu.dot_dimension_numbers<[1], [0], [0], [1], [0, 0, 1, 1], [], []>} : vector<8x32xbf16>, vector<32x8xbf16>, vector<8x8xf32> -> vector<8x8xf32>
    %c1_30 = arith.constant 1 : index
    %c0_31 = arith.constant 0 : index
    %c0_32 = arith.constant 0 : index
    %42 = vector.load %arg4[%c1_30, %c0_31, %c0_32] : memref<4x32x8xbf16, #tpu.memory_space<vmem>>, vector<1x32x8xbf16>
    %43 = vector.shape_cast %42 : vector<1x32x8xbf16> to vector<32x8xbf16>
    %cst_33 = arith.constant dense<0.000000e+00> : vector<8x8xf32>
    %44 = tpu.matmul %1, %43, %cst_33 {dimension_numbers = #tpu.dot_dimension_numbers<[1], [0], [0], [1], [0, 0, 1, 1], [], []>} : vector<8x32xbf16>, vector<32x8xbf16>, vector<8x8xf32> -> vector<8x8xf32>
    %45 = arith.truncf %38 : vector<8x8xf32> to vector<8x8xbf16>
    %46 = arith.truncf %41 : vector<8x8xf32> to vector<8x8xbf16>
    %cst_34 = arith.constant dense<0.000000e+00> : vector<8x8xf32>
    %47 = tpu.matmul %45, %46, %cst_34 {dimension_numbers = #tpu.dot_dimension_numbers<[1], [1], [0], [0], [0, 0, 1, 0], [], []>} : vector<8x8xbf16>, vector<8x8xbf16>, vector<8x8xf32> -> vector<8x8xf32>
    %cst_35 = arith.constant 0.353553385 : f32
    %48 = vector.broadcast %cst_35 : f32 to vector<8x8xf32>
    %49 = arith.mulf %47, %48 : vector<8x8xf32>
    %cst_36 = arith.constant dense<0xFF800000> : vector<8xf32>
    %50 = vector.multi_reduction <maximumf>, %49, %cst_36 [1] : vector<8x8xf32> to vector<8xf32>
    %51 = vector.shape_cast %50 : vector<8xf32> to vector<8x1xf32>
    %52 = vector.broadcast %51 : vector<8x1xf32> to vector<8x8xf32>
    %53 = arith.subf %49, %52 : vector<8x8xf32>
    %54 = math.exp %53 : vector<8x8xf32>
    %cst_37 = arith.constant dense<0.000000e+00> : vector<8xf32>
    %55 = vector.multi_reduction <add>, %54, %cst_37 [1] : vector<8x8xf32> to vector<8xf32>
    %56 = vector.shape_cast %55 : vector<8xf32> to vector<8x1xf32>
    %57 = tpu.reciprocal %56 {approx = true} : vector<8x1xf32> -> vector<8x1xf32>
    %58 = vector.broadcast %57 : vector<8x1xf32> to vector<8x8xf32>
    %59 = arith.mulf %54, %58 : vector<8x8xf32>
    %60 = arith.truncf %59 : vector<8x8xf32> to vector<8x8xbf16>
    %61 = arith.truncf %44 : vector<8x8xf32> to vector<8x8xbf16>
    %cst_38 = arith.constant dense<0.000000e+00> : vector<8x8xf32>
    %62 = tpu.matmul %60, %61, %cst_38 {dimension_numbers = #tpu.dot_dimension_numbers<[1], [0], [0], [1], [0, 0, 1, 1], [], []>} : vector<8x8xbf16>, vector<8x8xbf16>, vector<8x8xf32> -> vector<8x8xf32>
    %63 = arith.truncf %62 : vector<8x8xf32> to vector<8x8xbf16>
    %c1_39 = arith.constant 1 : index
    %c0_40 = arith.constant 0 : index
    %c0_41 = arith.constant 0 : index
    %64 = vector.load %arg5[%c1_39, %c0_40, %c0_41] : memref<4x8x32xbf16, #tpu.memory_space<vmem>>, vector<1x8x32xbf16>
    %65 = vector.shape_cast %64 : vector<1x8x32xbf16> to vector<8x32xbf16>
    %cst_42 = arith.constant dense<0.000000e+00> : vector<8x32xf32>
    %66 = tpu.matmul %63, %65, %cst_42 {dimension_numbers = #tpu.dot_dimension_numbers<[1], [0], [0], [1], [0, 0, 1, 1], [], []>} : vector<8x8xbf16>, vector<8x32xbf16>, vector<8x32xf32> -> vector<8x32xf32>
    %67 = arith.addf %35, %66 : vector<8x32xf32>
    %c2 = arith.constant 2 : index
    %c0_43 = arith.constant 0 : index
    %c0_44 = arith.constant 0 : index
    %68 = vector.load %arg2[%c2, %c0_43, %c0_44] : memref<4x32x8xbf16, #tpu.memory_space<vmem>>, vector<1x32x8xbf16>
    %69 = vector.shape_cast %68 : vector<1x32x8xbf16> to vector<32x8xbf16>
    %cst_45 = arith.constant dense<0.000000e+00> : vector<8x8xf32>
    %70 = tpu.matmul %1, %69, %cst_45 {dimension_numbers = #tpu.dot_dimension_numbers<[1], [0], [0], [1], [0, 0, 1, 1], [], []>} : vector<8x32xbf16>, vector<32x8xbf16>, vector<8x8xf32> -> vector<8x8xf32>
    %c2_46 = arith.constant 2 : index
    %c0_47 = arith.constant 0 : index
    %c0_48 = arith.constant 0 : index
    %71 = vector.load %arg3[%c2_46, %c0_47, %c0_48] : memref<4x32x8xbf16, #tpu.memory_space<vmem>>, vector<1x32x8xbf16>
    %72 = vector.shape_cast %71 : vector<1x32x8xbf16> to vector<32x8xbf16>
    %cst_49 = arith.constant dense<0.000000e+00> : vector<8x8xf32>
    %73 = tpu.matmul %1, %72, %cst_49 {dimension_numbers = #tpu.dot_dimension_numbers<[1], [0], [0], [1], [0, 0, 1, 1], [], []>} : vector<8x32xbf16>, vector<32x8xbf16>, vector<8x8xf32> -> vector<8x8xf32>
    %c2_50 = arith.constant 2 : index
    %c0_51 = arith.constant 0 : index
    %c0_52 = arith.constant 0 : index
    %74 = vector.load %arg4[%c2_50, %c0_51, %c0_52] : memref<4x32x8xbf16, #tpu.memory_space<vmem>>, vector<1x32x8xbf16>
    %75 = vector.shape_cast %74 : vector<1x32x8xbf16> to vector<32x8xbf16>
    %cst_53 = arith.constant dense<0.000000e+00> : vector<8x8xf32>
    %76 = tpu.matmul %1, %75, %cst_53 {dimension_numbers = #tpu.dot_dimension_numbers<[1], [0], [0], [1], [0, 0, 1, 1], [], []>} : vector<8x32xbf16>, vector<32x8xbf16>, vector<8x8xf32> -> vector<8x8xf32>
    %77 = arith.truncf %70 : vector<8x8xf32> to vector<8x8xbf16>
    %78 = arith.truncf %73 : vector<8x8xf32> to vector<8x8xbf16>
    %cst_54 = arith.constant dense<0.000000e+00> : vector<8x8xf32>
    %79 = tpu.matmul %77, %78, %cst_54 {dimension_numbers = #tpu.dot_dimension_numbers<[1], [1], [0], [0], [0, 0, 1, 0], [], []>} : vector<8x8xbf16>, vector<8x8xbf16>, vector<8x8xf32> -> vector<8x8xf32>
    %cst_55 = arith.constant 0.353553385 : f32
    %80 = vector.broadcast %cst_55 : f32 to vector<8x8xf32>
    %81 = arith.mulf %79, %80 : vector<8x8xf32>
    %cst_56 = arith.constant dense<0xFF800000> : vector<8xf32>
    %82 = vector.multi_reduction <maximumf>, %81, %cst_56 [1] : vector<8x8xf32> to vector<8xf32>
    %83 = vector.shape_cast %82 : vector<8xf32> to vector<8x1xf32>
    %84 = vector.broadcast %83 : vector<8x1xf32> to vector<8x8xf32>
    %85 = arith.subf %81, %84 : vector<8x8xf32>
    %86 = math.exp %85 : vector<8x8xf32>
    %cst_57 = arith.constant dense<0.000000e+00> : vector<8xf32>
    %87 = vector.multi_reduction <add>, %86, %cst_57 [1] : vector<8x8xf32> to vector<8xf32>
    %88 = vector.shape_cast %87 : vector<8xf32> to vector<8x1xf32>
    %89 = tpu.reciprocal %88 {approx = true} : vector<8x1xf32> -> vector<8x1xf32>
    %90 = vector.broadcast %89 : vector<8x1xf32> to vector<8x8xf32>
    %91 = arith.mulf %86, %90 : vector<8x8xf32>
    %92 = arith.truncf %91 : vector<8x8xf32> to vector<8x8xbf16>
    %93 = arith.truncf %76 : vector<8x8xf32> to vector<8x8xbf16>
    %cst_58 = arith.constant dense<0.000000e+00> : vector<8x8xf32>
    %94 = tpu.matmul %92, %93, %cst_58 {dimension_numbers = #tpu.dot_dimension_numbers<[1], [0], [0], [1], [0, 0, 1, 1], [], []>} : vector<8x8xbf16>, vector<8x8xbf16>, vector<8x8xf32> -> vector<8x8xf32>
    %95 = arith.truncf %94 : vector<8x8xf32> to vector<8x8xbf16>
    %c2_59 = arith.constant 2 : index
    %c0_60 = arith.constant 0 : index
    %c0_61 = arith.constant 0 : index
    %96 = vector.load %arg5[%c2_59, %c0_60, %c0_61] : memref<4x8x32xbf16, #tpu.memory_space<vmem>>, vector<1x8x32xbf16>
    %97 = vector.shape_cast %96 : vector<1x8x32xbf16> to vector<8x32xbf16>
    %cst_62 = arith.constant dense<0.000000e+00> : vector<8x32xf32>
    %98 = tpu.matmul %95, %97, %cst_62 {dimension_numbers = #tpu.dot_dimension_numbers<[1], [0], [0], [1], [0, 0, 1, 1], [], []>} : vector<8x8xbf16>, vector<8x32xbf16>, vector<8x32xf32> -> vector<8x32xf32>
    %99 = arith.addf %67, %98 : vector<8x32xf32>
    %c3 = arith.constant 3 : index
    %c0_63 = arith.constant 0 : index
    %c0_64 = arith.constant 0 : index
    %100 = vector.load %arg2[%c3, %c0_63, %c0_64] : memref<4x32x8xbf16, #tpu.memory_space<vmem>>, vector<1x32x8xbf16>
    %101 = vector.shape_cast %100 : vector<1x32x8xbf16> to vector<32x8xbf16>
    %cst_65 = arith.constant dense<0.000000e+00> : vector<8x8xf32>
    %102 = tpu.matmul %1, %101, %cst_65 {dimension_numbers = #tpu.dot_dimension_numbers<[1], [0], [0], [1], [0, 0, 1, 1], [], []>} : vector<8x32xbf16>, vector<32x8xbf16>, vector<8x8xf32> -> vector<8x8xf32>
    %c3_66 = arith.constant 3 : index
    %c0_67 = arith.constant 0 : index
    %c0_68 = arith.constant 0 : index
    %103 = vector.load %arg3[%c3_66, %c0_67, %c0_68] : memref<4x32x8xbf16, #tpu.memory_space<vmem>>, vector<1x32x8xbf16>
    %104 = vector.shape_cast %103 : vector<1x32x8xbf16> to vector<32x8xbf16>
    %cst_69 = arith.constant dense<0.000000e+00> : vector<8x8xf32>
    %105 = tpu.matmul %1, %104, %cst_69 {dimension_numbers = #tpu.dot_dimension_numbers<[1], [0], [0], [1], [0, 0, 1, 1], [], []>} : vector<8x32xbf16>, vector<32x8xbf16>, vector<8x8xf32> -> vector<8x8xf32>
    %c3_70 = arith.constant 3 : index
    %c0_71 = arith.constant 0 : index
    %c0_72 = arith.constant 0 : index
    %106 = vector.load %arg4[%c3_70, %c0_71, %c0_72] : memref<4x32x8xbf16, #tpu.memory_space<vmem>>, vector<1x32x8xbf16>
    %107 = vector.shape_cast %106 : vector<1x32x8xbf16> to vector<32x8xbf16>
    %cst_73 = arith.constant dense<0.000000e+00> : vector<8x8xf32>
    %108 = tpu.matmul %1, %107, %cst_73 {dimension_numbers = #tpu.dot_dimension_numbers<[1], [0], [0], [1], [0, 0, 1, 1], [], []>} : vector<8x32xbf16>, vector<32x8xbf16>, vector<8x8xf32> -> vector<8x8xf32>
    %109 = arith.truncf %102 : vector<8x8xf32> to vector<8x8xbf16>
    %110 = arith.truncf %105 : vector<8x8xf32> to vector<8x8xbf16>
    %cst_74 = arith.constant dense<0.000000e+00> : vector<8x8xf32>
    %111 = tpu.matmul %109, %110, %cst_74 {dimension_numbers = #tpu.dot_dimension_numbers<[1], [1], [0], [0], [0, 0, 1, 0], [], []>} : vector<8x8xbf16>, vector<8x8xbf16>, vector<8x8xf32> -> vector<8x8xf32>
    %cst_75 = arith.constant 0.353553385 : f32
    %112 = vector.broadcast %cst_75 : f32 to vector<8x8xf32>
    %113 = arith.mulf %111, %112 : vector<8x8xf32>
    %cst_76 = arith.constant dense<0xFF800000> : vector<8xf32>
    %114 = vector.multi_reduction <maximumf>, %113, %cst_76 [1] : vector<8x8xf32> to vector<8xf32>
    %115 = vector.shape_cast %114 : vector<8xf32> to vector<8x1xf32>
    %116 = vector.broadcast %115 : vector<8x1xf32> to vector<8x8xf32>
    %117 = arith.subf %113, %116 : vector<8x8xf32>
    %118 = math.exp %117 : vector<8x8xf32>
    %cst_77 = arith.constant dense<0.000000e+00> : vector<8xf32>
    %119 = vector.multi_reduction <add>, %118, %cst_77 [1] : vector<8x8xf32> to vector<8xf32>
    %120 = vector.shape_cast %119 : vector<8xf32> to vector<8x1xf32>
    %121 = tpu.reciprocal %120 {approx = true} : vector<8x1xf32> -> vector<8x1xf32>
    %122 = vector.broadcast %121 : vector<8x1xf32> to vector<8x8xf32>
    %123 = arith.mulf %118, %122 : vector<8x8xf32>
    %124 = arith.truncf %123 : vector<8x8xf32> to vector<8x8xbf16>
    %125 = arith.truncf %108 : vector<8x8xf32> to vector<8x8xbf16>
    %cst_78 = arith.constant dense<0.000000e+00> : vector<8x8xf32>
    %126 = tpu.matmul %124, %125, %cst_78 {dimension_numbers = #tpu.dot_dimension_numbers<[1], [0], [0], [1], [0, 0, 1, 1], [], []>} : vector<8x8xbf16>, vector<8x8xbf16>, vector<8x8xf32> -> vector<8x8xf32>
    %127 = arith.truncf %126 : vector<8x8xf32> to vector<8x8xbf16>
    %c3_79 = arith.constant 3 : index
    %c0_80 = arith.constant 0 : index
    %c0_81 = arith.constant 0 : index
    %128 = vector.load %arg5[%c3_79, %c0_80, %c0_81] : memref<4x8x32xbf16, #tpu.memory_space<vmem>>, vector<1x8x32xbf16>
    %129 = vector.shape_cast %128 : vector<1x8x32xbf16> to vector<8x32xbf16>
    %cst_82 = arith.constant dense<0.000000e+00> : vector<8x32xf32>
    %130 = tpu.matmul %127, %129, %cst_82 {dimension_numbers = #tpu.dot_dimension_numbers<[1], [0], [0], [1], [0, 0, 1, 1], [], []>} : vector<8x8xbf16>, vector<8x32xbf16>, vector<8x32xf32> -> vector<8x32xf32>
    %131 = arith.addf %99, %130 : vector<8x32xf32>
    %c0_83 = arith.constant 0 : index
    %c0_84 = arith.constant 0 : index
    %132 = vector.load %arg6[%c0_83, %c0_84] : memref<1x32xf32, #tpu.memory_space<vmem>>, vector<1x32xf32>
    %133 = vector.broadcast %132 : vector<1x32xf32> to vector<8x32xf32>
    %134 = arith.addf %131, %133 : vector<8x32xf32>
    %135 = arith.addf %2, %134 : vector<8x32xf32>
    %c0_85 = arith.constant 0 : index
    %c0_86 = arith.constant 0 : index
    %136 = vector.load %arg7[%c0_85, %c0_86] : memref<1x32xf32, #tpu.memory_space<vmem>>, vector<1x32xf32>
    %c0_87 = arith.constant 0 : index
    %c0_88 = arith.constant 0 : index
    %137 = vector.load %arg8[%c0_87, %c0_88] : memref<1x32xf32, #tpu.memory_space<vmem>>, vector<1x32xf32>
    %cst_89 = arith.constant dense<0.000000e+00> : vector<8xf32>
    %138 = vector.multi_reduction <add>, %135, %cst_89 [1] : vector<8x32xf32> to vector<8xf32>
    %139 = vector.shape_cast %138 : vector<8xf32> to vector<8x1xf32>
    %cst_90 = arith.constant 3.200000e+01 : f32
    %140 = vector.broadcast %cst_90 : f32 to vector<8x1xf32>
    %141 = arith.divf %139, %140 : vector<8x1xf32>
    %142 = vector.broadcast %141 : vector<8x1xf32> to vector<8x32xf32>
    %143 = arith.subf %135, %142 : vector<8x32xf32>
    %144 = arith.mulf %143, %143 : vector<8x32xf32>
    %cst_91 = arith.constant dense<0.000000e+00> : vector<8xf32>
    %145 = vector.multi_reduction <add>, %144, %cst_91 [1] : vector<8x32xf32> to vector<8xf32>
    %146 = vector.shape_cast %145 : vector<8xf32> to vector<8x1xf32>
    %cst_92 = arith.constant 3.200000e+01 : f32
    %147 = vector.broadcast %cst_92 : f32 to vector<8x1xf32>
    %148 = arith.divf %146, %147 : vector<8x1xf32>
    %149 = vector.broadcast %141 : vector<8x1xf32> to vector<8x32xf32>
    %150 = arith.subf %135, %149 : vector<8x32xf32>
    %cst_93 = arith.constant 9.99999974E-6 : f32
    %151 = vector.broadcast %cst_93 : f32 to vector<8x1xf32>
    %152 = arith.addf %148, %151 : vector<8x1xf32>
    %153 = math.sqrt %152 : vector<8x1xf32>
    %154 = vector.broadcast %153 : vector<8x1xf32> to vector<8x32xf32>
    %155 = arith.divf %150, %154 : vector<8x32xf32>
    %156 = vector.broadcast %136 : vector<1x32xf32> to vector<8x32xf32>
    %157 = arith.mulf %155, %156 : vector<8x32xf32>
    %158 = vector.broadcast %137 : vector<1x32xf32> to vector<8x32xf32>
    %159 = arith.addf %157, %158 : vector<8x32xf32>
    %160 = arith.truncf %159 : vector<8x32xf32> to vector<8x32xbf16>
    %c0_94 = arith.constant 0 : index
    %c0_95 = arith.constant 0 : index
    %c0_96 = arith.constant 0 : index
    %161 = vector.load %arg9[%c0_94, %c0_95, %c0_96] : memref<1x8x32xbf16, #tpu.memory_space<vmem>>, vector<1x8x32xbf16>
    %162 = vector.shape_cast %161 : vector<1x8x32xbf16> to vector<8x32xbf16>
    %163 = vector.shape_cast %160 : vector<8x32xbf16> to vector<1x8x32xbf16>
    tpu.vector_store %arg9[%c0_94, %c0_95, %c0_96], %163 {strides = array<i32>} : memref<1x8x32xbf16, #tpu.memory_space<vmem>>, vector<1x8x32xbf16>,
    return
  }
  func.func @transform_0(%arg0: i32) -> (i32, i32, i32) {
    %c0_i32 = arith.constant 0 : i32
    %c0_i32_0 = arith.constant 0 : i32
    %c0_i32_1 = arith.constant 0 : i32
    return %arg0, %c0_i32, %c0_i32_0 : i32, i32, i32
  }
  func.func @transform_1(%arg0: i32) -> (i32, i32, i32) {
    %c0_i32 = arith.constant 0 : i32
    %c0_i32_0 = arith.constant 0 : i32
    %c0_i32_1 = arith.constant 0 : i32
    %c0_i32_2 = arith.constant 0 : i32
    return %c0_i32, %c0_i32_0, %c0_i32_1 : i32, i32, i32
  }
  func.func @transform_2(%arg0: i32) -> (i32, i32, i32) {
    %c0_i32 = arith.constant 0 : i32
    %c0_i32_0 = arith.constant 0 : i32
    %c0_i32_1 = arith.constant 0 : i32
    %c0_i32_2 = arith.constant 0 : i32
    return %c0_i32, %c0_i32_0, %c0_i32_1 : i32, i32, i32
  }
  func.func @transform_3(%arg0: i32) -> (i32, i32, i32) {
    %c0_i32 = arith.constant 0 : i32
    %c0_i32_0 = arith.constant 0 : i32
    %c0_i32_1 = arith.constant 0 : i32
    %c0_i32_2 = arith.constant 0 : i32
    return %c0_i32, %c0_i32_0, %c0_i32_1 : i32, i32, i32
  }
  func.func @transform_4(%arg0: i32) -> (i32, i32, i32) {
    %c0_i32 = arith.constant 0 : i32
    %c0_i32_0 = arith.constant 0 : i32
    %c0_i32_1 = arith.constant 0 : i32
    %c0_i32_2 = arith.constant 0 : i32
    return %c0_i32, %c0_i32_0, %c0_i32_1 : i32, i32, i32
  }
  func.func @transform_5(%arg0: i32) -> (i32, i32) {
    %c0_i32 = arith.constant 0 : i32
    %c0_i32_0 = arith.constant 0 : i32
    %c0_i32_1 = arith.constant 0 : i32
    return %c0_i32, %c0_i32_0 : i32, i32
  }
  func.func @transform_6(%arg0: i32) -> (i32, i32) {
    %c0_i32 = arith.constant 0 : i32
    %c0_i32_0 = arith.constant 0 : i32
    %c0_i32_1 = arith.constant 0 : i32
    return %c0_i32, %c0_i32_0 : i32, i32
  }
  func.func @transform_7(%arg0: i32) -> (i32, i32) {
    %c0_i32 = arith.constant 0 : i32
    %c0_i32_0 = arith.constant 0 : i32
    %c0_i32_1 = arith.constant 0 : i32
    return %c0_i32, %c0_i32_0 : i32, i32
  }
  func.func @transform_8(%arg0: i32) -> (i32, i32, i32) {
    %c0_i32 = arith.constant 0 : i32
    %c0_i32_0 = arith.constant 0 : i32
    %c0_i32_1 = arith.constant 0 : i32
    return %arg0, %c0_i32, %c0_i32_0 : i32, i32, i32
  }
}

module attributes {stable_mosaic.version = 11 : i64} {
  func.func @_det_head_kernel(%arg0: memref<2x32xf32, #tpu.memory_space<vmem>>, %arg1: memref<32x16xf32, #tpu.memory_space<vmem>>, %arg2: memref<1x16xf32, #tpu.memory_space<vmem>>, %arg3: memref<16x8xf32, #tpu.memory_space<vmem>>, %arg4: memref<1x8xf32, #tpu.memory_space<vmem>>, %arg5: memref<8x2xf32, #tpu.memory_space<vmem>>, %arg6: memref<1x2xf32, #tpu.memory_space<vmem>>, %arg7: memref<2x2xf32, #tpu.memory_space<vmem>>) attributes {dimension_semantics = [], scalar_prefetch = 0 : i64, scratch_operands = 0 : i64, tpu.core_type = #tpu.core_type<tc>} {
    %c0 = arith.constant 0 : index
    %c0_0 = arith.constant 0 : index
    %0 = vector.load %arg0[%c0, %c0_0] : memref<2x32xf32, #tpu.memory_space<vmem>>, vector<2x32xf32>
    %c0_1 = arith.constant 0 : index
    %c0_2 = arith.constant 0 : index
    %1 = vector.load %arg1[%c0_1, %c0_2] : memref<32x16xf32, #tpu.memory_space<vmem>>, vector<32x16xf32>
    %cst = arith.constant dense<0.000000e+00> : vector<2x16xf32>
    %2 = tpu.matmul %0, %1, %cst {dimension_numbers = #tpu.dot_dimension_numbers<[1], [0], [0], [1], [0, 0, 1, 1], [], []>} : vector<2x32xf32>, vector<32x16xf32>, vector<2x16xf32> -> vector<2x16xf32>
    %c0_3 = arith.constant 0 : index
    %c0_4 = arith.constant 0 : index
    %3 = vector.load %arg2[%c0_3, %c0_4] : memref<1x16xf32, #tpu.memory_space<vmem>>, vector<1x16xf32>
    %4 = vector.broadcast %3 : vector<1x16xf32> to vector<2x16xf32>
    %5 = arith.addf %2, %4 : vector<2x16xf32>
    %cst_5 = arith.constant 0.000000e+00 : f32
    %6 = vector.broadcast %cst_5 : f32 to vector<2x16xf32>
    %7 = arith.maximumf %5, %6 : vector<2x16xf32>
    %c0_6 = arith.constant 0 : index
    %c0_7 = arith.constant 0 : index
    %8 = vector.load %arg3[%c0_6, %c0_7] : memref<16x8xf32, #tpu.memory_space<vmem>>, vector<16x8xf32>
    %cst_8 = arith.constant dense<0.000000e+00> : vector<2x8xf32>
    %9 = tpu.matmul %7, %8, %cst_8 {dimension_numbers = #tpu.dot_dimension_numbers<[1], [0], [0], [1], [0, 0, 1, 1], [], []>} : vector<2x16xf32>, vector<16x8xf32>, vector<2x8xf32> -> vector<2x8xf32>
    %c0_9 = arith.constant 0 : index
    %c0_10 = arith.constant 0 : index
    %10 = vector.load %arg4[%c0_9, %c0_10] : memref<1x8xf32, #tpu.memory_space<vmem>>, vector<1x8xf32>
    %11 = vector.broadcast %10 : vector<1x8xf32> to vector<2x8xf32>
    %12 = arith.addf %9, %11 : vector<2x8xf32>
    %cst_11 = arith.constant 0.000000e+00 : f32
    %13 = vector.broadcast %cst_11 : f32 to vector<2x8xf32>
    %14 = arith.maximumf %12, %13 : vector<2x8xf32>
    %c0_12 = arith.constant 0 : index
    %c0_13 = arith.constant 0 : index
    %15 = vector.load %arg5[%c0_12, %c0_13] : memref<8x2xf32, #tpu.memory_space<vmem>>, vector<8x2xf32>
    %cst_14 = arith.constant dense<0.000000e+00> : vector<2x2xf32>
    %16 = tpu.matmul %14, %15, %cst_14 {dimension_numbers = #tpu.dot_dimension_numbers<[1], [0], [0], [1], [0, 0, 1, 1], [], []>} : vector<2x8xf32>, vector<8x2xf32>, vector<2x2xf32> -> vector<2x2xf32>
    %c0_15 = arith.constant 0 : index
    %c0_16 = arith.constant 0 : index
    %17 = vector.load %arg6[%c0_15, %c0_16] : memref<1x2xf32, #tpu.memory_space<vmem>>, vector<1x2xf32>
    %18 = vector.broadcast %17 : vector<1x2xf32> to vector<2x2xf32>
    %19 = arith.addf %16, %18 : vector<2x2xf32>
    %c0_17 = arith.constant 0 : index
    %c0_18 = arith.constant 0 : index
    %20 = vector.load %arg7[%c0_17, %c0_18] : memref<2x2xf32, #tpu.memory_space<vmem>>, vector<2x2xf32>
    tpu.vector_store %arg7[%c0_17, %c0_18], %19 {strides = array<i32>} : memref<2x2xf32, #tpu.memory_space<vmem>>, vector<2x2xf32>,
    return
  }
}

</mosaic_0001>

<llo_original>
// kernel: anomaly_transformer_forward.6
$region0: #{anomaly_transformer_forward.6}
  #allocation0 [shape = 'u32[]', space=smem, size = 0x4, offset = 0x4, fixed_abs, tag = 'smem constant byte address 0x4 - core index']
  #allocation1 [shape = 'u32[144,128]{1,0:T(1,128)}', space=vmem, size = 0x12000, scoped, tag = 'internal scratch']
  %s0 = inlined_call_operand.vmem [shape: bf16[2,8,16], index: 0, kind: input, shape index: {}]
  %s1 = inlined_call_operand.vmem [shape: bf16[16,32], index: 1, kind: input, shape index: {}]
  %s2 = inlined_call_operand.vmem [shape: f32[1,32], index: 2, kind: input, shape index: {}]
  %s3 = inlined_call_operand.vmem [shape: f32[8,32], index: 3, kind: input, shape index: {}]
  %s4 = inlined_call_operand.vmem [shape: bf16[2,8,32], index: 4, kind: output, shape index: {}]
  %s5 = sld [smem:[#allocation0]]
  $region49: #{anomaly_transformer_forward.6} parent=0
    _
  %s7 = ssub.s32 1, %s5
  %s8 = scalar_select 0, %s7, %s5
  loop: start=0, step=1, limit=4
  $region2: #{anomaly_transformer_forward.6} parent=0 // loop_pre_header
    _
  $region3: #{anomaly_transformer_forward.6} parent=0 // loop_header
    %s10 = sphi 0, %s14
    %p11 = scmp.ge.s32.totalorder %s10, 4
    %s17 = sphi 0, %s29
    %s18 = sphi 0, %s25
    %s19 = sphi 0, %s17
    %s20 = sphi 0, %s18
    %s21 = sphi 0, %s19
    %s22 = sphi 0, %s20
    %s34 = sphi 0, %s36
    %s37 = sphi 0, %s34
    %s38 = sphi 0, %s37
    %s54 = sphi 0, %s38
    %s58 = sphi 0, %s58
    %s60 = sphi 0, %s58
    %s61 = sphi 0, %s60
    %s75 = sphi 0, %s61
    %s79 = sphi 0, %s79
    %s81 = sphi 0, %s79
    %s82 = sphi 0, %s81
    %s96 = sphi 0, %s82
    %s102 = sphi 0, %s104
    %s105 = sphi 0, %s102
    %s106 = sphi 0, %s105
    %s122 = sphi 0, %s106
    %s130 = sphi 0, %s132
    %s133 = sphi 0, %s130
    %s134 = sphi 0, %s133
    %s150 = sphi 0, %s134
  $region4: #{anomaly_transformer_forward.6} parent=0 // loop_header_branch
    %13 = sbr.rel (%p11) target = $region8
  $region5: #{anomaly_transformer_forward.6} parent=0 // loop_body
    %s15 = ssub.s32 %s10, 1
    %s16 = ssub.s32 %s10, 2
    %s23 = sadd.s32 1, %s18
    %p24 = scmp.ge.s32.totalorder %s23, 1
    %s25 = scalar_select %p24, 0, %s23
    %s26 = sadd.s32 1, %s17
    %s27 = scalar_select %p24, %s26, %s17
    %p28 = scmp.ge.s32.totalorder %s27, 2
    %s29 = scalar_select %p28, 0, %s27
    %s30 = ssub.s32 %s17, %s29
    %s31 = ssub.s32 %s18, %s25
    %s32 = sor.u32 %s30, %s31
    %p33 = scmp.eq.s32.totalorder %s32, 0
    %s35 = sadd.s32 %s34, 1
    %s36 = scalar_select %p33, %s34, %s35
    %p39 = pneg %p33
    %p40 = scmp.eq.s32.totalorder %s10, 1
    %p41 = por %p39, %p40
    %p42 = scmp.ne.s32.totalorder %s34, %s37
    %p43 = scmp.eq.s32.totalorder %s10, 0
    %p44 = por %p42, %p43
    %p45 = scmp.ne.s32.totalorder %s34, %s37
    %p46 = scmp.eq.s32.totalorder %s15, 1
    %p47 = por %p45, %p46
    %p48 = scmp.ne.s32.totalorder %s37, %s38
    %p49 = scmp.eq.s32.totalorder %s15, 0
    %p50 = por %p48, %p49
    %p51 = scmp.ne.s32.totalorder %s37, %s38
    %p52 = scmp.eq.s32.totalorder %s16, 1
    %p53 = por %p51, %p52
    %p55 = scmp.ne.s32.totalorder %s38, %s54
    %p56 = scmp.eq.s32.totalorder %s16, 0
    %p57 = por %p55, %p56
    %s59 = sadd.s32 %s58, 1
    %p62 = scmp.eq.s32.totalorder %s10, 1
    %p63 = scmp.ne.s32.totalorder %s58, %s60
    %p64 = scmp.eq.s32.totalorder %s10, 0
    %p65 = por %p63, %p64
    %p66 = scmp.ne.s32.totalorder %s58, %s60
    %p67 = scmp.eq.s32.totalorder %s15, 1
    %p68 = por %p66, %p67
    %p69 = scmp.ne.s32.totalorder %s60, %s61
    %p70 = scmp.eq.s32.totalorder %s15, 0
    %p71 = por %p69, %p70
    %p72 = scmp.ne.s32.totalorder %s60, %s61
    %p73 = scmp.eq.s32.totalorder %s16, 1
    %p74 = por %p72, %p73
    %p76 = scmp.ne.s32.totalorder %s61, %s75
    %p77 = scmp.eq.s32.totalorder %s16, 0
    %p78 = por %p76, %p77
    %s80 = sadd.s32 %s79, 1
    %p83 = scmp.eq.s32.totalorder %s10, 1
    %p84 = scmp.ne.s32.totalorder %s79, %s81
    %p85 = scmp.eq.s32.totalorder %s10, 0
    %p86 = por %p84, %p85
    %p87 = scmp.ne.s32.totalorder %s79, %s81
    %p88 = scmp.eq.s32.totalorder %s15, 1
    %p89 = por %p87, %p88
    %p90 = scmp.ne.s32.totalorder %s81, %s82
    %p91 = scmp.eq.s32.totalorder %s15, 0
    %p92 = por %p90, %p91
    %p93 = scmp.ne.s32.totalorder %s81, %s82
    %p94 = scmp.eq.s32.totalorder %s16, 1
    %p95 = por %p93, %p94
    %p97 = scmp.ne.s32.totalorder %s82, %s96
    %p98 = scmp.eq.s32.totalorder %s16, 0
    %p99 = por %p97, %p98
    %s100 = ssub.s32 %s18, %s25
    %p101 = scmp.eq.s32.totalorder %s100, 0
    %s103 = sadd.s32 %s102, 1
    %s104 = scalar_select %p101, %s102, %s103
    %p107 = pneg %p101
    %p108 = scmp.eq.s32.totalorder %s10, 1
    %p109 = por %p107, %p108
    %p110 = scmp.ne.s32.totalorder %s102, %s105
    %p111 = scmp.eq.s32.totalorder %s10, 0
    %p112 = por %p110, %p111
    %p113 = scmp.ne.s32.totalorder %s102, %s105
    %p114 = scmp.eq.s32.totalorder %s15, 1
    %p115 = por %p113, %p114
    %p116 = scmp.ne.s32.totalorder %s105, %s106
    %p117 = scmp.eq.s32.totalorder %s15, 0
    %p118 = por %p116, %p117
    %p119 = scmp.ne.s32.totalorder %s105, %s106
    %p120 = scmp.eq.s32.totalorder %s16, 1
    %p121 = por %p119, %p120
    %p123 = scmp.ne.s32.totalorder %s106, %s122
    %p124 = scmp.eq.s32.totalorder %s16, 0
    %p125 = por %p123, %p124
    %s126 = ssub.s32 %s17, %s29
    %s127 = ssub.s32 %s18, %s25
    %s128 = sor.u32 %s126, %s127
    %p129 = scmp.eq.s32.totalorder %s128, 0
    %s131 = sadd.s32 %s130, 1
    %s132 = scalar_select %p129, %s130, %s131
    %p135 = pneg %p129
    %p136 = scmp.eq.s32.totalorder %s10, 1
    %p137 = por %p135, %p136
    %p138 = scmp.ne.s32.totalorder %s130, %s133
    %p139 = scmp.eq.s32.totalorder %s10, 0
    %p140 = por %p138, %p139
    %p141 = scmp.ne.s32.totalorder %s130, %s133
    %p142 = scmp.eq.s32.totalorder %s15, 1
    %p143 = por %p141, %p142
    %p144 = scmp.ne.s32.totalorder %s133, %s134
    %p145 = scmp.eq.s32.totalorder %s15, 0
    %p146 = por %p144, %p145
    %p147 = scmp.ne.s32.totalorder %s133, %s134
    %p148 = scmp.eq.s32.totalorder %s16, 1
    %p149 = por %p147, %p148
    %p151 = scmp.ne.s32.totalorder %s134, %s150
    %p152 = scmp.eq.s32.totalorder %s16, 0
    %p153 = por %p151, %p152
    %p154 = scmp.le.s32.totalorder 1, %s10
    %p155 = scmp.lt.s32.totalorder %s10, 3
    %p156 = pnand %p154, %p155
    %p157 = pneg %p156
    // Predicated region
    $region9: #{anomaly_transformer_forward.6} parent=5 // pred_check
      _
    $region10: #{anomaly_transformer_forward.6} parent=5 // pred_check_branch
      %159 = sbr.rel (%p156) target = $region12
    $region11: #{anomaly_transformer_forward.6} parent=5 // pred_region
      %s160 = ssub.s32 %s10, 1
      // Predicated region
      $region13: #{anomaly_transformer_forward.6} parent=11 // pred_check
        %p161 = pneg %p71
      $region14: #{anomaly_transformer_forward.6} parent=11 // pred_check_branch
        %163 = sbr.rel (%p161) target = $region16
      $region15: #{anomaly_transformer_forward.6} parent=11 // pred_region
        _
      $region16: #{anomaly_transformer_forward.6} parent=11 // pred_fallthru
        _
      // Predicated region
      $region17: #{anomaly_transformer_forward.6} parent=11 // pred_check
        %p164 = pneg %p92
      $region18: #{anomaly_transformer_forward.6} parent=11 // pred_check_branch
        %166 = sbr.rel (%p164) target = $region20
      $region19: #{anomaly_transformer_forward.6} parent=11 // pred_region
        _
      $region20: #{anomaly_transformer_forward.6} parent=11 // pred_fallthru
        _
      // Predicated region
      $region21: #{anomaly_transformer_forward.6} parent=11 // pred_check
        %p167 = pneg %p118
      $region22: #{anomaly_transformer_forward.6} parent=11 // pred_check_branch
        %169 = sbr.rel (%p167) target = $region24
      $region23: #{anomaly_transformer_forward.6} parent=11 // pred_region
        %p170 = scmp.lt.s32.totalorder %s20, 0
        %s171 = scalar_select %p170, %s20, 0
        %s172 = smul.addr %s171, 8
        %s173 = scalar_lea.vmem %s3, %s172
      $region24: #{anomaly_transformer_forward.6} parent=11 // pred_fallthru
        _
    $region12: #{anomaly_transformer_forward.6} parent=5 // pred_fallthru
      _
    %p174 = scmp.lt.s32.totalorder %s10, 2
    // Predicated region
    $region25: #{anomaly_transformer_forward.6} parent=5 // pred_check
      %p175 = pneg %p174
    $region26: #{anomaly_transformer_forward.6} parent=5 // pred_check_branch
      %177 = sbr.rel (%p175) target = $region28
    $region27: #{anomaly_transformer_forward.6} parent=5 // pred_region
      // Predicated region
      $region29: #{anomaly_transformer_forward.6} parent=27 // pred_check
        %p178 = pneg %p44
      $region30: #{anomaly_transformer_forward.6} parent=27 // pred_check_branch
        %180 = sbr.rel (%p178) target = $region32
      $region31: #{anomaly_transformer_forward.6} parent=27 // pred_region
        %p181 = scmp.lt.s32.totalorder %s17, 1
        %s182 = scalar_select %p181, %s17, 1
        %p183 = scmp.lt.s32.totalorder %s18, 0
        %s184 = scalar_select %p183, %s18, 0
        %s185 = sadd.s32 %s184, %s182
        %s186 = smul.addr %s185, 4
        %s187 = scalar_lea.vmem %s0, %s186
      $region32: #{anomaly_transformer_forward.6} parent=27 // pred_fallthru
        _
    $region28: #{anomaly_transformer_forward.6} parent=5 // pred_fallthru
      _
    %p188 = scmp.le.s32.totalorder 1, %s10
    %p189 = scmp.lt.s32.totalorder %s10, 3
    %p190 = pnand %p188, %p189
    %p191 = pneg %p190
    // Predicated region
    $region33: #{anomaly_transformer_forward.6} parent=5 // pred_check
      _
    $region34: #{anomaly_transformer_forward.6} parent=5 // pred_check_branch
      %193 = sbr.rel (%p190) target = $region36
    $region35: #{anomaly_transformer_forward.6} parent=5 // pred_region
      %s194 = ssub.s32 %s10, 1
      %p195 = scmp.lt.s32.totalorder %s19, 1
      %s196 = scalar_select %p195, %s19, 1
      %p197 = scmp.lt.s32.totalorder %s20, 0
      %s198 = scalar_select %p197, %s20, 0
      %s199 = sadd.s32 %s198, %s196
      %s200 = smul.addr %s199, 4
      %s201 = scalar_lea.vmem %s0, %s200
      %p202 = pneg %p50
      %p203 = pneg %p47
      %p204 = pneg %p71
      %p205 = pneg %p68
      %p206 = pneg %p92
      %p207 = pneg %p89
      %p208 = scmp.lt.s32.totalorder %s20, 0
      %s209 = scalar_select %p208, %s20, 0
      %s210 = smul.addr %s209, 8
      %s211 = scalar_lea.vmem %s3, %s210
      %p212 = pneg %p118
      %p213 = pneg %p115
      %p214 = pneg %p146
      %p215 = pneg %p143
      %p216 = scmp.lt.s32.totalorder %s19, 1
      %s217 = scalar_select %p216, %s19, 1
      %p218 = scmp.lt.s32.totalorder %s20, 0
      %s219 = scalar_select %p218, %s20, 0
      %s220 = sadd.s32 %s219, %s217
      %s221 = smul.addr %s220, 4
      %s222 = scalar_lea.vmem %s4, %s221
      %p223 = scmp.lt.s32.totalorder %s19, 1
      %s224 = scalar_select %p223, %s19, 1
      %p225 = scmp.lt.s32.totalorder %s20, 0
      %s226 = scalar_select %p225, %s20, 0
      %s227 = sadd.s32 %s226, %s224
      %s228 = smul.addr %s227, 4
      %s229 = scalar_lea.vmem %s0, %s228
      %p230 = scmp.lt.s32.totalorder %s20, 0
      %s231 = scalar_select %p230, %s20, 0
      %s232 = smul.addr %s231, 8
      %s233 = scalar_lea.vmem %s3, %s232
      %p234 = scmp.lt.s32.totalorder %s19, 1
      %s235 = scalar_select %p234, %s19, 1
      %p236 = scmp.lt.s32.totalorder %s20, 0
      %s237 = scalar_select %p236, %s20, 0
      %s238 = sadd.s32 %s237, %s235
      %s239 = smul.addr %s238, 4
      %s240 = scalar_lea.vmem %s4, %s239
      %v242 = vld [vmem:[%s229] sm:$0xf]
      %v243 = vld [vmem:[%s1] sm:$0xf]
      %v244 = vld [vmem:[%s1 + $0x4] sm:$0xf]
      %v245 = vld [vmem:[%s2] sm:$0x1]
      %v247 = vlaneseq
      %v248 = vshrl.u32 %v247, 7
      %v249 = vsub.s32 0, %v248
      %v250 = vrot.slane %v245, %v249
      %v254 = vunpack.c.l.b16 %v243
      %v255 = vunpack.c.l.b16 %v244
      %v256 = vpack.c.b16 %v255, %v254
      %vm258 = vcmask 130048
      %v260 = vsel %vm258, %v242, 0
      %262 = vmatprep.subr.bf16.mxu0 0
      %263 = vmatpush1.bf16.msra.mxu0 %v256
      %264 = vmatprep.subr.bf16.mxu0 0
      %265 = vmatpush1.bf16.msra.mxu0 0
      %266 = vmatprep.subr.bf16.mxu0 0
      %267 = vmatpush1.bf16.msra.mxu0 0
      %268 = vmatprep.subr.bf16.mxu0 0
      %269 = vmatpush1.bf16.msra.mxu0 0
      %270 = vmatprep.subr.bf16.mxu0 0
      %271 = vmatpush1.bf16.msra.mxu0 0
      %272 = vmatprep.subr.bf16.mxu0 0
      %273 = vmatpush1.bf16.msra.mxu0 0
      %274 = vmatprep.subr.bf16.mxu0 0
      %275 = vmatpush1.bf16.msra.mxu0 0
      %276 = vmatprep.subr.bf16.mxu0 0
      %277 = vmatpush1.bf16.msra.mxu0 0
      %278 = vmatprep.subr.bf16.mxu0 0
      %279 = vmatpush1.bf16.msra.mxu0 0
      %280 = vmatprep.subr.bf16.mxu0 0
      %281 = vmatpush1.bf16.msra.mxu0 0
      %282 = vmatprep.subr.bf16.mxu0 0
      %283 = vmatpush1.bf16.msra.mxu0 0
      %284 = vmatprep.subr.bf16.mxu0 0
      %285 = vmatpush1.bf16.msra.mxu0 0
      %286 = vmatprep.subr.bf16.mxu0 0
      %287 = vmatpush1.bf16.msra.mxu0 0
      %288 = vmatprep.subr.bf16.mxu0 0
      %289 = vmatpush1.bf16.msra.mxu0 0
      %290 = vmatprep.subr.bf16.mxu0 0
      %291 = vmatpush1.bf16.msra.mxu0 0
      %292 = vmatprep.subr.bf16.mxu0 0
      %293 = vmatpush1.bf16.msra.mxu0 0
      %294 = vmatprep.mubr.bf16.mxu0 0
      %295 = vmatmul.mubr.bf16.gmra.mrb[0].mxu0 %v260
      %v296 = vpop.f32.mrb[0].mxu0
      %v297 = vadd.f32 %v250, %v296
      %v298 = vpop.f32.mrb[0].mxu0
      %v299 = vpop.f32.mrb[0].mxu0
      %v300 = vpop.f32.mrb[0].mxu0
      %301 = vdwg.mxu0
      %v302 = vld [vmem:[%s233] sm:$0xff]
      %v303 = vadd.f32 %v297, %v302
      %v304 = vpack.c.bf16 %v303, %v303
      %vm305 = vcmask 257024
      %306 = vst.msk [vmem:[%s240] sm:$0xf] %vm305, %v304
      %p307 = scmp.lt.s32.totalorder %s19, 1
      %s308 = scalar_select %p307, %s19, 1
      %p309 = scmp.lt.s32.totalorder %s20, 0
      %s310 = scalar_select %p309, %s20, 0
      %s311 = sadd.s32 %s310, %s308
      %s312 = smul.addr %s311, 4
      %s313 = scalar_lea.vmem %s4, %s312
      // Predicated region
      $region37: #{anomaly_transformer_forward.6} parent=35 // pred_check
        %p314 = pneg %p143
      $region38: #{anomaly_transformer_forward.6} parent=35 // pred_check_branch
        %316 = sbr.rel (%p314) target = $region40
      $region39: #{anomaly_transformer_forward.6} parent=35 // pred_region
        _
      $region40: #{anomaly_transformer_forward.6} parent=35 // pred_fallthru
        _
    $region36: #{anomaly_transformer_forward.6} parent=5 // pred_fallthru
      _
    %p317 = scmp.le.s32.totalorder 2, %s10
    // Predicated region
    $region41: #{anomaly_transformer_forward.6} parent=5 // pred_check
      %p318 = pneg %p317
    $region42: #{anomaly_transformer_forward.6} parent=5 // pred_check_branch
      %320 = sbr.rel (%p318) target = $region44
    $region43: #{anomaly_transformer_forward.6} parent=5 // pred_region
      %s321 = ssub.s32 %s10, 2
      // Predicated region
      $region45: #{anomaly_transformer_forward.6} parent=43 // pred_check
        %p322 = pneg %p149
      $region46: #{anomaly_transformer_forward.6} parent=43 // pred_check_branch
        %324 = sbr.rel (%p322) target = $region48
      $region47: #{anomaly_transformer_forward.6} parent=43 // pred_region
        %p325 = scmp.lt.s32.totalorder %s21, 1
        %s326 = scalar_select %p325, %s21, 1
        %p327 = scmp.lt.s32.totalorder %s22, 0
        %s328 = scalar_select %p327, %s22, 0
        %s329 = sadd.s32 %s328, %s326
        %s330 = smul.addr %s329, 4
        %s331 = scalar_lea.vmem %s4, %s330
      $region48: #{anomaly_transformer_forward.6} parent=43 // pred_fallthru
        _
    $region44: #{anomaly_transformer_forward.6} parent=5 // pred_fallthru
      _
  $region6: #{anomaly_transformer_forward.6} parent=0 // loop_footer
    %s14 = sadd.s32 1, %s10
  $region7: #{anomaly_transformer_forward.6} parent=0 // loop_footer_branch
    %9 = sbr.rel target = $region3
  $region8: #{anomaly_transformer_forward.6} parent=0 // loop_exit
    _

// kernel: anomaly_transformer_forward.11
$region0: #{anomaly_transformer_forward.11}
  #allocation0 [shape = 'u32[]', space=smem, size = 0x4, offset = 0x4, fixed_abs, tag = 'smem constant byte address 0x4 - core index']
  #allocation1 [shape = 'u32[144,128]{1,0:T(1,128)}', space=vmem, size = 0x12000, scoped, tag = 'internal scratch']
  %s0 = inlined_call_operand.vmem [shape: f32[2,32], index: 0, kind: input, shape index: {}]
  %s1 = inlined_call_operand.vmem [shape: f32[32,16], index: 1, kind: input, shape index: {}]
  %s2 = inlined_call_operand.vmem [shape: f32[1,16], index: 2, kind: input, shape index: {}]
  %s3 = inlined_call_operand.vmem [shape: f32[16,8], index: 3, kind: input, shape index: {}]
  %s4 = inlined_call_operand.vmem [shape: f32[1,8], index: 4, kind: input, shape index: {}]
  %s5 = inlined_call_operand.vmem [shape: f32[8,2], index: 5, kind: input, shape index: {}]
  %s6 = inlined_call_operand.vmem [shape: f32[1,2], index: 6, kind: input, shape index: {}]
  %s7 = inlined_call_operand.hbm [shape: f32[2,2], index: 7, kind: output, shape index: {}]
  %s8 = sld [smem:[#allocation0]]
  $region38: #{anomaly_transformer_forward.11} parent=0
    _
  %s10 = ssub.s32 1, %s8
  %s11 = scalar_select 0, %s10, %s8
  $region1: #{anomaly_transformer_forward.11} parent=0
    #allocation2 [shape = 'u8[1024]{0}', space=vmem, size = 0x400, scoped, tag = 'output window, operand 0, single buffered']
    #allocation3 [shape = 's32[1]{0}', space=sflag, size = 0x4, scoped, tag = 'scoped memory for anomaly_transformer_forward.11']
    %12 = vsyncpa [#allocation3], 0
    // Predicated region
    $region2: #{anomaly_transformer_forward.11} parent=1 // pred_check
      _
    $region3: #{anomaly_transformer_forward.11} parent=1 // pred_check_branch
      %14 = sbr.rel (0) target = $region5
    $region4: #{anomaly_transformer_forward.11} parent=1 // pred_region
      _
    $region5: #{anomaly_transformer_forward.11} parent=1 // pred_fallthru
      _
    // Predicated region
    $region6: #{anomaly_transformer_forward.11} parent=1 // pred_check
      _
    $region7: #{anomaly_transformer_forward.11} parent=1 // pred_check_branch
      %16 = sbr.rel (0) target = $region9
    $region8: #{anomaly_transformer_forward.11} parent=1 // pred_region
      _
    $region9: #{anomaly_transformer_forward.11} parent=1 // pred_fallthru
      _
    // Predicated region
    $region10: #{anomaly_transformer_forward.11} parent=1 // pred_check
      _
    $region11: #{anomaly_transformer_forward.11} parent=1 // pred_check_branch
      %18 = sbr.rel (0) target = $region13
    $region12: #{anomaly_transformer_forward.11} parent=1 // pred_region
      _
    $region13: #{anomaly_transformer_forward.11} parent=1 // pred_fallthru
      _
    // Predicated region
    $region14: #{anomaly_transformer_forward.11} parent=1 // pred_check
      _
    $region15: #{anomaly_transformer_forward.11} parent=1 // pred_check_branch
      %20 = sbr.rel (0) target = $region17
    $region16: #{anomaly_transformer_forward.11} parent=1 // pred_region
      _
    $region17: #{anomaly_transformer_forward.11} parent=1 // pred_fallthru
      _
    // Predicated region
    $region18: #{anomaly_transformer_forward.11} parent=1 // pred_check
      _
    $region19: #{anomaly_transformer_forward.11} parent=1 // pred_check_branch
      %22 = sbr.rel (0) target = $region21
    $region20: #{anomaly_transformer_forward.11} parent=1 // pred_region
      _
    $region21: #{anomaly_transformer_forward.11} parent=1 // pred_fallthru
      _
    // Predicated region
    $region22: #{anomaly_transformer_forward.11} parent=1 // pred_check
      _
    $region23: #{anomaly_transformer_forward.11} parent=1 // pred_check_branch
      %24 = sbr.rel (0) target = $region25
    $region24: #{anomaly_transformer_forward.11} parent=1 // pred_region
      _
    $region25: #{anomaly_transformer_forward.11} parent=1 // pred_fallthru
      _
    // Predicated region
    $region26: #{anomaly_transformer_forward.11} parent=1 // pred_check
      _
    $region27: #{anomaly_transformer_forward.11} parent=1 // pred_check_branch
      %26 = sbr.rel (0) target = $region29
    $region28: #{anomaly_transformer_forward.11} parent=1 // pred_region
      _
    $region29: #{anomaly_transformer_forward.11} parent=1 // pred_fallthru
      _
    %v27 = vld [vmem:[%s0] sm:$0x3]
    %v28 = vld [vmem:[%s1] sm:$0xff]
    %v29 = vld [vmem:[%s1 + $0x8] sm:$0xff]
    %v30 = vld [vmem:[%s1 + $0x10] sm:$0xff]
    %v31 = vld [vmem:[%s1 + $0x18] sm:$0xff]
    %v32 = vld [vmem:[%s2] sm:$0x1]
    %v34 = vlaneseq
    %v35 = vshrl.u32 %v34, 7
    %v36 = vsub.s32 0, %v35
    %v37 = vrot.slane %v32, %v36
    %vm39 = vcmask 261120
    %v41 = vsel %vm39, %v27, 0
    %43 = vmatprep.subr.mxu0 0.0
    %44 = vmatpush1.msra.mxu0 %v28
    %45 = vmatprep.subr.mxu0 0.0
    %46 = vmatpush1.msra.mxu0 %v29
    %47 = vmatprep.subr.mxu0 0.0
    %48 = vmatpush1.msra.mxu0 %v30
    %49 = vmatprep.subr.mxu0 0.0
    %50 = vmatpush1.msra.mxu0 %v31
    %51 = vmatprep.subr.mxu0 0.0
    %52 = vmatpush1.msra.mxu0 0.0
    %53 = vmatprep.subr.mxu0 0.0
    %54 = vmatpush1.msra.mxu0 0.0
    %55 = vmatprep.subr.mxu0 0.0
    %56 = vmatpush1.msra.mxu0 0.0
    %57 = vmatprep.subr.mxu0 0.0
    %58 = vmatpush1.msra.mxu0 0.0
    %59 = vmatprep.subr.mxu0 0.0
    %60 = vmatpush1.msra.mxu0 0.0
    %61 = vmatprep.subr.mxu0 0.0
    %62 = vmatpush1.msra.mxu0 0.0
    %63 = vmatprep.subr.mxu0 0.0
    %64 = vmatpush1.msra.mxu0 0.0
    %65 = vmatprep.subr.mxu0 0.0
    %66 = vmatpush1.msra.mxu0 0.0
    %67 = vmatprep.subr.mxu0 0.0
    %68 = vmatpush1.msra.mxu0 0.0
    %69 = vmatprep.subr.mxu0 0.0
    %70 = vmatpush1.msra.mxu0 0.0
    %71 = vmatprep.subr.mxu0 0.0
    %72 = vmatpush1.msra.mxu0 0.0
    %73 = vmatprep.subr.mxu0 0.0
    %74 = vmatpush1.msra.mxu0 0.0
    %75 = vmatprep.subr.mxu0 0.0
    %76 = vmatpush1.msra.mxu0 0.0
    %77 = vmatprep.subr.mxu0 0.0
    %78 = vmatpush1.msra.mxu0 0.0
    %79 = vmatprep.subr.mxu0 0.0
    %80 = vmatpush1.msra.mxu0 0.0
    %81 = vmatprep.subr.mxu0 0.0
    %82 = vmatpush1.msra.mxu0 0.0
    %83 = vmatprep.subr.mxu0 0.0
    %84 = vmatpush1.msra.mxu0 0.0
    %85 = vmatprep.subr.mxu0 0.0
    %86 = vmatpush1.msra.mxu0 0.0
    %87 = vmatprep.subr.mxu0 0.0
    %88 = vmatpush1.msra.mxu0 0.0
    %89 = vmatprep.subr.mxu0 0.0
    %90 = vmatpush1.msra.mxu0 0.0
    %91 = vmatprep.subr.mxu0 0.0
    %92 = vmatpush1.msra.mxu0 0.0
    %93 = vmatprep.subr.mxu0 0.0
    %94 = vmatpush1.msra.mxu0 0.0
    %95 = vmatprep.subr.mxu0 0.0
    %96 = vmatpush1.msra.mxu0 0.0
    %97 = vmatprep.subr.mxu0 0.0
    %98 = vmatpush1.msra.mxu0 0.0
    %99 = vmatprep.subr.mxu0 0.0
    %100 = vmatpush1.msra.mxu0 0.0
    %101 = vmatprep.subr.mxu0 0.0
    %102 = vmatpush1.msra.mxu0 0.0
    %103 = vmatprep.subr.mxu0 0.0
    %104 = vmatpush1.msra.mxu0 0.0
    %105 = vmatprep.subr.mxu0 0.0
    %106 = vmatpush1.msra.mxu0 0.0
    %107 = vmatprep.mubr.f32.mxu0 0.0
    %108 = vmatmul.mubr.f32.gmra.mrb[0].mxu0 %v41
    %v109 = vpop.f32.mrb[0].mxu0
    %v110 = vadd.f32 %v37, %v109
    %v111 = vpop.f32.mrb[0].mxu0
    %112 = vdwg.mxu0
    %v113 = vmax.f32 %v110, 0.0
    %v114 = vld [vmem:[%s3] sm:$0xff]
    %v115 = vld [vmem:[%s3 + $0x8] sm:$0xff]
    %v116 = vld [vmem:[%s4] sm:$0x1]
    %v118 = vlaneseq
    %v119 = vshrl.u32 %v118, 7
    %v120 = vsub.s32 0, %v119
    %v121 = vrot.slane %v116, %v120
    %vm123 = vcmask 130048
    %v125 = vsel %vm123, %v113, 0
    %127 = vmatprep.subr.mxu0 0.0
    %128 = vmatpush1.msra.mxu0 %v114
    %129 = vmatprep.subr.mxu0 0.0
    %130 = vmatpush1.msra.mxu0 %v115
    %131 = vmatprep.subr.mxu0 0.0
    %132 = vmatpush1.msra.mxu0 0.0
    %133 = vmatprep.subr.mxu0 0.0
    %134 = vmatpush1.msra.mxu0 0.0
    %135 = vmatprep.subr.mxu0 0.0
    %136 = vmatpush1.msra.mxu0 0.0
    %137 = vmatprep.subr.mxu0 0.0
    %138 = vmatpush1.msra.mxu0 0.0
    %139 = vmatprep.subr.mxu0 0.0
    %140 = vmatpush1.msra.mxu0 0.0
    %141 = vmatprep.subr.mxu0 0.0
    %142 = vmatpush1.msra.mxu0 0.0
    %143 = vmatprep.subr.mxu0 0.0
    %144 = vmatpush1.msra.mxu0 0.0
    %145 = vmatprep.subr.mxu0 0.0
    %146 = vmatpush1.msra.mxu0 0.0
    %147 = vmatprep.subr.mxu0 0.0
    %148 = vmatpush1.msra.mxu0 0.0
    %149 = vmatprep.subr.mxu0 0.0
    %150 = vmatpush1.msra.mxu0 0.0
    %151 = vmatprep.subr.mxu0 0.0
    %152 = vmatpush1.msra.mxu0 0.0
    %153 = vmatprep.subr.mxu0 0.0
    %154 = vmatpush1.msra.mxu0 0.0
    %155 = vmatprep.subr.mxu0 0.0
    %156 = vmatpush1.msra.mxu0 0.0
    %157 = vmatprep.subr.mxu0 0.0
    %158 = vmatpush1.msra.mxu0 0.0
    %159 = vmatprep.subr.mxu0 0.0
    %160 = vmatpush1.msra.mxu0 0.0
    %161 = vmatprep.subr.mxu0 0.0
    %162 = vmatpush1.msra.mxu0 0.0
    %163 = vmatprep.subr.mxu0 0.0
    %164 = vmatpush1.msra.mxu0 0.0
    %165 = vmatprep.subr.mxu0 0.0
    %166 = vmatpush1.msra.mxu0 0.0
    %167 = vmatprep.subr.mxu0 0.0
    %168 = vmatpush1.msra.mxu0 0.0
    %169 = vmatprep.subr.mxu0 0.0
    %170 = vmatpush1.msra.mxu0 0.0
    %171 = vmatprep.subr.mxu0 0.0
    %172 = vmatpush1.msra.mxu0 0.0
    %173 = vmatprep.subr.mxu0 0.0
    %174 = vmatpush1.msra.mxu0 0.0
    %175 = vmatprep.subr.mxu0 0.0
    %176 = vmatpush1.msra.mxu0 0.0
    %177 = vmatprep.subr.mxu0 0.0
    %178 = vmatpush1.msra.mxu0 0.0
    %179 = vmatprep.subr.mxu0 0.0
    %180 = vmatpush1.msra.mxu0 0.0
    %181 = vmatprep.subr.mxu0 0.0
    %182 = vmatpush1.msra.mxu0 0.0
    %183 = vmatprep.subr.mxu0 0.0
    %184 = vmatpush1.msra.mxu0 0.0
    %185 = vmatprep.subr.mxu0 0.0
    %186 = vmatpush1.msra.mxu0 0.0
    %187 = vmatprep.subr.mxu0 0.0
    %188 = vmatpush1.msra.mxu0 0.0
    %189 = vmatprep.subr.mxu0 0.0
    %190 = vmatpush1.msra.mxu0 0.0
    %191 = vmatprep.mubr.f32.mxu0 0.0
    %192 = vmatmul.mubr.f32.gmra.mrb[0].mxu0 %v125
    %v193 = vpop.f32.mrb[0].mxu0
    %v194 = vadd.f32 %v121, %v193
    %v195 = vpop.f32.mrb[0].mxu0
    %196 = vdwg.mxu0
    %v197 = vmax.f32 %v194, 0.0
    %v198 = vld [vmem:[%s5] sm:$0xff]
    %v199 = vld [vmem:[%s6] sm:$0x1]
    %v201 = vlaneseq
    %v202 = vshrl.u32 %v201, 7
    %v203 = vsub.s32 0, %v202
    %v204 = vrot.slane %v199, %v203
    %vm206 = vcmask 64512
    %v208 = vsel %vm206, %v197, 0
    %210 = vmatprep.subr.mxu0 0.0
    %211 = vmatpush1.msra.mxu0 %v198
    %212 = vmatprep.subr.mxu0 0.0
    %213 = vmatpush1.msra.mxu0 0.0
    %214 = vmatprep.subr.mxu0 0.0
    %215 = vmatpush1.msra.mxu0 0.0
    %216 = vmatprep.subr.mxu0 0.0
    %217 = vmatpush1.msra.mxu0 0.0
    %218 = vmatprep.subr.mxu0 0.0
    %219 = vmatpush1.msra.mxu0 0.0
    %220 = vmatprep.subr.mxu0 0.0
    %221 = vmatpush1.msra.mxu0 0.0
    %222 = vmatprep.subr.mxu0 0.0
    %223 = vmatpush1.msra.mxu0 0.0
    %224 = vmatprep.subr.mxu0 0.0
    %225 = vmatpush1.msra.mxu0 0.0
    %226 = vmatprep.subr.mxu0 0.0
    %227 = vmatpush1.msra.mxu0 0.0
    %228 = vmatprep.subr.mxu0 0.0
    %229 = vmatpush1.msra.mxu0 0.0
    %230 = vmatprep.subr.mxu0 0.0
    %231 = vmatpush1.msra.mxu0 0.0
    %232 = vmatprep.subr.mxu0 0.0
    %233 = vmatpush1.msra.mxu0 0.0
    %234 = vmatprep.subr.mxu0 0.0
    %235 = vmatpush1.msra.mxu0 0.0
    %236 = vmatprep.subr.mxu0 0.0
    %237 = vmatpush1.msra.mxu0 0.0
    %238 = vmatprep.subr.mxu0 0.0
    %239 = vmatpush1.msra.mxu0 0.0
    %240 = vmatprep.subr.mxu0 0.0
    %241 = vmatpush1.msra.mxu0 0.0
    %242 = vmatprep.subr.mxu0 0.0
    %243 = vmatpush1.msra.mxu0 0.0
    %244 = vmatprep.subr.mxu0 0.0
    %245 = vmatpush1.msra.mxu0 0.0
    %246 = vmatprep.subr.mxu0 0.0
    %247 = vmatpush1.msra.mxu0 0.0
    %248 = vmatprep.subr.mxu0 0.0
    %249 = vmatpush1.msra.mxu0 0.0
    %250 = vmatprep.subr.mxu0 0.0
    %251 = vmatpush1.msra.mxu0 0.0
    %252 = vmatprep.subr.mxu0 0.0
    %253 = vmatpush1.msra.mxu0 0.0
    %254 = vmatprep.subr.mxu0 0.0
    %255 = vmatpush1.msra.mxu0 0.0
    %256 = vmatprep.subr.mxu0 0.0
    %257 = vmatpush1.msra.mxu0 0.0
    %258 = vmatprep.subr.mxu0 0.0
    %259 = vmatpush1.msra.mxu0 0.0
    %260 = vmatprep.subr.mxu0 0.0
    %261 = vmatpush1.msra.mxu0 0.0
    %262 = vmatprep.subr.mxu0 0.0
    %263 = vmatpush1.msra.mxu0 0.0
    %264 = vmatprep.subr.mxu0 0.0
    %265 = vmatpush1.msra.mxu0 0.0
    %266 = vmatprep.subr.mxu0 0.0
    %267 = vmatpush1.msra.mxu0 0.0
    %268 = vmatprep.subr.mxu0 0.0
    %269 = vmatpush1.msra.mxu0 0.0
    %270 = vmatprep.subr.mxu0 0.0
    %271 = vmatpush1.msra.mxu0 0.0
    %272 = vmatprep.subr.mxu0 0.0
    %273 = vmatpush1.msra.mxu0 0.0
    %274 = vmatprep.mubr.f32.mxu0 0.0
    %275 = vmatmul.mubr.f32.gmra.mrb[0].mxu0 %v208
    %v276 = vpop.f32.mrb[0].mxu0
    %v277 = vadd.f32 %v204, %v276
    %v278 = vpop.f32.mrb[0].mxu0
    %279 = vdwg.mxu0
    %vm280 = vcmask 9216
    %281 = vst.msk [vmem:[#allocation2] sm:$0x3] %vm280, %v277
    // Predicated region
    $region30: #{anomaly_transformer_forward.11} parent=1 // pred_check
      _
    $region31: #{anomaly_transformer_forward.11} parent=1 // pred_check_branch
      %283 = sbr.rel (0) target = $region33
    $region32: #{anomaly_transformer_forward.11} parent=1 // pred_region
      %s285 = ssub.s32 32, 32
      %286 = vsyncadd [#allocation3], %s285
      %s288 = sshll.u32 [#allocation2], 4
      %s289 = int_to_ptr.vmem [resolvable:$true] %s288
      %291 = dma.vmem_to_hbm [thread:$0]  %s289, 32, %s7, [#allocation3]
    $region33: #{anomaly_transformer_forward.11} parent=1 // pred_fallthru
      _
    // Predicated region
    $region34: #{anomaly_transformer_forward.11} parent=1 // pred_check
      _
    $region35: #{anomaly_transformer_forward.11} parent=1 // pred_check_branch
      %293 = sbr.rel (0) target = $region37
    $region36: #{anomaly_transformer_forward.11} parent=1 // pred_region
      %294 = dma.done [#allocation3], 32
    $region37: #{anomaly_transformer_forward.11} parent=1 // pred_fallthru
      _
    %295 = vsyncpa [#allocation3], 1

// kernel: anomaly_transformer_forward.8
$region0: #{anomaly_transformer_forward.8}
  #allocation0 [shape = 'u32[]', space=smem, size = 0x4, offset = 0x4, fixed_abs, tag = 'smem constant byte address 0x4 - core index']
  #allocation1 [shape = 'u32[144,128]{1,0:T(1,128)}', space=vmem, size = 0x12000, scoped, tag = 'internal scratch']
  %s0 = inlined_call_operand.vmem [shape: bf16[2,8,32], index: 0, kind: input, shape index: {}, may-alias: {0,7}]
  %s1 = inlined_call_operand.vmem [shape: bf16[32,64], index: 1, kind: input, shape index: {}]
  %s2 = inlined_call_operand.vmem [shape: f32[1,64], index: 2, kind: input, shape index: {}]
  %s3 = inlined_call_operand.vmem [shape: bf16[64,32], index: 3, kind: input, shape index: {}]
  %s4 = inlined_call_operand.vmem [shape: f32[1,32], index: 4, kind: input, shape index: {}]
  %s5 = inlined_call_operand.vmem [shape: f32[1,32], index: 5, kind: input, shape index: {}]
  %s6 = inlined_call_operand.vmem [shape: f32[1,32], index: 6, kind: input, shape index: {}]
  %s7 = inlined_call_operand.vmem [shape: bf16[2,8,32], index: 7, kind: output, shape index: {}, may-alias: {0,7}]
  %s8 = sld [smem:[#allocation0]]
  $region61: #{anomaly_transformer_forward.8} parent=0
    _
  %s10 = ssub.s32 1, %s8
  %s11 = scalar_select 0, %s10, %s8
  loop: start=0, step=1, limit=4
  $region2: #{anomaly_transformer_forward.8} parent=0 // loop_pre_header
    _
  $region3: #{anomaly_transformer_forward.8} parent=0 // loop_header
    %s13 = sphi 0, %s17
    %p14 = scmp.ge.s32.totalorder %s13, 4
    %s20 = sphi 0, %s32
    %s21 = sphi 0, %s28
    %s22 = sphi 0, %s20
    %s23 = sphi 0, %s21
    %s24 = sphi 0, %s22
    %s25 = sphi 0, %s23
    %s37 = sphi 0, %s39
    %s40 = sphi 0, %s37
    %s41 = sphi 0, %s40
    %s57 = sphi 0, %s41
    %s61 = sphi 0, %s61
    %s63 = sphi 0, %s61
    %s64 = sphi 0, %s63
    %s78 = sphi 0, %s64
    %s82 = sphi 0, %s82
    %s84 = sphi 0, %s82
    %s85 = sphi 0, %s84
    %s99 = sphi 0, %s85
    %s103 = sphi 0, %s103
    %s105 = sphi 0, %s103
    %s106 = sphi 0, %s105
    %s120 = sphi 0, %s106
    %s124 = sphi 0, %s124
    %s126 = sphi 0, %s124
    %s127 = sphi 0, %s126
    %s141 = sphi 0, %s127
    %s145 = sphi 0, %s145
    %s147 = sphi 0, %s145
    %s148 = sphi 0, %s147
    %s162 = sphi 0, %s148
    %s166 = sphi 0, %s166
    %s168 = sphi 0, %s166
    %s169 = sphi 0, %s168
    %s183 = sphi 0, %s169
    %s191 = sphi 0, %s193
    %s194 = sphi 0, %s191
    %s195 = sphi 0, %s194
    %s211 = sphi 0, %s195
  $region4: #{anomaly_transformer_forward.8} parent=0 // loop_header_branch
    %16 = sbr.rel (%p14) target = $region8
  $region5: #{anomaly_transformer_forward.8} parent=0 // loop_body
    %s18 = ssub.s32 %s13, 1
    %s19 = ssub.s32 %s13, 2
    %s26 = sadd.s32 1, %s21
    %p27 = scmp.ge.s32.totalorder %s26, 1
    %s28 = scalar_select %p27, 0, %s26
    %s29 = sadd.s32 1, %s20
    %s30 = scalar_select %p27, %s29, %s20
    %p31 = scmp.ge.s32.totalorder %s30, 2
    %s32 = scalar_select %p31, 0, %s30
    %s33 = ssub.s32 %s20, %s32
    %s34 = ssub.s32 %s21, %s28
    %s35 = sor.u32 %s33, %s34
    %p36 = scmp.eq.s32.totalorder %s35, 0
    %s38 = sadd.s32 %s37, 1
    %s39 = scalar_select %p36, %s37, %s38
    %p42 = pneg %p36
    %p43 = scmp.eq.s32.totalorder %s13, 1
    %p44 = por %p42, %p43
    %p45 = scmp.ne.s32.totalorder %s37, %s40
    %p46 = scmp.eq.s32.totalorder %s13, 0
    %p47 = por %p45, %p46
    %p48 = scmp.ne.s32.totalorder %s37, %s40
    %p49 = scmp.eq.s32.totalorder %s18, 1
    %p50 = por %p48, %p49
    %p51 = scmp.ne.s32.totalorder %s40, %s41
    %p52 = scmp.eq.s32.totalorder %s18, 0
    %p53 = por %p51, %p52
    %p54 = scmp.ne.s32.totalorder %s40, %s41
    %p55 = scmp.eq.s32.totalorder %s19, 1
    %p56 = por %p54, %p55
    %p58 = scmp.ne.s32.totalorder %s41, %s57
    %p59 = scmp.eq.s32.totalorder %s19, 0
    %p60 = por %p58, %p59
    %s62 = sadd.s32 %s61, 1
    %p65 = scmp.eq.s32.totalorder %s13, 1
    %p66 = scmp.ne.s32.totalorder %s61, %s63
    %p67 = scmp.eq.s32.totalorder %s13, 0
    %p68 = por %p66, %p67
    %p69 = scmp.ne.s32.totalorder %s61, %s63
    %p70 = scmp.eq.s32.totalorder %s18, 1
    %p71 = por %p69, %p70
    %p72 = scmp.ne.s32.totalorder %s63, %s64
    %p73 = scmp.eq.s32.totalorder %s18, 0
    %p74 = por %p72, %p73
    %p75 = scmp.ne.s32.totalorder %s63, %s64
    %p76 = scmp.eq.s32.totalorder %s19, 1
    %p77 = por %p75, %p76
    %p79 = scmp.ne.s32.totalorder %s64, %s78
    %p80 = scmp.eq.s32.totalorder %s19, 0
    %p81 = por %p79, %p80
    %s83 = sadd.s32 %s82, 1
    %p86 = scmp.eq.s32.totalorder %s13, 1
    %p87 = scmp.ne.s32.totalorder %s82, %s84
    %p88 = scmp.eq.s32.totalorder %s13, 0
    %p89 = por %p87, %p88
    %p90 = scmp.ne.s32.totalorder %s82, %s84
    %p91 = scmp.eq.s32.totalorder %s18, 1
    %p92 = por %p90, %p91
    %p93 = scmp.ne.s32.totalorder %s84, %s85
    %p94 = scmp.eq.s32.totalorder %s18, 0
    %p95 = por %p93, %p94
    %p96 = scmp.ne.s32.totalorder %s84, %s85
    %p97 = scmp.eq.s32.totalorder %s19, 1
    %p98 = por %p96, %p97
    %p100 = scmp.ne.s32.totalorder %s85, %s99
    %p101 = scmp.eq.s32.totalorder %s19, 0
    %p102 = por %p100, %p101
    %s104 = sadd.s32 %s103, 1
    %p107 = scmp.eq.s32.totalorder %s13, 1
    %p108 = scmp.ne.s32.totalorder %s103, %s105
    %p109 = scmp.eq.s32.totalorder %s13, 0
    %p110 = por %p108, %p109
    %p111 = scmp.ne.s32.totalorder %s103, %s105
    %p112 = scmp.eq.s32.totalorder %s18, 1
    %p113 = por %p111, %p112
    %p114 = scmp.ne.s32.totalorder %s105, %s106
    %p115 = scmp.eq.s32.totalorder %s18, 0
    %p116 = por %p114, %p115
    %p117 = scmp.ne.s32.totalorder %s105, %s106
    %p118 = scmp.eq.s32.totalorder %s19, 1
    %p119 = por %p117, %p118
    %p121 = scmp.ne.s32.totalorder %s106, %s120
    %p122 = scmp.eq.s32.totalorder %s19, 0
    %p123 = por %p121, %p122
    %s125 = sadd.s32 %s124, 1
    %p128 = scmp.eq.s32.totalorder %s13, 1
    %p129 = scmp.ne.s32.totalorder %s124, %s126
    %p130 = scmp.eq.s32.totalorder %s13, 0
    %p131 = por %p129, %p130
    %p132 = scmp.ne.s32.totalorder %s124, %s126
    %p133 = scmp.eq.s32.totalorder %s18, 1
    %p134 = por %p132, %p133
    %p135 = scmp.ne.s32.totalorder %s126, %s127
    %p136 = scmp.eq.s32.totalorder %s18, 0
    %p137 = por %p135, %p136
    %p138 = scmp.ne.s32.totalorder %s126, %s127
    %p139 = scmp.eq.s32.totalorder %s19, 1
    %p140 = por %p138, %p139
    %p142 = scmp.ne.s32.totalorder %s127, %s141
    %p143 = scmp.eq.s32.totalorder %s19, 0
    %p144 = por %p142, %p143
    %s146 = sadd.s32 %s145, 1
    %p149 = scmp.eq.s32.totalorder %s13, 1
    %p150 = scmp.ne.s32.totalorder %s145, %s147
    %p151 = scmp.eq.s32.totalorder %s13, 0
    %p152 = por %p150, %p151
    %p153 = scmp.ne.s32.totalorder %s145, %s147
    %p154 = scmp.eq.s32.totalorder %s18, 1
    %p155 = por %p153, %p154
    %p156 = scmp.ne.s32.totalorder %s147, %s148
    %p157 = scmp.eq.s32.totalorder %s18, 0
    %p158 = por %p156, %p157
    %p159 = scmp.ne.s32.totalorder %s147, %s148
    %p160 = scmp.eq.s32.totalorder %s19, 1
    %p161 = por %p159, %p160
    %p163 = scmp.ne.s32.totalorder %s148, %s162
    %p164 = scmp.eq.s32.totalorder %s19, 0
    %p165 = por %p163, %p164
    %s167 = sadd.s32 %s166, 1
    %p170 = scmp.eq.s32.totalorder %s13, 1
    %p171 = scmp.ne.s32.totalorder %s166, %s168
    %p172 = scmp.eq.s32.totalorder %s13, 0
    %p173 = por %p171, %p172
    %p174 = scmp.ne.s32.totalorder %s166, %s168
    %p175 = scmp.eq.s32.totalorder %s18, 1
    %p176 = por %p174, %p175
    %p177 = scmp.ne.s32.totalorder %s168, %s169
    %p178 = scmp.eq.s32.totalorder %s18, 0
    %p179 = por %p177, %p178
    %p180 = scmp.ne.s32.totalorder %s168, %s169
    %p181 = scmp.eq.s32.totalorder %s19, 1
    %p182 = por %p180, %p181
    %p184 = scmp.ne.s32.totalorder %s169, %s183
    %p185 = scmp.eq.s32.totalorder %s19, 0
    %p186 = por %p184, %p185
    %s187 = ssub.s32 %s20, %s32
    %s188 = ssub.s32 %s21, %s28
    %s189 = sor.u32 %s187, %s188
    %p190 = scmp.eq.s32.totalorder %s189, 0
    %s192 = sadd.s32 %s191, 1
    %s193 = scalar_select %p190, %s191, %s192
    %p196 = pneg %p190
    %p197 = scmp.eq.s32.totalorder %s13, 1
    %p198 = por %p196, %p197
    %p199 = scmp.ne.s32.totalorder %s191, %s194
    %p200 = scmp.eq.s32.totalorder %s13, 0
    %p201 = por %p199, %p200
    %p202 = scmp.ne.s32.totalorder %s191, %s194
    %p203 = scmp.eq.s32.totalorder %s18, 1
    %p204 = por %p202, %p203
    %p205 = scmp.ne.s32.totalorder %s194, %s195
    %p206 = scmp.eq.s32.totalorder %s18, 0
    %p207 = por %p205, %p206
    %p208 = scmp.ne.s32.totalorder %s194, %s195
    %p209 = scmp.eq.s32.totalorder %s19, 1
    %p210 = por %p208, %p209
    %p212 = scmp.ne.s32.totalorder %s195, %s211
    %p213 = scmp.eq.s32.totalorder %s19, 0
    %p214 = por %p212, %p213
    %p215 = scmp.le.s32.totalorder 1, %s13
    %p216 = scmp.lt.s32.totalorder %s13, 3
    %p217 = pnand %p215, %p216
    %p218 = pneg %p217
    // Predicated region
    $region9: #{anomaly_transformer_forward.8} parent=5 // pred_check
      _
    $region10: #{anomaly_transformer_forward.8} parent=5 // pred_check_branch
      %220 = sbr.rel (%p217) target = $region12
    $region11: #{anomaly_transformer_forward.8} parent=5 // pred_region
      %s221 = ssub.s32 %s13, 1
      // Predicated region
      $region13: #{anomaly_transformer_forward.8} parent=11 // pred_check
        %p222 = pneg %p74
      $region14: #{anomaly_transformer_forward.8} parent=11 // pred_check_branch
        %224 = sbr.rel (%p222) target = $region16
      $region15: #{anomaly_transformer_forward.8} parent=11 // pred_region
        _
      $region16: #{anomaly_transformer_forward.8} parent=11 // pred_fallthru
        _
      // Predicated region
      $region17: #{anomaly_transformer_forward.8} parent=11 // pred_check
        %p225 = pneg %p95
      $region18: #{anomaly_transformer_forward.8} parent=11 // pred_check_branch
        %227 = sbr.rel (%p225) target = $region20
      $region19: #{anomaly_transformer_forward.8} parent=11 // pred_region
        _
      $region20: #{anomaly_transformer_forward.8} parent=11 // pred_fallthru
        _
      // Predicated region
      $region21: #{anomaly_transformer_forward.8} parent=11 // pred_check
        %p228 = pneg %p116
      $region22: #{anomaly_transformer_forward.8} parent=11 // pred_check_branch
        %230 = sbr.rel (%p228) target = $region24
      $region23: #{anomaly_transformer_forward.8} parent=11 // pred_region
        _
      $region24: #{anomaly_transformer_forward.8} parent=11 // pred_fallthru
        _
      // Predicated region
      $region25: #{anomaly_transformer_forward.8} parent=11 // pred_check
        %p231 = pneg %p137
      $region26: #{anomaly_transformer_forward.8} parent=11 // pred_check_branch
        %233 = sbr.rel (%p231) target = $region28
      $region27: #{anomaly_transformer_forward.8} parent=11 // pred_region
        _
      $region28: #{anomaly_transformer_forward.8} parent=11 // pred_fallthru
        _
      // Predicated region
      $region29: #{anomaly_transformer_forward.8} parent=11 // pred_check
        %p234 = pneg %p158
      $region30: #{anomaly_transformer_forward.8} parent=11 // pred_check_branch
        %236 = sbr.rel (%p234) target = $region32
      $region31: #{anomaly_transformer_forward.8} parent=11 // pred_region
        _
      $region32: #{anomaly_transformer_forward.8} parent=11 // pred_fallthru
        _
      // Predicated region
      $region33: #{anomaly_transformer_forward.8} parent=11 // pred_check
        %p237 = pneg %p179
      $region34: #{anomaly_transformer_forward.8} parent=11 // pred_check_branch
        %239 = sbr.rel (%p237) target = $region36
      $region35: #{anomaly_transformer_forward.8} parent=11 // pred_region
        _
      $region36: #{anomaly_transformer_forward.8} parent=11 // pred_fallthru
        _
    $region12: #{anomaly_transformer_forward.8} parent=5 // pred_fallthru
      _
    %p240 = scmp.lt.s32.totalorder %s13, 2
    // Predicated region
    $region37: #{anomaly_transformer_forward.8} parent=5 // pred_check
      %p241 = pneg %p240
    $region38: #{anomaly_transformer_forward.8} parent=5 // pred_check_branch
      %243 = sbr.rel (%p241) target = $region40
    $region39: #{anomaly_transformer_forward.8} parent=5 // pred_region
      // Predicated region
      $region41: #{anomaly_transformer_forward.8} parent=39 // pred_check
        %p244 = pneg %p47
      $region42: #{anomaly_transformer_forward.8} parent=39 // pred_check_branch
        %246 = sbr.rel (%p244) target = $region44
      $region43: #{anomaly_transformer_forward.8} parent=39 // pred_region
        %p247 = scmp.lt.s32.totalorder %s20, 1
        %s248 = scalar_select %p247, %s20, 1
        %p249 = scmp.lt.s32.totalorder %s21, 0
        %s250 = scalar_select %p249, %s21, 0
        %s251 = sadd.s32 %s250, %s248
        %s252 = smul.addr %s251, 4
        %s253 = scalar_lea.vmem %s0, %s252
      $region44: #{anomaly_transformer_forward.8} parent=39 // pred_fallthru
        _
    $region40: #{anomaly_transformer_forward.8} parent=5 // pred_fallthru
      _
    %p254 = scmp.le.s32.totalorder 1, %s13
    %p255 = scmp.lt.s32.totalorder %s13, 3
    %p256 = pnand %p254, %p255
    %p257 = pneg %p256
    // Predicated region
    $region45: #{anomaly_transformer_forward.8} parent=5 // pred_check
      _
    $region46: #{anomaly_transformer_forward.8} parent=5 // pred_check_branch
      %259 = sbr.rel (%p256) target = $region48
    $region47: #{anomaly_transformer_forward.8} parent=5 // pred_region
      %s260 = ssub.s32 %s13, 1
      %p261 = scmp.lt.s32.totalorder %s22, 1
      %s262 = scalar_select %p261, %s22, 1
      %p263 = scmp.lt.s32.totalorder %s23, 0
      %s264 = scalar_select %p263, %s23, 0
      %s265 = sadd.s32 %s264, %s262
      %s266 = smul.addr %s265, 4
      %s267 = scalar_lea.vmem %s0, %s266
      %p268 = pneg %p53
      %p269 = pneg %p50
      %p270 = pneg %p74
      %p271 = pneg %p71
      %p272 = pneg %p95
      %p273 = pneg %p92
      %p274 = pneg %p116
      %p275 = pneg %p113
      %p276 = pneg %p137
      %p277 = pneg %p134
      %p278 = pneg %p158
      %p279 = pneg %p155
      %p280 = pneg %p179
      %p281 = pneg %p176
      %p282 = pneg %p207
      %p283 = pneg %p204
      %p284 = scmp.lt.s32.totalorder %s22, 1
      %s285 = scalar_select %p284, %s22, 1
      %p286 = scmp.lt.s32.totalorder %s23, 0
      %s287 = scalar_select %p286, %s23, 0
      %s288 = sadd.s32 %s287, %s285
      %s289 = smul.addr %s288, 4
      %s290 = scalar_lea.vmem %s7, %s289
      %p291 = scmp.lt.s32.totalorder %s22, 1
      %s292 = scalar_select %p291, %s22, 1
      %p293 = scmp.lt.s32.totalorder %s23, 0
      %s294 = scalar_select %p293, %s23, 0
      %s295 = sadd.s32 %s294, %s292
      %s296 = smul.addr %s295, 4
      %s297 = scalar_lea.vmem %s0, %s296
      %p298 = scmp.lt.s32.totalorder %s22, 1
      %s299 = scalar_select %p298, %s22, 1
      %p300 = scmp.lt.s32.totalorder %s23, 0
      %s301 = scalar_select %p300, %s23, 0
      %s302 = sadd.s32 %s301, %s299
      %s303 = smul.addr %s302, 4
      %s304 = scalar_lea.vmem %s7, %s303
      %v306 = vld [vmem:[%s297] sm:$0xf]
      %v307 = vunpack.c.l.bf16 %v306
      %v308 = vld [vmem:[%s1] sm:$0xf]
      %v309 = vld [vmem:[%s1 + $0x4] sm:$0xf]
      %v310 = vld [vmem:[%s1 + $0x8] sm:$0xf]
      %v311 = vld [vmem:[%s1 + $0xc] sm:$0xf]
      %v312 = vld [vmem:[%s2] sm:$0x1]
      %v314 = vlaneseq
      %v315 = vshrl.u32 %v314, 7
      %v316 = vsub.s32 0, %v315
      %v317 = vrot.slane %v312, %v316
      %v323 = vunpack.c.l.b16 %v308
      %v324 = vunpack.c.l.b16 %v309
      %v325 = vunpack.c.l.b16 %v310
      %v326 = vunpack.c.l.b16 %v311
      %v327 = vpack.c.b16 %v324, %v323
      %v328 = vpack.c.b16 %v326, %v325
      %vm331 = vcmask 261120
      %v333 = vsel %vm331, %v306, 0
      %335 = vmatprep.subr.bf16.mxu0 0
      %336 = vmatpush1.bf16.msra.mxu0 %v327
      %337 = vmatprep.subr.bf16.mxu0 0
      %338 = vmatpush1.bf16.msra.mxu0 %v328
      %339 = vmatprep.subr.bf16.mxu0 0
      %340 = vmatpush1.bf16.msra.mxu0 0
      %341 = vmatprep.subr.bf16.mxu0 0
      %342 = vmatpush1.bf16.msra.mxu0 0
      %343 = vmatprep.subr.bf16.mxu0 0
      %344 = vmatpush1.bf16.msra.mxu0 0
      %345 = vmatprep.subr.bf16.mxu0 0
      %346 = vmatpush1.bf16.msra.mxu0 0
      %347 = vmatprep.subr.bf16.mxu0 0
      %348 = vmatpush1.bf16.msra.mxu0 0
      %349 = vmatprep.subr.bf16.mxu0 0
      %350 = vmatpush1.bf16.msra.mxu0 0
      %351 = vmatprep.subr.bf16.mxu0 0
      %352 = vmatpush1.bf16.msra.mxu0 0
      %353 = vmatprep.subr.bf16.mxu0 0
      %354 = vmatpush1.bf16.msra.mxu0 0
      %355 = vmatprep.subr.bf16.mxu0 0
      %356 = vmatpush1.bf16.msra.mxu0 0
      %357 = vmatprep.subr.bf16.mxu0 0
      %358 = vmatpush1.bf16.msra.mxu0 0
      %359 = vmatprep.subr.bf16.mxu0 0
      %360 = vmatpush1.bf16.msra.mxu0 0
      %361 = vmatprep.subr.bf16.mxu0 0
      %362 = vmatpush1.bf16.msra.mxu0 0
      %363 = vmatprep.subr.bf16.mxu0 0
      %364 = vmatpush1.bf16.msra.mxu0 0
      %365 = vmatprep.subr.bf16.mxu0 0
      %366 = vmatpush1.bf16.msra.mxu0 0
      %367 = vmatprep.mubr.bf16.mxu0 0
      %368 = vmatmul.mubr.bf16.gmra.mrb[0].mxu0 %v333
      %v369 = vpop.f32.mrb[0].mxu0
      %v370 = vadd.f32 %v317, %v369
      %v371 = vpop.f32.mrb[0].mxu0
      %v372 = vpop.f32.mrb[0].mxu0
      %v373 = vpop.f32.mrb[0].mxu0
      %374 = vdwg.mxu0
      %v375 = vmul.f32 %v370, 0.5
      %v376 = vmul.f32 %v370, 0.70710677
      %vm377 = vcmp.ge.f32.partialorder %v376, 0.0
      %v378 = vsel %vm377, 1.0, -1.0
      %v379 = vand.u32 2147483647, %v376
      %v380 = vmul.f32 %v379, 0.3275911
      %v381 = vadd.f32 %v380, 1.0
      %v382 = vrcp.pop %v381
      %v383 = vmul.f32 1.0, %v382
      %v384 = vmul.f32 %v383, 1.0614054
      %v385 = vadd.f32 %v384, -1.4531521
      %v386 = vmul.f32 %v385, %v383
      %v387 = vadd.f32 %v386, 1.4214138
      %v388 = vmul.f32 %v387, %v383
      %v389 = vadd.f32 %v388, -0.28449672
      %v390 = vmul.f32 %v389, %v383
      %v391 = vadd.f32 %v390, 0.2548296
      %v392 = vmul.f32 %v391, %v383
      %v393 = vsub.f32 0.0, %v379
      %v394 = vmul.f32 %v393, %v379
      %v395 = vmul.f32 %v394, 1.442695
      %v396 = vpow.pop %v395
      %v397 = vmul.f32 %v392, %v396
      %v398 = vsub.f32 1.0, %v397
      %v399 = vmul.f32 %v378, %v398
      %v400 = vadd.f32 %v399, 1.0
      %v401 = vmul.f32 %v375, %v400
      %v402 = vpack.c.bf16 %v401, %v401
      %v403 = vld [vmem:[%s3] sm:$0xf]
      %v404 = vld [vmem:[%s3 + $0x4] sm:$0xf]
      %v405 = vld [vmem:[%s3 + $0x8] sm:$0xf]
      %v406 = vld [vmem:[%s3 + $0xc] sm:$0xf]
      %v407 = vld [vmem:[%s3 + $0x10] sm:$0xf]
      %v408 = vld [vmem:[%s3 + $0x14] sm:$0xf]
      %v409 = vld [vmem:[%s3 + $0x18] sm:$0xf]
      %v410 = vld [vmem:[%s3 + $0x1c] sm:$0xf]
      %v411 = vld [vmem:[%s4] sm:$0x1]
      %v413 = vlaneseq
      %v414 = vshrl.u32 %v413, 7
      %v415 = vsub.s32 0, %v414
      %v416 = vrot.slane %v411, %v415
      %v426 = vunpack.c.l.b16 %v403
      %v427 = vunpack.c.l.b16 %v404
      %v428 = vunpack.c.l.b16 %v405
      %v429 = vunpack.c.l.b16 %v406
      %v430 = vunpack.c.l.b16 %v407
      %v431 = vunpack.c.l.b16 %v408
      %v432 = vunpack.c.l.b16 %v409
      %v433 = vunpack.c.l.b16 %v410
      %v434 = vpack.c.b16 %v427, %v426
      %v435 = vpack.c.b16 %v429, %v428
      %v436 = vpack.c.b16 %v431, %v430
      %v437 = vpack.c.b16 %v433, %v432
      %vm442 = vcmask 523264
      %v444 = vsel %vm442, %v402, 0
      %446 = vmatprep.subr.bf16.mxu0 0
      %447 = vmatpush1.bf16.msra.mxu0 %v434
      %448 = vmatprep.subr.bf16.mxu0 0
      %449 = vmatpush1.bf16.msra.mxu0 %v435
      %450 = vmatprep.subr.bf16.mxu0 0
      %451 = vmatpush1.bf16.msra.mxu0 %v436
      %452 = vmatprep.subr.bf16.mxu0 0
      %453 = vmatpush1.bf16.msra.mxu0 %v437
      %454 = vmatprep.subr.bf16.mxu0 0
      %455 = vmatpush1.bf16.msra.mxu0 0
      %456 = vmatprep.subr.bf16.mxu0 0
      %457 = vmatpush1.bf16.msra.mxu0 0
      %458 = vmatprep.subr.bf16.mxu0 0
      %459 = vmatpush1.bf16.msra.mxu0 0
      %460 = vmatprep.subr.bf16.mxu0 0
      %461 = vmatpush1.bf16.msra.mxu0 0
      %462 = vmatprep.subr.bf16.mxu0 0
      %463 = vmatpush1.bf16.msra.mxu0 0
      %464 = vmatprep.subr.bf16.mxu0 0
      %465 = vmatpush1.bf16.msra.mxu0 0
      %466 = vmatprep.subr.bf16.mxu0 0
      %467 = vmatpush1.bf16.msra.mxu0 0
      %468 = vmatprep.subr.bf16.mxu0 0
      %469 = vmatpush1.bf16.msra.mxu0 0
      %470 = vmatprep.subr.bf16.mxu0 0
      %471 = vmatpush1.bf16.msra.mxu0 0
      %472 = vmatprep.subr.bf16.mxu0 0
      %473 = vmatpush1.bf16.msra.mxu0 0
      %474 = vmatprep.subr.bf16.mxu0 0
      %475 = vmatpush1.bf16.msra.mxu0 0
      %476 = vmatprep.subr.bf16.mxu0 0
      %477 = vmatpush1.bf16.msra.mxu0 0
      %478 = vmatprep.mubr.bf16.mxu0 0
      %479 = vmatmul.mubr.bf16.gmra.mrb[0].mxu0 %v444
      %v480 = vpop.f32.mrb[0].mxu0
      %v481 = vadd.f32 %v416, %v480
      %v482 = vpop.f32.mrb[0].mxu0
      %v483 = vpop.f32.mrb[0].mxu0
      %v484 = vpop.f32.mrb[0].mxu0
      %485 = vdwg.mxu0
      %v486 = vadd.f32 %v307, %v481
      %v487 = vld [vmem:[%s5] sm:$0x1]
      %v488 = vld [vmem:[%s6] sm:$0x1]
      %v489 = vsel %vm331, %v486, 0.0
      %490 = vadd.xlane.f32.xlu0 %v489
      %v491 = vpop.xlane.xlu0 %490
      %v492 = vrcp.pop 32.0
      %v493 = vmul.f32 %v491, %v492
      %v494 = vsub.f32 %v486, %v493
      %v495 = vmul.f32 %v494, %v494
      %v496 = vsel %vm331, %v495, 0.0
      %497 = vadd.xlane.f32.xlu0 %v496
      %v498 = vpop.xlane.xlu0 %497
      %v499 = vmul.f32 %v498, %v492
      %v500 = vadd.f32 %v499, 1e-05
      %v501 = vrsqrt.pop %v500
      %v502 = vmul.f32 %v500, %v501
      %vm503 = vcmp.eq.f32.partialorder %v500, inf
      %v504 = vsel %vm503, %v500, %v502
      %vm505 = vcmp.eq.f32.partialorder %v500, 0.0
      %v506 = vand.u32 %v500, 2147483648
      %v507 = vsel %vm505, %v506, %v504
      %v508 = vrcp.pop %v507
      %v509 = vmul.f32 %v494, %v508
      %v511 = vlaneseq
      %v512 = vshrl.u32 %v511, 7
      %v513 = vsub.s32 0, %v512
      %v514 = vrot.slane %v487, %v513
      %v516 = vmul.f32 %v509, %v514
      %v518 = vlaneseq
      %v519 = vshrl.u32 %v518, 7
      %v520 = vsub.s32 0, %v519
      %v521 = vrot.slane %v488, %v520
      %v523 = vadd.f32 %v516, %v521
      %v524 = vpack.c.bf16 %v523, %v523
      %vm525 = vcmask 257024
      %526 = vst.msk [vmem:[%s304] sm:$0xf] %vm525, %v524
      %p527 = scmp.lt.s32.totalorder %s22, 1
      %s528 = scalar_select %p527, %s22, 1
      %p529 = scmp.lt.s32.totalorder %s23, 0
      %s530 = scalar_select %p529, %s23, 0
      %s531 = sadd.s32 %s530, %s528
      %s532 = smul.addr %s531, 4
      %s533 = scalar_lea.vmem %s7, %s532
      // Predicated region
      $region49: #{anomaly_transformer_forward.8} parent=47 // pred_check
        %p534 = pneg %p204
      $region50: #{anomaly_transformer_forward.8} parent=47 // pred_check_branch
        %536 = sbr.rel (%p534) target = $region52
      $region51: #{anomaly_transformer_forward.8} parent=47 // pred_region
        _
      $region52: #{anomaly_transformer_forward.8} parent=47 // pred_fallthru
        _
    $region48: #{anomaly_transformer_forward.8} parent=5 // pred_fallthru
      _
    %p537 = scmp.le.s32.totalorder 2, %s13
    // Predicated region
    $region53: #{anomaly_transformer_forward.8} parent=5 // pred_check
      %p538 = pneg %p537
    $region54: #{anomaly_transformer_forward.8} parent=5 // pred_check_branch
      %540 = sbr.rel (%p538) target = $region56
    $region55: #{anomaly_transformer_forward.8} parent=5 // pred_region
      %s541 = ssub.s32 %s13, 2
      // Predicated region
      $region57: #{anomaly_transformer_forward.8} parent=55 // pred_check
        %p542 = pneg %p210
      $region58: #{anomaly_transformer_forward.8} parent=55 // pred_check_branch
        %544 = sbr.rel (%p542) target = $region60
      $region59: #{anomaly_transformer_forward.8} parent=55 // pred_region
        %p545 = scmp.lt.s32.totalorder %s24, 1
        %s546 = scalar_select %p545, %s24, 1
        %p547 = scmp.lt.s32.totalorder %s25, 0
        %s548 = scalar_select %p547, %s25, 0
        %s549 = sadd.s32 %s548, %s546
        %s550 = smul.addr %s549, 4
        %s551 = scalar_lea.vmem %s7, %s550
      $region60: #{anomaly_transformer_forward.8} parent=55 // pred_fallthru
        _
    $region56: #{anomaly_transformer_forward.8} parent=5 // pred_fallthru
      _
  $region6: #{anomaly_transformer_forward.8} parent=0 // loop_footer
    %s17 = sadd.s32 1, %s13
  $region7: #{anomaly_transformer_forward.8} parent=0 // loop_footer_branch
    %12 = sbr.rel target = $region3
  $region8: #{anomaly_transformer_forward.8} parent=0 // loop_exit
    _

// kernel: anomaly_transformer_forward.7
$region0: #{anomaly_transformer_forward.7}
  #allocation0 [shape = 'u32[]', space=smem, size = 0x4, offset = 0x4, fixed_abs, tag = 'smem constant byte address 0x4 - core index']
  #allocation1 [shape = 'u32[144,128]{1,0:T(1,128)}', space=vmem, size = 0x12000, scoped, tag = 'internal scratch']
  %s0 = inlined_call_operand.vmem [shape: bf16[2,8,32], index: 0, kind: input, shape index: {}, may-alias: {0,8}]
  %s1 = inlined_call_operand.vmem [shape: bf16[4,32,8], index: 1, kind: input, shape index: {}]
  %s2 = inlined_call_operand.vmem [shape: bf16[4,32,8], index: 2, kind: input, shape index: {}]
  %s3 = inlined_call_operand.vmem [shape: bf16[4,32,8], index: 3, kind: input, shape index: {}]
  %s4 = inlined_call_operand.vmem [shape: bf16[4,8,32], index: 4, kind: input, shape index: {}]
  %s5 = inlined_call_operand.vmem [shape: f32[1,32], index: 5, kind: input, shape index: {}]
  %s6 = inlined_call_operand.vmem [shape: f32[1,32], index: 6, kind: input, shape index: {}]
  %s7 = inlined_call_operand.vmem [shape: f32[1,32], index: 7, kind: input, shape index: {}]
  %s8 = inlined_call_operand.vmem [shape: bf16[2,8,32], index: 8, kind: output, shape index: {}, may-alias: {0,8}]
  %s9 = sld [smem:[#allocation0]]
  $region65: #{anomaly_transformer_forward.7} parent=0
    _
  %s11 = ssub.s32 1, %s9
  %s12 = scalar_select 0, %s11, %s9
  loop: start=0, step=1, limit=4
  $region2: #{anomaly_transformer_forward.7} parent=0 // loop_pre_header
    _
  $region3: #{anomaly_transformer_forward.7} parent=0 // loop_header
    %s14 = sphi 0, %s18
    %p15 = scmp.ge.s32.totalorder %s14, 4
    %s24 = sphi 0, %s26
    %s27 = sphi 0, %s24
    %s28 = sphi 0, %s27
    %s44 = sphi 0, %s28
    %s48 = sphi 0, %s48
    %s50 = sphi 0, %s48
    %s51 = sphi 0, %s50
    %s65 = sphi 0, %s51
    %s69 = sphi 0, %s69
    %s71 = sphi 0, %s69
    %s72 = sphi 0, %s71
    %s86 = sphi 0, %s72
    %s90 = sphi 0, %s90
    %s92 = sphi 0, %s90
    %s93 = sphi 0, %s92
    %s107 = sphi 0, %s93
    %s111 = sphi 0, %s111
    %s113 = sphi 0, %s111
    %s114 = sphi 0, %s113
    %s128 = sphi 0, %s114
    %s132 = sphi 0, %s132
    %s134 = sphi 0, %s132
    %s135 = sphi 0, %s134
    %s149 = sphi 0, %s135
    %s153 = sphi 0, %s153
    %s155 = sphi 0, %s153
    %s156 = sphi 0, %s155
    %s170 = sphi 0, %s156
    %s174 = sphi 0, %s174
    %s176 = sphi 0, %s174
    %s177 = sphi 0, %s176
    %s191 = sphi 0, %s177
    %s197 = sphi 0, %s199
    %s200 = sphi 0, %s197
    %s201 = sphi 0, %s200
    %s217 = sphi 0, %s201
  $region4: #{anomaly_transformer_forward.7} parent=0 // loop_header_branch
    %17 = sbr.rel (%p15) target = $region8
  $region5: #{anomaly_transformer_forward.7} parent=0 // loop_body
    %s19 = ssub.s32 %s14, 1
    %s20 = ssub.s32 %s14, 2
    %s21 = sadd.s32 %s14, 1
    %s22 = ssub.s32 %s14, %s21
    %p23 = scmp.eq.s32.totalorder %s22, 0
    %s25 = sadd.s32 %s24, 1
    %s26 = scalar_select %p23, %s24, %s25
    %p29 = pneg %p23
    %p30 = scmp.eq.s32.totalorder %s14, 1
    %p31 = por %p29, %p30
    %p32 = scmp.ne.s32.totalorder %s24, %s27
    %p33 = scmp.eq.s32.totalorder %s14, 0
    %p34 = por %p32, %p33
    %p35 = scmp.ne.s32.totalorder %s24, %s27
    %p36 = scmp.eq.s32.totalorder %s19, 1
    %p37 = por %p35, %p36
    %p38 = scmp.ne.s32.totalorder %s27, %s28
    %p39 = scmp.eq.s32.totalorder %s19, 0
    %p40 = por %p38, %p39
    %p41 = scmp.ne.s32.totalorder %s27, %s28
    %p42 = scmp.eq.s32.totalorder %s20, 1
    %p43 = por %p41, %p42
    %p45 = scmp.ne.s32.totalorder %s28, %s44
    %p46 = scmp.eq.s32.totalorder %s20, 0
    %p47 = por %p45, %p46
    %s49 = sadd.s32 %s48, 1
    %p52 = scmp.eq.s32.totalorder %s14, 1
    %p53 = scmp.ne.s32.totalorder %s48, %s50
    %p54 = scmp.eq.s32.totalorder %s14, 0
    %p55 = por %p53, %p54
    %p56 = scmp.ne.s32.totalorder %s48, %s50
    %p57 = scmp.eq.s32.totalorder %s19, 1
    %p58 = por %p56, %p57
    %p59 = scmp.ne.s32.totalorder %s50, %s51
    %p60 = scmp.eq.s32.totalorder %s19, 0
    %p61 = por %p59, %p60
    %p62 = scmp.ne.s32.totalorder %s50, %s51
    %p63 = scmp.eq.s32.totalorder %s20, 1
    %p64 = por %p62, %p63
    %p66 = scmp.ne.s32.totalorder %s51, %s65
    %p67 = scmp.eq.s32.totalorder %s20, 0
    %p68 = por %p66, %p67
    %s70 = sadd.s32 %s69, 1
    %p73 = scmp.eq.s32.totalorder %s14, 1
    %p74 = scmp.ne.s32.totalorder %s69, %s71
    %p75 = scmp.eq.s32.totalorder %s14, 0
    %p76 = por %p74, %p75
    %p77 = scmp.ne.s32.totalorder %s69, %s71
    %p78 = scmp.eq.s32.totalorder %s19, 1
    %p79 = por %p77, %p78
    %p80 = scmp.ne.s32.totalorder %s71, %s72
    %p81 = scmp.eq.s32.totalorder %s19, 0
    %p82 = por %p80, %p81
    %p83 = scmp.ne.s32.totalorder %s71, %s72
    %p84 = scmp.eq.s32.totalorder %s20, 1
    %p85 = por %p83, %p84
    %p87 = scmp.ne.s32.totalorder %s72, %s86
    %p88 = scmp.eq.s32.totalorder %s20, 0
    %p89 = por %p87, %p88
    %s91 = sadd.s32 %s90, 1
    %p94 = scmp.eq.s32.totalorder %s14, 1
    %p95 = scmp.ne.s32.totalorder %s90, %s92
    %p96 = scmp.eq.s32.totalorder %s14, 0
    %p97 = por %p95, %p96
    %p98 = scmp.ne.s32.totalorder %s90, %s92
    %p99 = scmp.eq.s32.totalorder %s19, 1
    %p100 = por %p98, %p99
    %p101 = scmp.ne.s32.totalorder %s92, %s93
    %p102 = scmp.eq.s32.totalorder %s19, 0
    %p103 = por %p101, %p102
    %p104 = scmp.ne.s32.totalorder %s92, %s93
    %p105 = scmp.eq.s32.totalorder %s20, 1
    %p106 = por %p104, %p105
    %p108 = scmp.ne.s32.totalorder %s93, %s107
    %p109 = scmp.eq.s32.totalorder %s20, 0
    %p110 = por %p108, %p109
    %s112 = sadd.s32 %s111, 1
    %p115 = scmp.eq.s32.totalorder %s14, 1
    %p116 = scmp.ne.s32.totalorder %s111, %s113
    %p117 = scmp.eq.s32.totalorder %s14, 0
    %p118 = por %p116, %p117
    %p119 = scmp.ne.s32.totalorder %s111, %s113
    %p120 = scmp.eq.s32.totalorder %s19, 1
    %p121 = por %p119, %p120
    %p122 = scmp.ne.s32.totalorder %s113, %s114
    %p123 = scmp.eq.s32.totalorder %s19, 0
    %p124 = por %p122, %p123
    %p125 = scmp.ne.s32.totalorder %s113, %s114
    %p126 = scmp.eq.s32.totalorder %s20, 1
    %p127 = por %p125, %p126
    %p129 = scmp.ne.s32.totalorder %s114, %s128
    %p130 = scmp.eq.s32.totalorder %s20, 0
    %p131 = por %p129, %p130
    %s133 = sadd.s32 %s132, 1
    %p136 = scmp.eq.s32.totalorder %s14, 1
    %p137 = scmp.ne.s32.totalorder %s132, %s134
    %p138 = scmp.eq.s32.totalorder %s14, 0
    %p139 = por %p137, %p138
    %p140 = scmp.ne.s32.totalorder %s132, %s134
    %p141 = scmp.eq.s32.totalorder %s19, 1
    %p142 = por %p140, %p141
    %p143 = scmp.ne.s32.totalorder %s134, %s135
    %p144 = scmp.eq.s32.totalorder %s19, 0
    %p145 = por %p143, %p144
    %p146 = scmp.ne.s32.totalorder %s134, %s135
    %p147 = scmp.eq.s32.totalorder %s20, 1
    %p148 = por %p146, %p147
    %p150 = scmp.ne.s32.totalorder %s135, %s149
    %p151 = scmp.eq.s32.totalorder %s20, 0
    %p152 = por %p150, %p151
    %s154 = sadd.s32 %s153, 1
    %p157 = scmp.eq.s32.totalorder %s14, 1
    %p158 = scmp.ne.s32.totalorder %s153, %s155
    %p159 = scmp.eq.s32.totalorder %s14, 0
    %p160 = por %p158, %p159
    %p161 = scmp.ne.s32.totalorder %s153, %s155
    %p162 = scmp.eq.s32.totalorder %s19, 1
    %p163 = por %p161, %p162
    %p164 = scmp.ne.s32.totalorder %s155, %s156
    %p165 = scmp.eq.s32.totalorder %s19, 0
    %p166 = por %p164, %p165
    %p167 = scmp.ne.s32.totalorder %s155, %s156
    %p168 = scmp.eq.s32.totalorder %s20, 1
    %p169 = por %p167, %p168
    %p171 = scmp.ne.s32.totalorder %s156, %s170
    %p172 = scmp.eq.s32.totalorder %s20, 0
    %p173 = por %p171, %p172
    %s175 = sadd.s32 %s174, 1
    %p178 = scmp.eq.s32.totalorder %s14, 1
    %p179 = scmp.ne.s32.totalorder %s174, %s176
    %p180 = scmp.eq.s32.totalorder %s14, 0
    %p181 = por %p179, %p180
    %p182 = scmp.ne.s32.totalorder %s174, %s176
    %p183 = scmp.eq.s32.totalorder %s19, 1
    %p184 = por %p182, %p183
    %p185 = scmp.ne.s32.totalorder %s176, %s177
    %p186 = scmp.eq.s32.totalorder %s19, 0
    %p187 = por %p185, %p186
    %p188 = scmp.ne.s32.totalorder %s176, %s177
    %p189 = scmp.eq.s32.totalorder %s20, 1
    %p190 = por %p188, %p189
    %p192 = scmp.ne.s32.totalorder %s177, %s191
    %p193 = scmp.eq.s32.totalorder %s20, 0
    %p194 = por %p192, %p193
    %s195 = ssub.s32 %s14, %s21
    %p196 = scmp.eq.s32.totalorder %s195, 0
    %s198 = sadd.s32 %s197, 1
    %s199 = scalar_select %p196, %s197, %s198
    %p202 = pneg %p196
    %p203 = scmp.eq.s32.totalorder %s14, 1
    %p204 = por %p202, %p203
    %p205 = scmp.ne.s32.totalorder %s197, %s200
    %p206 = scmp.eq.s32.totalorder %s14, 0
    %p207 = por %p205, %p206
    %p208 = scmp.ne.s32.totalorder %s197, %s200
    %p209 = scmp.eq.s32.totalorder %s19, 1
    %p210 = por %p208, %p209
    %p211 = scmp.ne.s32.totalorder %s200, %s201
    %p212 = scmp.eq.s32.totalorder %s19, 0
    %p213 = por %p211, %p212
    %p214 = scmp.ne.s32.totalorder %s200, %s201
    %p215 = scmp.eq.s32.totalorder %s20, 1
    %p216 = por %p214, %p215
    %p218 = scmp.ne.s32.totalorder %s201, %s217
    %p219 = scmp.eq.s32.totalorder %s20, 0
    %p220 = por %p218, %p219
    %p221 = scmp.le.s32.totalorder 1, %s14
    %p222 = scmp.lt.s32.totalorder %s14, 3
    %p223 = pnand %p221, %p222
    %p224 = pneg %p223
    // Predicated region
    $region9: #{anomaly_transformer_forward.7} parent=5 // pred_check
      _
    $region10: #{anomaly_transformer_forward.7} parent=5 // pred_check_branch
      %226 = sbr.rel (%p223) target = $region12
    $region11: #{anomaly_transformer_forward.7} parent=5 // pred_region
      %s227 = ssub.s32 %s14, 1
      // Predicated region
      $region13: #{anomaly_transformer_forward.7} parent=11 // pred_check
        %p228 = pneg %p61
      $region14: #{anomaly_transformer_forward.7} parent=11 // pred_check_branch
        %230 = sbr.rel (%p228) target = $region16
      $region15: #{anomaly_transformer_forward.7} parent=11 // pred_region
        _
      $region16: #{anomaly_transformer_forward.7} parent=11 // pred_fallthru
        _
      // Predicated region
      $region17: #{anomaly_transformer_forward.7} parent=11 // pred_check
        %p231 = pneg %p82
      $region18: #{anomaly_transformer_forward.7} parent=11 // pred_check_branch
        %233 = sbr.rel (%p231) target = $region20
      $region19: #{anomaly_transformer_forward.7} parent=11 // pred_region
        _
      $region20: #{anomaly_transformer_forward.7} parent=11 // pred_fallthru
        _
      // Predicated region
      $region21: #{anomaly_transformer_forward.7} parent=11 // pred_check
        %p234 = pneg %p103
      $region22: #{anomaly_transformer_forward.7} parent=11 // pred_check_branch
        %236 = sbr.rel (%p234) target = $region24
      $region23: #{anomaly_transformer_forward.7} parent=11 // pred_region
        _
      $region24: #{anomaly_transformer_forward.7} parent=11 // pred_fallthru
        _
      // Predicated region
      $region25: #{anomaly_transformer_forward.7} parent=11 // pred_check
        %p237 = pneg %p124
      $region26: #{anomaly_transformer_forward.7} parent=11 // pred_check_branch
        %239 = sbr.rel (%p237) target = $region28
      $region27: #{anomaly_transformer_forward.7} parent=11 // pred_region
        _
      $region28: #{anomaly_transformer_forward.7} parent=11 // pred_fallthru
        _
      // Predicated region
      $region29: #{anomaly_transformer_forward.7} parent=11 // pred_check
        %p240 = pneg %p145
      $region30: #{anomaly_transformer_forward.7} parent=11 // pred_check_branch
        %242 = sbr.rel (%p240) target = $region32
      $region31: #{anomaly_transformer_forward.7} parent=11 // pred_region
        _
      $region32: #{anomaly_transformer_forward.7} parent=11 // pred_fallthru
        _
      // Predicated region
      $region33: #{anomaly_transformer_forward.7} parent=11 // pred_check
        %p243 = pneg %p166
      $region34: #{anomaly_transformer_forward.7} parent=11 // pred_check_branch
        %245 = sbr.rel (%p243) target = $region36
      $region35: #{anomaly_transformer_forward.7} parent=11 // pred_region
        _
      $region36: #{anomaly_transformer_forward.7} parent=11 // pred_fallthru
        _
      // Predicated region
      $region37: #{anomaly_transformer_forward.7} parent=11 // pred_check
        %p246 = pneg %p187
      $region38: #{anomaly_transformer_forward.7} parent=11 // pred_check_branch
        %248 = sbr.rel (%p246) target = $region40
      $region39: #{anomaly_transformer_forward.7} parent=11 // pred_region
        _
      $region40: #{anomaly_transformer_forward.7} parent=11 // pred_fallthru
        _
    $region12: #{anomaly_transformer_forward.7} parent=5 // pred_fallthru
      _
    %p249 = scmp.lt.s32.totalorder %s14, 2
    // Predicated region
    $region41: #{anomaly_transformer_forward.7} parent=5 // pred_check
      %p250 = pneg %p249
    $region42: #{anomaly_transformer_forward.7} parent=5 // pred_check_branch
      %252 = sbr.rel (%p250) target = $region44
    $region43: #{anomaly_transformer_forward.7} parent=5 // pred_region
      // Predicated region
      $region45: #{anomaly_transformer_forward.7} parent=43 // pred_check
        %p253 = pneg %p34
      $region46: #{anomaly_transformer_forward.7} parent=43 // pred_check_branch
        %255 = sbr.rel (%p253) target = $region48
      $region47: #{anomaly_transformer_forward.7} parent=43 // pred_region
        %p256 = scmp.lt.s32.totalorder %s14, 1
        %s257 = scalar_select %p256, %s14, 1
        %s258 = smul.addr %s257, 4
        %s259 = scalar_lea.vmem %s0, %s258
      $region48: #{anomaly_transformer_forward.7} parent=43 // pred_fallthru
        _
    $region44: #{anomaly_transformer_forward.7} parent=5 // pred_fallthru
      _
    %p260 = scmp.le.s32.totalorder 1, %s14
    %p261 = scmp.lt.s32.totalorder %s14, 3
    %p262 = pnand %p260, %p261
    %p263 = pneg %p262
    // Predicated region
    $region49: #{anomaly_transformer_forward.7} parent=5 // pred_check
      _
    $region50: #{anomaly_transformer_forward.7} parent=5 // pred_check_branch
      %265 = sbr.rel (%p262) target = $region52
    $region51: #{anomaly_transformer_forward.7} parent=5 // pred_region
      %s266 = ssub.s32 %s14, 1
      %p267 = scmp.lt.s32.totalorder %s19, 1
      %s268 = scalar_select %p267, %s19, 1
      %s269 = smul.addr %s268, 4
      %s270 = scalar_lea.vmem %s0, %s269
      %p271 = pneg %p40
      %p272 = pneg %p37
      %p273 = pneg %p61
      %p274 = pneg %p58
      %p275 = pneg %p82
      %p276 = pneg %p79
      %p277 = pneg %p103
      %p278 = pneg %p100
      %p279 = pneg %p124
      %p280 = pneg %p121
      %p281 = pneg %p145
      %p282 = pneg %p142
      %p283 = pneg %p166
      %p284 = pneg %p163
      %p285 = pneg %p187
      %p286 = pneg %p184
      %p287 = pneg %p213
      %p288 = pneg %p210
      %p289 = scmp.lt.s32.totalorder %s19, 1
      %s290 = scalar_select %p289, %s19, 1
      %s291 = smul.addr %s290, 4
      %s292 = scalar_lea.vmem %s8, %s291
      %p293 = scmp.lt.s32.totalorder %s19, 1
      %s294 = scalar_select %p293, %s19, 1
      %s295 = smul.addr %s294, 4
      %s296 = scalar_lea.vmem %s0, %s295
      %p297 = scmp.lt.s32.totalorder %s19, 1
      %s298 = scalar_select %p297, %s19, 1
      %s299 = smul.addr %s298, 4
      %s300 = scalar_lea.vmem %s8, %s299
      %v302 = vld [vmem:[%s296] sm:$0xf]
      %v303 = vunpack.c.l.bf16 %v302
      %v304 = vld [vmem:[%s1] sm:$0xf]
      %v305 = vld [vmem:[%s1 + $0x4] sm:$0xf]
      %v306 = vld [vmem:[%s1 + $0x8] sm:$0xf]
      %v307 = vld [vmem:[%s1 + $0xc] sm:$0xf]
      %v312 = vunpack.c.l.b16 %v304
      %v313 = vunpack.c.l.b16 %v305
      %v314 = vunpack.c.l.b16 %v306
      %v315 = vunpack.c.l.b16 %v307
      %v316 = vpack.c.b16 %v313, %v312
      %v317 = vpack.c.b16 %v315, %v314
      %vm320 = vcmask 261120
      %v322 = vsel %vm320, %v302, 0
      %324 = vmatprep.subr.bf16.mxu0 0
      %325 = vmatpush1.bf16.msra.mxu0 %v316
      %326 = vmatprep.subr.bf16.mxu0 0
      %327 = vmatpush1.bf16.msra.mxu0 %v317
      %328 = vmatprep.subr.bf16.mxu0 0
      %329 = vmatpush1.bf16.msra.mxu0 0
      %330 = vmatprep.subr.bf16.mxu0 0
      %331 = vmatpush1.bf16.msra.mxu0 0
      %332 = vmatprep.subr.bf16.mxu0 0
      %333 = vmatpush1.bf16.msra.mxu0 0
      %334 = vmatprep.subr.bf16.mxu0 0
      %335 = vmatpush1.bf16.msra.mxu0 0
      %336 = vmatprep.subr.bf16.mxu0 0
      %337 = vmatpush1.bf16.msra.mxu0 0
      %338 = vmatprep.subr.bf16.mxu0 0
      %339 = vmatpush1.bf16.msra.mxu0 0
      %340 = vmatprep.subr.bf16.mxu0 0
      %341 = vmatpush1.bf16.msra.mxu0 0
      %342 = vmatprep.subr.bf16.mxu0 0
      %343 = vmatpush1.bf16.msra.mxu0 0
      %344 = vmatprep.subr.bf16.mxu0 0
      %345 = vmatpush1.bf16.msra.mxu0 0
      %346 = vmatprep.subr.bf16.mxu0 0
      %347 = vmatpush1.bf16.msra.mxu0 0
      %348 = vmatprep.subr.bf16.mxu0 0
      %349 = vmatpush1.bf16.msra.mxu0 0
      %350 = vmatprep.subr.bf16.mxu0 0
      %351 = vmatpush1.bf16.msra.mxu0 0
      %352 = vmatprep.subr.bf16.mxu0 0
      %353 = vmatpush1.bf16.msra.mxu0 0
      %354 = vmatprep.subr.bf16.mxu0 0
      %355 = vmatpush1.bf16.msra.mxu0 0
      %356 = vmatprep.mubr.bf16.mxu0 0
      %357 = vmatmul.mubr.bf16.gmra.mrb[0].mxu0 %v322
      %v358 = vpop.f32.mrb[0].mxu0
      %v359 = vadd.f32 0.0, %v358
      %v360 = vpop.f32.mrb[0].mxu0
      %v361 = vpop.f32.mrb[0].mxu0
      %v362 = vpop.f32.mrb[0].mxu0
      %363 = vdwg.mxu0
      %v364 = vld [vmem:[%s2] sm:$0xf]
      %v365 = vld [vmem:[%s2 + $0x4] sm:$0xf]
      %v366 = vld [vmem:[%s2 + $0x8] sm:$0xf]
      %v367 = vld [vmem:[%s2 + $0xc] sm:$0xf]
      %v372 = vunpack.c.l.b16 %v364
      %v373 = vunpack.c.l.b16 %v365
      %v374 = vunpack.c.l.b16 %v366
      %v375 = vunpack.c.l.b16 %v367
      %v376 = vpack.c.b16 %v373, %v372
      %v377 = vpack.c.b16 %v375, %v374
      %380 = vmatprep.subr.bf16.mxu0 0
      %381 = vmatpush1.bf16.msra.mxu0 %v376
      %382 = vmatprep.subr.bf16.mxu0 0
      %383 = vmatpush1.bf16.msra.mxu0 %v377
      %384 = vmatprep.subr.bf16.mxu0 0
      %385 = vmatpush1.bf16.msra.mxu0 0
      %386 = vmatprep.subr.bf16.mxu0 0
      %387 = vmatpush1.bf16.msra.mxu0 0
      %388 = vmatprep.subr.bf16.mxu0 0
      %389 = vmatpush1.bf16.msra.mxu0 0
      %390 = vmatprep.subr.bf16.mxu0 0
      %391 = vmatpush1.bf16.msra.mxu0 0
      %392 = vmatprep.subr.bf16.mxu0 0
      %393 = vmatpush1.bf16.msra.mxu0 0
      %394 = vmatprep.subr.bf16.mxu0 0
      %395 = vmatpush1.bf16.msra.mxu0 0
      %396 = vmatprep.subr.bf16.mxu0 0
      %397 = vmatpush1.bf16.msra.mxu0 0
      %398 = vmatprep.subr.bf16.mxu0 0
      %399 = vmatpush1.bf16.msra.mxu0 0
      %400 = vmatprep.subr.bf16.mxu0 0
      %401 = vmatpush1.bf16.msra.mxu0 0
      %402 = vmatprep.subr.bf16.mxu0 0
      %403 = vmatpush1.bf16.msra.mxu0 0
      %404 = vmatprep.subr.bf16.mxu0 0
      %405 = vmatpush1.bf16.msra.mxu0 0
      %406 = vmatprep.subr.bf16.mxu0 0
      %407 = vmatpush1.bf16.msra.mxu0 0
      %408 = vmatprep.subr.bf16.mxu0 0
      %409 = vmatpush1.bf16.msra.mxu0 0
      %410 = vmatprep.subr.bf16.mxu0 0
      %411 = vmatpush1.bf16.msra.mxu0 0
      %412 = vmatprep.mubr.bf16.mxu0 0
      %413 = vmatmul.mubr.bf16.gmra.mrb[0].mxu0 %v322
      %v414 = vpop.f32.mrb[0].mxu0
      %v415 = vadd.f32 0.0, %v414
      %v416 = vpop.f32.mrb[0].mxu0
      %v417 = vpop.f32.mrb[0].mxu0
      %v418 = vpop.f32.mrb[0].mxu0
      %419 = vdwg.mxu0
      %v420 = vld [vmem:[%s3] sm:$0xf]
      %v421 = vld [vmem:[%s3 + $0x4] sm:$0xf]
      %v422 = vld [vmem:[%s3 + $0x8] sm:$0xf]
      %v423 = vld [vmem:[%s3 + $0xc] sm:$0xf]
      %v428 = vunpack.c.l.b16 %v420
      %v429 = vunpack.c.l.b16 %v421
      %v430 = vunpack.c.l.b16 %v422
      %v431 = vunpack.c.l.b16 %v423
      %v432 = vpack.c.b16 %v429, %v428
      %v433 = vpack.c.b16 %v431, %v430
      %436 = vmatprep.subr.bf16.mxu0 0
      %437 = vmatpush1.bf16.msra.mxu0 %v432
      %438 = vmatprep.subr.bf16.mxu0 0
      %439 = vmatpush1.bf16.msra.mxu0 %v433
      %440 = vmatprep.subr.bf16.mxu0 0
      %441 = vmatpush1.bf16.msra.mxu0 0
      %442 = vmatprep.subr.bf16.mxu0 0
      %443 = vmatpush1.bf16.msra.mxu0 0
      %444 = vmatprep.subr.bf16.mxu0 0
      %445 = vmatpush1.bf16.msra.mxu0 0
      %446 = vmatprep.subr.bf16.mxu0 0
      %447 = vmatpush1.bf16.msra.mxu0 0
      %448 = vmatprep.subr.bf16.mxu0 0
      %449 = vmatpush1.bf16.msra.mxu0 0
      %450 = vmatprep.subr.bf16.mxu0 0
      %451 = vmatpush1.bf16.msra.mxu0 0
      %452 = vmatprep.subr.bf16.mxu0 0
      %453 = vmatpush1.bf16.msra.mxu0 0
      %454 = vmatprep.subr.bf16.mxu0 0
      %455 = vmatpush1.bf16.msra.mxu0 0
      %456 = vmatprep.subr.bf16.mxu0 0
      %457 = vmatpush1.bf16.msra.mxu0 0
      %458 = vmatprep.subr.bf16.mxu0 0
      %459 = vmatpush1.bf16.msra.mxu0 0
      %460 = vmatprep.subr.bf16.mxu0 0
      %461 = vmatpush1.bf16.msra.mxu0 0
      %462 = vmatprep.subr.bf16.mxu0 0
      %463 = vmatpush1.bf16.msra.mxu0 0
      %464 = vmatprep.subr.bf16.mxu0 0
      %465 = vmatpush1.bf16.msra.mxu0 0
      %466 = vmatprep.subr.bf16.mxu0 0
      %467 = vmatpush1.bf16.msra.mxu0 0
      %468 = vmatprep.mubr.bf16.mxu0 0
      %469 = vmatmul.mubr.bf16.gmra.mrb[0].mxu0 %v322
      %v470 = vpop.f32.mrb[0].mxu0
      %v471 = vadd.f32 0.0, %v470
      %v472 = vpop.f32.mrb[0].mxu0
      %v473 = vpop.f32.mrb[0].mxu0
      %v474 = vpop.f32.mrb[0].mxu0
      %475 = vdwg.mxu0
      %v476 = vpack.c.bf16 %v359, %v359
      %v477 = vpack.c.bf16 %v415, %v415
      %vm478 = vcmask 64512
      %v480 = vsel %vm478, %v476, 0
      %v483 = vsel %vm478, %v477, 0
      %485 = vmatprep.subr.bf16.mxu0 0
      %486 = vmatpush1.bf16.xpose.msra.mxu0 %v483
      %487 = vmatprep.subr.bf16.mxu0 0
      %488 = vmatpush1.bf16.xpose.msra.mxu0 0
      %489 = vmatprep.subr.bf16.mxu0 0
      %490 = vmatpush1.bf16.xpose.msra.mxu0 0
      %491 = vmatprep.subr.bf16.mxu0 0
      %492 = vmatpush1.bf16.xpose.msra.mxu0 0
      %493 = vmatprep.subr.bf16.mxu0 0
      %494 = vmatpush1.bf16.xpose.msra.mxu0 0
      %495 = vmatprep.subr.bf16.mxu0 0
      %496 = vmatpush1.bf16.xpose.msra.mxu0 0
      %497 = vmatprep.subr.bf16.mxu0 0
      %498 = vmatpush1.bf16.xpose.msra.mxu0 0
      %499 = vmatprep.subr.bf16.mxu0 0
      %500 = vmatpush1.bf16.xpose.msra.mxu0 0
      %501 = vmatprep.subr.bf16.mxu0 0
      %502 = vmatpush1.bf16.xpose.msra.mxu0 0
      %503 = vmatprep.subr.bf16.mxu0 0
      %504 = vmatpush1.bf16.xpose.msra.mxu0 0
      %505 = vmatprep.subr.bf16.mxu0 0
      %506 = vmatpush1.bf16.xpose.msra.mxu0 0
      %507 = vmatprep.subr.bf16.mxu0 0
      %508 = vmatpush1.bf16.xpose.msra.mxu0 0
      %509 = vmatprep.subr.bf16.mxu0 0
      %510 = vmatpush1.bf16.xpose.msra.mxu0 0
      %511 = vmatprep.subr.bf16.mxu0 0
      %512 = vmatpush1.bf16.xpose.msra.mxu0 0
      %513 = vmatprep.subr.bf16.mxu0 0
      %514 = vmatpush1.bf16.xpose.msra.mxu0 0
      %515 = vmatprep.subr.bf16.mxu0 0
      %516 = vmatpush1.bf16.xpose.msra.mxu0 0
      %517 = vmatprep.mubr.bf16.mxu0 0
      %518 = vmatmul.mubr.bf16.gmra.mrb[0].mxu0 %v480
      %v519 = vpop.f32.mrb[0].mxu0
      %v520 = vadd.f32 0.0, %v519
      %v521 = vpop.f32.mrb[0].mxu0
      %v522 = vpop.f32.mrb[0].mxu0
      %v523 = vpop.f32.mrb[0].mxu0
      %524 = vdwg.mxu0
      %v525 = vmul.f32 %v520, 0.35355338
      %v526 = vsel %vm478, %v525, -inf
      %527 = vmax.xlane.f32.xlu0 %v526
      %v528 = vpop.xlane.xlu0 %527
      %v529 = vsub.f32 %v525, %v528
      %v530 = vmul.f32 %v529, 1.442695
      %v531 = vpow.pop %v530
      %v532 = vsel %vm478, %v531, 0.0
      %533 = vadd.xlane.f32.xlu0 %v532
      %v534 = vpop.xlane.xlu0 %533
      %v535 = vrcp.pop %v534
      %v536 = vmul.f32 %v531, %v535
      %v537 = vpack.c.bf16 %v536, %v536
      %v538 = vpack.c.bf16 %v471, %v471
      %v540 = vsel %vm478, %v537, 0
      %vm542 = vcmask 1043456
      %v544 = vsel %vm542, %v538, 0
      %546 = vmatprep.subr.bf16.mxu0 0
      %547 = vmatpush1.bf16.msra.mxu0 %v544
      %548 = vmatprep.subr.bf16.mxu0 0
      %549 = vmatpush1.bf16.msra.mxu0 0
      %550 = vmatprep.subr.bf16.mxu0 0
      %551 = vmatpush1.bf16.msra.mxu0 0
      %552 = vmatprep.subr.bf16.mxu0 0
      %553 = vmatpush1.bf16.msra.mxu0 0
      %554 = vmatprep.subr.bf16.mxu0 0
      %555 = vmatpush1.bf16.msra.mxu0 0
      %556 = vmatprep.subr.bf16.mxu0 0
      %557 = vmatpush1.bf16.msra.mxu0 0
      %558 = vmatprep.subr.bf16.mxu0 0
      %559 = vmatpush1.bf16.msra.mxu0 0
      %560 = vmatprep.subr.bf16.mxu0 0
      %561 = vmatpush1.bf16.msra.mxu0 0
      %562 = vmatprep.subr.bf16.mxu0 0
      %563 = vmatpush1.bf16.msra.mxu0 0
      %564 = vmatprep.subr.bf16.mxu0 0
      %565 = vmatpush1.bf16.msra.mxu0 0
      %566 = vmatprep.subr.bf16.mxu0 0
      %567 = vmatpush1.bf16.msra.mxu0 0
      %568 = vmatprep.subr.bf16.mxu0 0
      %569 = vmatpush1.bf16.msra.mxu0 0
      %570 = vmatprep.subr.bf16.mxu0 0
      %571 = vmatpush1.bf16.msra.mxu0 0
      %572 = vmatprep.subr.bf16.mxu0 0
      %573 = vmatpush1.bf16.msra.mxu0 0
      %574 = vmatprep.subr.bf16.mxu0 0
      %575 = vmatpush1.bf16.msra.mxu0 0
      %576 = vmatprep.subr.bf16.mxu0 0
      %577 = vmatpush1.bf16.msra.mxu0 0
      %578 = vmatprep.mubr.bf16.mxu0 0
      %579 = vmatmul.mubr.bf16.gmra.mrb[0].mxu0 %v540
      %v580 = vpop.f32.mrb[0].mxu0
      %v581 = vadd.f32 0.0, %v580
      %v582 = vpop.f32.mrb[0].mxu0
      %v583 = vpop.f32.mrb[0].mxu0
      %v584 = vpop.f32.mrb[0].mxu0
      %585 = vdwg.mxu0
      %v586 = vpack.c.bf16 %v581, %v581
      %v587 = vld [vmem:[%s4] sm:$0xf]
      %s588 = scalar_lea.vmem %s1, 16
      %v589 = vld [vmem:[%s588] sm:$0xf]
      %v590 = vld [vmem:[%s588 + $0x4] sm:$0xf]
      %v591 = vld [vmem:[%s588 + $0x8] sm:$0xf]
      %v592 = vld [vmem:[%s588 + $0xc] sm:$0xf]
      %v597 = vunpack.c.l.b16 %v589
      %v598 = vunpack.c.l.b16 %v590
      %v599 = vunpack.c.l.b16 %v591
      %v600 = vunpack.c.l.b16 %v592
      %v601 = vpack.c.b16 %v598, %v597
      %v602 = vpack.c.b16 %v600, %v599
      %605 = vmatprep.subr.bf16.mxu0 0
      %606 = vmatpush1.bf16.msra.mxu0 %v601
      %607 = vmatprep.subr.bf16.mxu0 0
      %608 = vmatpush1.bf16.msra.mxu0 %v602
      %609 = vmatprep.subr.bf16.mxu0 0
      %610 = vmatpush1.bf16.msra.mxu0 0
      %611 = vmatprep.subr.bf16.mxu0 0
      %612 = vmatpush1.bf16.msra.mxu0 0
      %613 = vmatprep.subr.bf16.mxu0 0
      %614 = vmatpush1.bf16.msra.mxu0 0
      %615 = vmatprep.subr.bf16.mxu0 0
      %616 = vmatpush1.bf16.msra.mxu0 0
      %617 = vmatprep.subr.bf16.mxu0 0
      %618 = vmatpush1.bf16.msra.mxu0 0
      %619 = vmatprep.subr.bf16.mxu0 0
      %620 = vmatpush1.bf16.msra.mxu0 0
      %621 = vmatprep.subr.bf16.mxu0 0
      %622 = vmatpush1.bf16.msra.mxu0 0
      %623 = vmatprep.subr.bf16.mxu0 0
      %624 = vmatpush1.bf16.msra.mxu0 0
      %625 = vmatprep.subr.bf16.mxu0 0
      %626 = vmatpush1.bf16.msra.mxu0 0
      %627 = vmatprep.subr.bf16.mxu0 0
      %628 = vmatpush1.bf16.msra.mxu0 0
      %629 = vmatprep.subr.bf16.mxu0 0
      %630 = vmatpush1.bf16.msra.mxu0 0
      %631 = vmatprep.subr.bf16.mxu0 0
      %632 = vmatpush1.bf16.msra.mxu0 0
      %633 = vmatprep.subr.bf16.mxu0 0
      %634 = vmatpush1.bf16.msra.mxu0 0
      %635 = vmatprep.subr.bf16.mxu0 0
      %636 = vmatpush1.bf16.msra.mxu0 0
      %637 = vmatprep.mubr.bf16.mxu0 0
      %638 = vmatmul.mubr.bf16.gmra.mrb[0].mxu0 %v322
      %v639 = vpop.f32.mrb[0].mxu0
      %v640 = vadd.f32 0.0, %v639
      %v641 = vpop.f32.mrb[0].mxu0
      %v642 = vpop.f32.mrb[0].mxu0
      %v643 = vpop.f32.mrb[0].mxu0
      %644 = vdwg.mxu0
      %s645 = scalar_lea.vmem %s2, 16
      %v646 = vld [vmem:[%s645] sm:$0xf]
      %v647 = vld [vmem:[%s645 + $0x4] sm:$0xf]
      %v648 = vld [vmem:[%s645 + $0x8] sm:$0xf]
      %v649 = vld [vmem:[%s645 + $0xc] sm:$0xf]
      %v654 = vunpack.c.l.b16 %v646
      %v655 = vunpack.c.l.b16 %v647
      %v656 = vunpack.c.l.b16 %v648
      %v657 = vunpack.c.l.b16 %v649
      %v658 = vpack.c.b16 %v655, %v654
      %v659 = vpack.c.b16 %v657, %v656
      %662 = vmatprep.subr.bf16.mxu0 0
      %663 = vmatpush1.bf16.msra.mxu0 %v658
      %664 = vmatprep.subr.bf16.mxu0 0
      %665 = vmatpush1.bf16.msra.mxu0 %v659
      %666 = vmatprep.subr.bf16.mxu0 0
      %667 = vmatpush1.bf16.msra.mxu0 0
      %668 = vmatprep.subr.bf16.mxu0 0
      %669 = vmatpush1.bf16.msra.mxu0 0
      %670 = vmatprep.subr.bf16.mxu0 0
      %671 = vmatpush1.bf16.msra.mxu0 0
      %672 = vmatprep.subr.bf16.mxu0 0
      %673 = vmatpush1.bf16.msra.mxu0 0
      %674 = vmatprep.subr.bf16.mxu0 0
      %675 = vmatpush1.bf16.msra.mxu0 0
      %676 = vmatprep.subr.bf16.mxu0 0
      %677 = vmatpush1.bf16.msra.mxu0 0
      %678 = vmatprep.subr.bf16.mxu0 0
      %679 = vmatpush1.bf16.msra.mxu0 0
      %680 = vmatprep.subr.bf16.mxu0 0
      %681 = vmatpush1.bf16.msra.mxu0 0
      %682 = vmatprep.subr.bf16.mxu0 0
      %683 = vmatpush1.bf16.msra.mxu0 0
      %684 = vmatprep.subr.bf16.mxu0 0
      %685 = vmatpush1.bf16.msra.mxu0 0
      %686 = vmatprep.subr.bf16.mxu0 0
      %687 = vmatpush1.bf16.msra.mxu0 0
      %688 = vmatprep.subr.bf16.mxu0 0
      %689 = vmatpush1.bf16.msra.mxu0 0
      %690 = vmatprep.subr.bf16.mxu0 0
      %691 = vmatpush1.bf16.msra.mxu0 0
      %692 = vmatprep.subr.bf16.mxu0 0
      %693 = vmatpush1.bf16.msra.mxu0 0
      %694 = vmatprep.mubr.bf16.mxu0 0
      %695 = vmatmul.mubr.bf16.gmra.mrb[0].mxu0 %v322
      %v696 = vpop.f32.mrb[0].mxu0
      %v697 = vadd.f32 0.0, %v696
      %v698 = vpop.f32.mrb[0].mxu0
      %v699 = vpop.f32.mrb[0].mxu0
      %v700 = vpop.f32.mrb[0].mxu0
      %701 = vdwg.mxu0
      %s702 = scalar_lea.vmem %s3, 16
      %v703 = vld [vmem:[%s702] sm:$0xf]
      %v704 = vld [vmem:[%s702 + $0x4] sm:$0xf]
      %v705 = vld [vmem:[%s702 + $0x8] sm:$0xf]
      %v706 = vld [vmem:[%s702 + $0xc] sm:$0xf]
      %v711 = vunpack.c.l.b16 %v703
      %v712 = vunpack.c.l.b16 %v704
      %v713 = vunpack.c.l.b16 %v705
      %v714 = vunpack.c.l.b16 %v706
      %v715 = vpack.c.b16 %v712, %v711
      %v716 = vpack.c.b16 %v714, %v713
      %719 = vmatprep.subr.bf16.mxu0 0
      %720 = vmatpush1.bf16.msra.mxu0 %v715
      %721 = vmatprep.subr.bf16.mxu0 0
      %722 = vmatpush1.bf16.msra.mxu0 %v716
      %723 = vmatprep.subr.bf16.mxu0 0
      %724 = vmatpush1.bf16.msra.mxu0 0
      %725 = vmatprep.subr.bf16.mxu0 0
      %726 = vmatpush1.bf16.msra.mxu0 0
      %727 = vmatprep.subr.bf16.mxu0 0
      %728 = vmatpush1.bf16.msra.mxu0 0
      %729 = vmatprep.subr.bf16.mxu0 0
      %730 = vmatpush1.bf16.msra.mxu0 0
      %731 = vmatprep.subr.bf16.mxu0 0
      %732 = vmatpush1.bf16.msra.mxu0 0
      %733 = vmatprep.subr.bf16.mxu0 0
      %734 = vmatpush1.bf16.msra.mxu0 0
      %735 = vmatprep.subr.bf16.mxu0 0
      %736 = vmatpush1.bf16.msra.mxu0 0
      %737 = vmatprep.subr.bf16.mxu0 0
      %738 = vmatpush1.bf16.msra.mxu0 0
      %739 = vmatprep.subr.bf16.mxu0 0
      %740 = vmatpush1.bf16.msra.mxu0 0
      %741 = vmatprep.subr.bf16.mxu0 0
      %742 = vmatpush1.bf16.msra.mxu0 0
      %743 = vmatprep.subr.bf16.mxu0 0
      %744 = vmatpush1.bf16.msra.mxu0 0
      %745 = vmatprep.subr.bf16.mxu0 0
      %746 = vmatpush1.bf16.msra.mxu0 0
      %747 = vmatprep.subr.bf16.mxu0 0
      %748 = vmatpush1.bf16.msra.mxu0 0
      %749 = vmatprep.subr.bf16.mxu0 0
      %750 = vmatpush1.bf16.msra.mxu0 0
      %751 = vmatprep.mubr.bf16.mxu0 0
      %752 = vmatmul.mubr.bf16.gmra.mrb[0].mxu0 %v322
      %v753 = vpop.f32.mrb[0].mxu0
      %v754 = vadd.f32 0.0, %v753
      %v755 = vpop.f32.mrb[0].mxu0
      %v756 = vpop.f32.mrb[0].mxu0
      %v757 = vpop.f32.mrb[0].mxu0
      %758 = vdwg.mxu0
      %v759 = vpack.c.bf16 %v640, %v640
      %v760 = vpack.c.bf16 %v697, %v697
      %v762 = vsel %vm478, %v759, 0
      %v765 = vsel %vm478, %v760, 0
      %767 = vmatprep.subr.bf16.mxu0 0
      %768 = vmatpush1.bf16.xpose.msra.mxu0 %v765
      %769 = vmatprep.subr.bf16.mxu0 0
      %770 = vmatpush1.bf16.xpose.msra.mxu0 0
      %771 = vmatprep.subr.bf16.mxu0 0
      %772 = vmatpush1.bf16.xpose.msra.mxu0 0
      %773 = vmatprep.subr.bf16.mxu0 0
      %774 = vmatpush1.bf16.xpose.msra.mxu0 0
      %775 = vmatprep.subr.bf16.mxu0 0
      %776 = vmatpush1.bf16.xpose.msra.mxu0 0
      %777 = vmatprep.subr.bf16.mxu0 0
      %778 = vmatpush1.bf16.xpose.msra.mxu0 0
      %779 = vmatprep.subr.bf16.mxu0 0
      %780 = vmatpush1.bf16.xpose.msra.mxu0 0
      %781 = vmatprep.subr.bf16.mxu0 0
      %782 = vmatpush1.bf16.xpose.msra.mxu0 0
      %783 = vmatprep.subr.bf16.mxu0 0
      %784 = vmatpush1.bf16.xpose.msra.mxu0 0
      %785 = vmatprep.subr.bf16.mxu0 0
      %786 = vmatpush1.bf16.xpose.msra.mxu0 0
      %787 = vmatprep.subr.bf16.mxu0 0
      %788 = vmatpush1.bf16.xpose.msra.mxu0 0
      %789 = vmatprep.subr.bf16.mxu0 0
      %790 = vmatpush1.bf16.xpose.msra.mxu0 0
      %791 = vmatprep.subr.bf16.mxu0 0
      %792 = vmatpush1.bf16.xpose.msra.mxu0 0
      %793 = vmatprep.subr.bf16.mxu0 0
      %794 = vmatpush1.bf16.xpose.msra.mxu0 0
      %795 = vmatprep.subr.bf16.mxu0 0
      %796 = vmatpush1.bf16.xpose.msra.mxu0 0
      %797 = vmatprep.subr.bf16.mxu0 0
      %798 = vmatpush1.bf16.xpose.msra.mxu0 0
      %799 = vmatprep.mubr.bf16.mxu0 0
      %800 = vmatmul.mubr.bf16.gmra.mrb[0].mxu0 %v762
      %v801 = vpop.f32.mrb[0].mxu0
      %v802 = vadd.f32 0.0, %v801
      %v803 = vpop.f32.mrb[0].mxu0
      %v804 = vpop.f32.mrb[0].mxu0
      %v805 = vpop.f32.mrb[0].mxu0
      %806 = vdwg.mxu0
      %v807 = vmul.f32 %v802, 0.35355338
      %v808 = vsel %vm478, %v807, -inf
      %809 = vmax.xlane.f32.xlu0 %v808
      %v810 = vpop.xlane.xlu0 %809
      %v811 = vsub.f32 %v807, %v810
      %v812 = vmul.f32 %v811, 1.442695
      %v813 = vpow.pop %v812
      %v814 = vsel %vm478, %v813, 0.0
      %815 = vadd.xlane.f32.xlu0 %v814
      %v816 = vpop.xlane.xlu0 %815
      %v817 = vrcp.pop %v816
      %v818 = vmul.f32 %v813, %v817
      %v819 = vpack.c.bf16 %v818, %v818
      %v820 = vpack.c.bf16 %v754, %v754
      %v822 = vsel %vm478, %v819, 0
      %v825 = vsel %vm542, %v820, 0
      %827 = vmatprep.subr.bf16.mxu0 0
      %828 = vmatpush1.bf16.msra.mxu0 %v825
      %829 = vmatprep.subr.bf16.mxu0 0
      %830 = vmatpush1.bf16.msra.mxu0 0
      %831 = vmatprep.subr.bf16.mxu0 0
      %832 = vmatpush1.bf16.msra.mxu0 0
      %833 = vmatprep.subr.bf16.mxu0 0
      %834 = vmatpush1.bf16.msra.mxu0 0
      %835 = vmatprep.subr.bf16.mxu0 0
      %836 = vmatpush1.bf16.msra.mxu0 0
      %837 = vmatprep.subr.bf16.mxu0 0
      %838 = vmatpush1.bf16.msra.mxu0 0
      %839 = vmatprep.subr.bf16.mxu0 0
      %840 = vmatpush1.bf16.msra.mxu0 0
      %841 = vmatprep.subr.bf16.mxu0 0
      %842 = vmatpush1.bf16.msra.mxu0 0
      %843 = vmatprep.subr.bf16.mxu0 0
      %844 = vmatpush1.bf16.msra.mxu0 0
      %845 = vmatprep.subr.bf16.mxu0 0
      %846 = vmatpush1.bf16.msra.mxu0 0
      %847 = vmatprep.subr.bf16.mxu0 0
      %848 = vmatpush1.bf16.msra.mxu0 0
      %849 = vmatprep.subr.bf16.mxu0 0
      %850 = vmatpush1.bf16.msra.mxu0 0
      %851 = vmatprep.subr.bf16.mxu0 0
      %852 = vmatpush1.bf16.msra.mxu0 0
      %853 = vmatprep.subr.bf16.mxu0 0
      %854 = vmatpush1.bf16.msra.mxu0 0
      %855 = vmatprep.subr.bf16.mxu0 0
      %856 = vmatpush1.bf16.msra.mxu0 0
      %857 = vmatprep.subr.bf16.mxu0 0
      %858 = vmatpush1.bf16.msra.mxu0 0
      %859 = vmatprep.mubr.bf16.mxu0 0
      %860 = vmatmul.mubr.bf16.gmra.mrb[0].mxu0 %v822
      %v861 = vpop.f32.mrb[0].mxu0
      %v862 = vadd.f32 0.0, %v861
      %v863 = vpop.f32.mrb[0].mxu0
      %v864 = vpop.f32.mrb[0].mxu0
      %v865 = vpop.f32.mrb[0].mxu0
      %866 = vdwg.mxu0
      %v867 = vpack.c.bf16 %v862, %v862
      %s868 = scalar_lea.vmem %s4, 4
      %v869 = vld [vmem:[%s868] sm:$0xf]
      %v871 = vsel %vm478, %v867, 0
      %v874 = vsel %vm542, %v869, 0
      %876 = vmatprep.subr.bf16.mxu0 0
      %877 = vmatpush1.bf16.msra.mxu0 %v874
      %878 = vmatprep.subr.bf16.mxu0 0
      %879 = vmatpush1.bf16.msra.mxu0 0
      %880 = vmatprep.subr.bf16.mxu0 0
      %881 = vmatpush1.bf16.msra.mxu0 0
      %882 = vmatprep.subr.bf16.mxu0 0
      %883 = vmatpush1.bf16.msra.mxu0 0
      %884 = vmatprep.subr.bf16.mxu0 0
      %885 = vmatpush1.bf16.msra.mxu0 0
      %886 = vmatprep.subr.bf16.mxu0 0
      %887 = vmatpush1.bf16.msra.mxu0 0
      %888 = vmatprep.subr.bf16.mxu0 0
      %889 = vmatpush1.bf16.msra.mxu0 0
      %890 = vmatprep.subr.bf16.mxu0 0
      %891 = vmatpush1.bf16.msra.mxu0 0
      %892 = vmatprep.subr.bf16.mxu0 0
      %893 = vmatpush1.bf16.msra.mxu0 0
      %894 = vmatprep.subr.bf16.mxu0 0
      %895 = vmatpush1.bf16.msra.mxu0 0
      %896 = vmatprep.subr.bf16.mxu0 0
      %897 = vmatpush1.bf16.msra.mxu0 0
      %898 = vmatprep.subr.bf16.mxu0 0
      %899 = vmatpush1.bf16.msra.mxu0 0
      %900 = vmatprep.subr.bf16.mxu0 0
      %901 = vmatpush1.bf16.msra.mxu0 0
      %902 = vmatprep.subr.bf16.mxu0 0
      %903 = vmatpush1.bf16.msra.mxu0 0
      %904 = vmatprep.subr.bf16.mxu0 0
      %905 = vmatpush1.bf16.msra.mxu0 0
      %906 = vmatprep.subr.bf16.mxu0 0
      %907 = vmatpush1.bf16.msra.mxu0 0
      %908 = vmatprep.mubr.bf16.mxu0 0
      %909 = vmatmul.mubr.bf16.gmra.mrb[0].mxu0 %v871
      %v910 = vpop.f32.mrb[0].mxu0
      %v911 = vadd.f32 0.0, %v910
      %v912 = vpop.f32.mrb[0].mxu0
      %v913 = vpop.f32.mrb[0].mxu0
      %v914 = vpop.f32.mrb[0].mxu0
      %915 = vdwg.mxu0
      %v917 = vsel %vm478, %v586, 0
      %v920 = vsel %vm542, %v587, 0
      %922 = vmatprep.subr.bf16.mxu0 0
      %923 = vmatpush1.bf16.msra.mxu0 %v920
      %924 = vmatprep.subr.bf16.mxu0 0
      %925 = vmatpush1.bf16.msra.mxu0 0
      %926 = vmatprep.subr.bf16.mxu0 0
      %927 = vmatpush1.bf16.msra.mxu0 0
      %928 = vmatprep.subr.bf16.mxu0 0
      %929 = vmatpush1.bf16.msra.mxu0 0
      %930 = vmatprep.subr.bf16.mxu0 0
      %931 = vmatpush1.bf16.msra.mxu0 0
      %932 = vmatprep.subr.bf16.mxu0 0
      %933 = vmatpush1.bf16.msra.mxu0 0
      %934 = vmatprep.subr.bf16.mxu0 0
      %935 = vmatpush1.bf16.msra.mxu0 0
      %936 = vmatprep.subr.bf16.mxu0 0
      %937 = vmatpush1.bf16.msra.mxu0 0
      %938 = vmatprep.subr.bf16.mxu0 0
      %939 = vmatpush1.bf16.msra.mxu0 0
      %940 = vmatprep.subr.bf16.mxu0 0
      %941 = vmatpush1.bf16.msra.mxu0 0
      %942 = vmatprep.subr.bf16.mxu0 0
      %943 = vmatpush1.bf16.msra.mxu0 0
      %944 = vmatprep.subr.bf16.mxu0 0
      %945 = vmatpush1.bf16.msra.mxu0 0
      %946 = vmatprep.subr.bf16.mxu0 0
      %947 = vmatpush1.bf16.msra.mxu0 0
      %948 = vmatprep.subr.bf16.mxu0 0
      %949 = vmatpush1.bf16.msra.mxu0 0
      %950 = vmatprep.subr.bf16.mxu0 0
      %951 = vmatpush1.bf16.msra.mxu0 0
      %952 = vmatprep.subr.bf16.mxu0 0
      %953 = vmatpush1.bf16.msra.mxu0 0
      %954 = vmatprep.mubr.bf16.mxu0 0
      %955 = vmatmul.mubr.bf16.gmra.mrb[0].mxu0 %v917
      %v956 = vpop.f32.mrb[0].mxu0
      %v957 = vadd.f32 %v911, %v956
      %v958 = vpop.f32.mrb[0].mxu0
      %v959 = vpop.f32.mrb[0].mxu0
      %v960 = vpop.f32.mrb[0].mxu0
      %961 = vdwg.mxu0
      %s962 = scalar_lea.vmem %s1, 32
      %v963 = vld [vmem:[%s962] sm:$0xf]
      %v964 = vld [vmem:[%s962 + $0x4] sm:$0xf]
      %v965 = vld [vmem:[%s962 + $0x8] sm:$0xf]
      %v966 = vld [vmem:[%s962 + $0xc] sm:$0xf]
      %v971 = vunpack.c.l.b16 %v963
      %v972 = vunpack.c.l.b16 %v964
      %v973 = vunpack.c.l.b16 %v965
      %v974 = vunpack.c.l.b16 %v966
      %v975 = vpack.c.b16 %v972, %v971
      %v976 = vpack.c.b16 %v974, %v973
      %979 = vmatprep.subr.bf16.mxu0 0
      %980 = vmatpush1.bf16.msra.mxu0 %v975
      %981 = vmatprep.subr.bf16.mxu0 0
      %982 = vmatpush1.bf16.msra.mxu0 %v976
      %983 = vmatprep.subr.bf16.mxu0 0
      %984 = vmatpush1.bf16.msra.mxu0 0
      %985 = vmatprep.subr.bf16.mxu0 0
      %986 = vmatpush1.bf16.msra.mxu0 0
      %987 = vmatprep.subr.bf16.mxu0 0
      %988 = vmatpush1.bf16.msra.mxu0 0
      %989 = vmatprep.subr.bf16.mxu0 0
      %990 = vmatpush1.bf16.msra.mxu0 0
      %991 = vmatprep.subr.bf16.mxu0 0
      %992 = vmatpush1.bf16.msra.mxu0 0
      %993 = vmatprep.subr.bf16.mxu0 0
      %994 = vmatpush1.bf16.msra.mxu0 0
      %995 = vmatprep.subr.bf16.mxu0 0
      %996 = vmatpush1.bf16.msra.mxu0 0
      %997 = vmatprep.subr.bf16.mxu0 0
      %998 = vmatpush1.bf16.msra.mxu0 0
      %999 = vmatprep.subr.bf16.mxu0 0
      %1000 = vmatpush1.bf16.msra.mxu0 0
      %1001 = vmatprep.subr.bf16.mxu0 0
      %1002 = vmatpush1.bf16.msra.mxu0 0
      %1003 = vmatprep.subr.bf16.mxu0 0
      %1004 = vmatpush1.bf16.msra.mxu0 0
      %1005 = vmatprep.subr.bf16.mxu0 0
      %1006 = vmatpush1.bf16.msra.mxu0 0
      %1007 = vmatprep.subr.bf16.mxu0 0
      %1008 = vmatpush1.bf16.msra.mxu0 0
      %1009 = vmatprep.subr.bf16.mxu0 0
      %1010 = vmatpush1.bf16.msra.mxu0 0
      %1011 = vmatprep.mubr.bf16.mxu0 0
      %1012 = vmatmul.mubr.bf16.gmra.mrb[0].mxu0 %v322
      %v1013 = vpop.f32.mrb[0].mxu0
      %v1014 = vadd.f32 0.0, %v1013
      %v1015 = vpop.f32.mrb[0].mxu0
      %v1016 = vpop.f32.mrb[0].mxu0
      %v1017 = vpop.f32.mrb[0].mxu0
      %1018 = vdwg.mxu0
      %s1019 = scalar_lea.vmem %s2, 32
      %v1020 = vld [vmem:[%s1019] sm:$0xf]
      %v1021 = vld [vmem:[%s1019 + $0x4] sm:$0xf]
      %v1022 = vld [vmem:[%s1019 + $0x8] sm:$0xf]
      %v1023 = vld [vmem:[%s1019 + $0xc] sm:$0xf]
      %v1028 = vunpack.c.l.b16 %v1020
      %v1029 = vunpack.c.l.b16 %v1021
      %v1030 = vunpack.c.l.b16 %v1022
      %v1031 = vunpack.c.l.b16 %v1023
      %v1032 = vpack.c.b16 %v1029, %v1028
      %v1033 = vpack.c.b16 %v1031, %v1030
      %1036 = vmatprep.subr.bf16.mxu0 0
      %1037 = vmatpush1.bf16.msra.mxu0 %v1032
      %1038 = vmatprep.subr.bf16.mxu0 0
      %1039 = vmatpush1.bf16.msra.mxu0 %v1033
      %1040 = vmatprep.subr.bf16.mxu0 0
      %1041 = vmatpush1.bf16.msra.mxu0 0
      %1042 = vmatprep.subr.bf16.mxu0 0
      %1043 = vmatpush1.bf16.msra.mxu0 0
      %1044 = vmatprep.subr.bf16.mxu0 0
      %1045 = vmatpush1.bf16.msra.mxu0 0
      %1046 = vmatprep.subr.bf16.mxu0 0
      %1047 = vmatpush1.bf16.msra.mxu0 0
      %1048 = vmatprep.subr.bf16.mxu0 0
      %1049 = vmatpush1.bf16.msra.mxu0 0
      %1050 = vmatprep.subr.bf16.mxu0 0
      %1051 = vmatpush1.bf16.msra.mxu0 0
      %1052 = vmatprep.subr.bf16.mxu0 0
      %1053 = vmatpush1.bf16.msra.mxu0 0
      %1054 = vmatprep.subr.bf16.mxu0 0
      %1055 = vmatpush1.bf16.msra.mxu0 0
      %1056 = vmatprep.subr.bf16.mxu0 0
      %1057 = vmatpush1.bf16.msra.mxu0 0
      %1058 = vmatprep.subr.bf16.mxu0 0
      %1059 = vmatpush1.bf16.msra.mxu0 0
      %1060 = vmatprep.subr.bf16.mxu0 0
      %1061 = vmatpush1.bf16.msra.mxu0 0
      %1062 = vmatprep.subr.bf16.mxu0 0
      %1063 = vmatpush1.bf16.msra.mxu0 0
      %1064 = vmatprep.subr.bf16.mxu0 0
      %1065 = vmatpush1.bf16.msra.mxu0 0
      %1066 = vmatprep.subr.bf16.mxu0 0
      %1067 = vmatpush1.bf16.msra.mxu0 0
      %1068 = vmatprep.mubr.bf16.mxu0 0
      %1069 = vmatmul.mubr.bf16.gmra.mrb[0].mxu0 %v322
      %v1070 = vpop.f32.mrb[0].mxu0
      %v1071 = vadd.f32 0.0, %v1070
      %v1072 = vpop.f32.mrb[0].mxu0
      %v1073 = vpop.f32.mrb[0].mxu0
      %v1074 = vpop.f32.mrb[0].mxu0
      %1075 = vdwg.mxu0
      %s1076 = scalar_lea.vmem %s3, 32
      %v1077 = vld [vmem:[%s1076] sm:$0xf]
      %v1078 = vld [vmem:[%s1076 + $0x4] sm:$0xf]
      %v1079 = vld [vmem:[%s1076 + $0x8] sm:$0xf]
      %v1080 = vld [vmem:[%s1076 + $0xc] sm:$0xf]
      %v1085 = vunpack.c.l.b16 %v1077
      %v1086 = vunpack.c.l.b16 %v1078
      %v1087 = vunpack.c.l.b16 %v1079
      %v1088 = vunpack.c.l.b16 %v1080
      %v1089 = vpack.c.b16 %v1086, %v1085
      %v1090 = vpack.c.b16 %v1088, %v1087
      %1093 = vmatprep.subr.bf16.mxu0 0
      %1094 = vmatpush1.bf16.msra.mxu0 %v1089
      %1095 = vmatprep.subr.bf16.mxu0 0
      %1096 = vmatpush1.bf16.msra.mxu0 %v1090
      %1097 = vmatprep.subr.bf16.mxu0 0
      %1098 = vmatpush1.bf16.msra.mxu0 0
      %1099 = vmatprep.subr.bf16.mxu0 0
      %1100 = vmatpush1.bf16.msra.mxu0 0
      %1101 = vmatprep.subr.bf16.mxu0 0
      %1102 = vmatpush1.bf16.msra.mxu0 0
      %1103 = vmatprep.subr.bf16.mxu0 0
      %1104 = vmatpush1.bf16.msra.mxu0 0
      %1105 = vmatprep.subr.bf16.mxu0 0
      %1106 = vmatpush1.bf16.msra.mxu0 0
      %1107 = vmatprep.subr.bf16.mxu0 0
      %1108 = vmatpush1.bf16.msra.mxu0 0
      %1109 = vmatprep.subr.bf16.mxu0 0
      %1110 = vmatpush1.bf16.msra.mxu0 0
      %1111 = vmatprep.subr.bf16.mxu0 0
      %1112 = vmatpush1.bf16.msra.mxu0 0
      %1113 = vmatprep.subr.bf16.mxu0 0
      %1114 = vmatpush1.bf16.msra.mxu0 0
      %1115 = vmatprep.subr.bf16.mxu0 0
      %1116 = vmatpush1.bf16.msra.mxu0 0
      %1117 = vmatprep.subr.bf16.mxu0 0
      %1118 = vmatpush1.bf16.msra.mxu0 0
      %1119 = vmatprep.subr.bf16.mxu0 0
      %1120 = vmatpush1.bf16.msra.mxu0 0
      %1121 = vmatprep.subr.bf16.mxu0 0
      %1122 = vmatpush1.bf16.msra.mxu0 0
      %1123 = vmatprep.subr.bf16.mxu0 0
      %1124 = vmatpush1.bf16.msra.mxu0 0
      %1125 = vmatprep.mubr.bf16.mxu0 0
      %1126 = vmatmul.mubr.bf16.gmra.mrb[0].mxu0 %v322
      %v1127 = vpop.f32.mrb[0].mxu0
      %v1128 = vadd.f32 0.0, %v1127
      %v1129 = vpop.f32.mrb[0].mxu0
      %v1130 = vpop.f32.mrb[0].mxu0
      %v1131 = vpop.f32.mrb[0].mxu0
      %1132 = vdwg.mxu0
      %v1133 = vpack.c.bf16 %v1014, %v1014
      %v1134 = vpack.c.bf16 %v1071, %v1071
      %v1136 = vsel %vm478, %v1133, 0
      %v1139 = vsel %vm478, %v1134, 0
      %1141 = vmatprep.subr.bf16.mxu0 0
      %1142 = vmatpush1.bf16.xpose.msra.mxu0 %v1139
      %1143 = vmatprep.subr.bf16.mxu0 0
      %1144 = vmatpush1.bf16.xpose.msra.mxu0 0
      %1145 = vmatprep.subr.bf16.mxu0 0
      %1146 = vmatpush1.bf16.xpose.msra.mxu0 0
      %1147 = vmatprep.subr.bf16.mxu0 0
      %1148 = vmatpush1.bf16.xpose.msra.mxu0 0
      %1149 = vmatprep.subr.bf16.mxu0 0
      %1150 = vmatpush1.bf16.xpose.msra.mxu0 0
      %1151 = vmatprep.subr.bf16.mxu0 0
      %1152 = vmatpush1.bf16.xpose.msra.mxu0 0
      %1153 = vmatprep.subr.bf16.mxu0 0
      %1154 = vmatpush1.bf16.xpose.msra.mxu0 0
      %1155 = vmatprep.subr.bf16.mxu0 0
      %1156 = vmatpush1.bf16.xpose.msra.mxu0 0
      %1157 = vmatprep.subr.bf16.mxu0 0
      %1158 = vmatpush1.bf16.xpose.msra.mxu0 0
      %1159 = vmatprep.subr.bf16.mxu0 0
      %1160 = vmatpush1.bf16.xpose.msra.mxu0 0
      %1161 = vmatprep.subr.bf16.mxu0 0
      %1162 = vmatpush1.bf16.xpose.msra.mxu0 0
      %1163 = vmatprep.subr.bf16.mxu0 0
      %1164 = vmatpush1.bf16.xpose.msra.mxu0 0
      %1165 = vmatprep.subr.bf16.mxu0 0
      %1166 = vmatpush1.bf16.xpose.msra.mxu0 0
      %1167 = vmatprep.subr.bf16.mxu0 0
      %1168 = vmatpush1.bf16.xpose.msra.mxu0 0
      %1169 = vmatprep.subr.bf16.mxu0 0
      %1170 = vmatpush1.bf16.xpose.msra.mxu0 0
      %1171 = vmatprep.subr.bf16.mxu0 0
      %1172 = vmatpush1.bf16.xpose.msra.mxu0 0
      %1173 = vmatprep.mubr.bf16.mxu0 0
      %1174 = vmatmul.mubr.bf16.gmra.mrb[0].mxu0 %v1136
      %v1175 = vpop.f32.mrb[0].mxu0
      %v1176 = vadd.f32 0.0, %v1175
      %v1177 = vpop.f32.mrb[0].mxu0
      %v1178 = vpop.f32.mrb[0].mxu0
      %v1179 = vpop.f32.mrb[0].mxu0
      %1180 = vdwg.mxu0
      %v1181 = vmul.f32 %v1176, 0.35355338
      %v1182 = vsel %vm478, %v1181, -inf
      %1183 = vmax.xlane.f32.xlu0 %v1182
      %v1184 = vpop.xlane.xlu0 %1183
      %v1185 = vsub.f32 %v1181, %v1184
      %v1186 = vmul.f32 %v1185, 1.442695
      %v1187 = vpow.pop %v1186
      %v1188 = vsel %vm478, %v1187, 0.0
      %1189 = vadd.xlane.f32.xlu0 %v1188
      %v1190 = vpop.xlane.xlu0 %1189
      %v1191 = vrcp.pop %v1190
      %v1192 = vmul.f32 %v1187, %v1191
      %v1193 = vpack.c.bf16 %v1192, %v1192
      %v1194 = vpack.c.bf16 %v1128, %v1128
      %v1196 = vsel %vm478, %v1193, 0
      %v1199 = vsel %vm542, %v1194, 0
      %1201 = vmatprep.subr.bf16.mxu0 0
      %1202 = vmatpush1.bf16.msra.mxu0 %v1199
      %1203 = vmatprep.subr.bf16.mxu0 0
      %1204 = vmatpush1.bf16.msra.mxu0 0
      %1205 = vmatprep.subr.bf16.mxu0 0
      %1206 = vmatpush1.bf16.msra.mxu0 0
      %1207 = vmatprep.subr.bf16.mxu0 0
      %1208 = vmatpush1.bf16.msra.mxu0 0
      %1209 = vmatprep.subr.bf16.mxu0 0
      %1210 = vmatpush1.bf16.msra.mxu0 0
      %1211 = vmatprep.subr.bf16.mxu0 0
      %1212 = vmatpush1.bf16.msra.mxu0 0
      %1213 = vmatprep.subr.bf16.mxu0 0
      %1214 = vmatpush1.bf16.msra.mxu0 0
      %1215 = vmatprep.subr.bf16.mxu0 0
      %1216 = vmatpush1.bf16.msra.mxu0 0
      %1217 = vmatprep.subr.bf16.mxu0 0
      %1218 = vmatpush1.bf16.msra.mxu0 0
      %1219 = vmatprep.subr.bf16.mxu0 0
      %1220 = vmatpush1.bf16.msra.mxu0 0
      %1221 = vmatprep.subr.bf16.mxu0 0
      %1222 = vmatpush1.bf16.msra.mxu0 0
      %1223 = vmatprep.subr.bf16.mxu0 0
      %1224 = vmatpush1.bf16.msra.mxu0 0
      %1225 = vmatprep.subr.bf16.mxu0 0
      %1226 = vmatpush1.bf16.msra.mxu0 0
      %1227 = vmatprep.subr.bf16.mxu0 0
      %1228 = vmatpush1.bf16.msra.mxu0 0
      %1229 = vmatprep.subr.bf16.mxu0 0
      %1230 = vmatpush1.bf16.msra.mxu0 0
      %1231 = vmatprep.subr.bf16.mxu0 0
      %1232 = vmatpush1.bf16.msra.mxu0 0
      %1233 = vmatprep.mubr.bf16.mxu0 0
      %1234 = vmatmul.mubr.bf16.gmra.mrb[0].mxu0 %v1196
      %v1235 = vpop.f32.mrb[0].mxu0
      %v1236 = vadd.f32 0.0, %v1235
      %v1237 = vpop.f32.mrb[0].mxu0
      %v1238 = vpop.f32.mrb[0].mxu0
      %v1239 = vpop.f32.mrb[0].mxu0
      %1240 = vdwg.mxu0
      %v1241 = vpack.c.bf16 %v1236, %v1236
      %s1242 = scalar_lea.vmem %s4, 8
      %v1243 = vld [vmem:[%s1242] sm:$0xf]
      %v1245 = vsel %vm478, %v1241, 0
      %v1248 = vsel %vm542, %v1243, 0
      %1250 = vmatprep.subr.bf16.mxu0 0
      %1251 = vmatpush1.bf16.msra.mxu0 %v1248
      %1252 = vmatprep.subr.bf16.mxu0 0
      %1253 = vmatpush1.bf16.msra.mxu0 0
      %1254 = vmatprep.subr.bf16.mxu0 0
      %1255 = vmatpush1.bf16.msra.mxu0 0
      %1256 = vmatprep.subr.bf16.mxu0 0
      %1257 = vmatpush1.bf16.msra.mxu0 0
      %1258 = vmatprep.subr.bf16.mxu0 0
      %1259 = vmatpush1.bf16.msra.mxu0 0
      %1260 = vmatprep.subr.bf16.mxu0 0
      %1261 = vmatpush1.bf16.msra.mxu0 0
      %1262 = vmatprep.subr.bf16.mxu0 0
      %1263 = vmatpush1.bf16.msra.mxu0 0
      %1264 = vmatprep.subr.bf16.mxu0 0
      %1265 = vmatpush1.bf16.msra.mxu0 0
      %1266 = vmatprep.subr.bf16.mxu0 0
      %1267 = vmatpush1.bf16.msra.mxu0 0
      %1268 = vmatprep.subr.bf16.mxu0 0
      %1269 = vmatpush1.bf16.msra.mxu0 0
      %1270 = vmatprep.subr.bf16.mxu0 0
      %1271 = vmatpush1.bf16.msra.mxu0 0
      %1272 = vmatprep.subr.bf16.mxu0 0
      %1273 = vmatpush1.bf16.msra.mxu0 0
      %1274 = vmatprep.subr.bf16.mxu0 0
      %1275 = vmatpush1.bf16.msra.mxu0 0
      %1276 = vmatprep.subr.bf16.mxu0 0
      %1277 = vmatpush1.bf16.msra.mxu0 0
      %1278 = vmatprep.subr.bf16.mxu0 0
      %1279 = vmatpush1.bf16.msra.mxu0 0
      %1280 = vmatprep.subr.bf16.mxu0 0
      %1281 = vmatpush1.bf16.msra.mxu0 0
      %1282 = vmatprep.mubr.bf16.mxu0 0
      %1283 = vmatmul.mubr.bf16.gmra.mrb[0].mxu0 %v1245
      %v1284 = vpop.f32.mrb[0].mxu0
      %v1285 = vadd.f32 0.0, %v1284
      %v1286 = vpop.f32.mrb[0].mxu0
      %v1287 = vpop.f32.mrb[0].mxu0
      %v1288 = vpop.f32.mrb[0].mxu0
      %1289 = vdwg.mxu0
      %v1290 = vadd.f32 %v957, %v1285
      %s1291 = scalar_lea.vmem %s1, 48
      %v1292 = vld [vmem:[%s1291] sm:$0xf]
      %v1293 = vld [vmem:[%s1291 + $0x4] sm:$0xf]
      %v1294 = vld [vmem:[%s1291 + $0x8] sm:$0xf]
      %v1295 = vld [vmem:[%s1291 + $0xc] sm:$0xf]
      %v1300 = vunpack.c.l.b16 %v1292
      %v1301 = vunpack.c.l.b16 %v1293
      %v1302 = vunpack.c.l.b16 %v1294
      %v1303 = vunpack.c.l.b16 %v1295
      %v1304 = vpack.c.b16 %v1301, %v1300
      %v1305 = vpack.c.b16 %v1303, %v1302
      %1308 = vmatprep.subr.bf16.mxu0 0
      %1309 = vmatpush1.bf16.msra.mxu0 %v1304
      %1310 = vmatprep.subr.bf16.mxu0 0
      %1311 = vmatpush1.bf16.msra.mxu0 %v1305
      %1312 = vmatprep.subr.bf16.mxu0 0
      %1313 = vmatpush1.bf16.msra.mxu0 0
      %1314 = vmatprep.subr.bf16.mxu0 0
      %1315 = vmatpush1.bf16.msra.mxu0 0
      %1316 = vmatprep.subr.bf16.mxu0 0
      %1317 = vmatpush1.bf16.msra.mxu0 0
      %1318 = vmatprep.subr.bf16.mxu0 0
      %1319 = vmatpush1.bf16.msra.mxu0 0
      %1320 = vmatprep.subr.bf16.mxu0 0
      %1321 = vmatpush1.bf16.msra.mxu0 0
      %1322 = vmatprep.subr.bf16.mxu0 0
      %1323 = vmatpush1.bf16.msra.mxu0 0
      %1324 = vmatprep.subr.bf16.mxu0 0
      %1325 = vmatpush1.bf16.msra.mxu0 0
      %1326 = vmatprep.subr.bf16.mxu0 0
      %1327 = vmatpush1.bf16.msra.mxu0 0
      %1328 = vmatprep.subr.bf16.mxu0 0
      %1329 = vmatpush1.bf16.msra.mxu0 0
      %1330 = vmatprep.subr.bf16.mxu0 0
      %1331 = vmatpush1.bf16.msra.mxu0 0
      %1332 = vmatprep.subr.bf16.mxu0 0
      %1333 = vmatpush1.bf16.msra.mxu0 0
      %1334 = vmatprep.subr.bf16.mxu0 0
      %1335 = vmatpush1.bf16.msra.mxu0 0
      %1336 = vmatprep.subr.bf16.mxu0 0
      %1337 = vmatpush1.bf16.msra.mxu0 0
      %1338 = vmatprep.subr.bf16.mxu0 0
      %1339 = vmatpush1.bf16.msra.mxu0 0
      %1340 = vmatprep.mubr.bf16.mxu0 0
      %1341 = vmatmul.mubr.bf16.gmra.mrb[0].mxu0 %v322
      %v1342 = vpop.f32.mrb[0].mxu0
      %v1343 = vadd.f32 0.0, %v1342
      %v1344 = vpop.f32.mrb[0].mxu0
      %v1345 = vpop.f32.mrb[0].mxu0
      %v1346 = vpop.f32.mrb[0].mxu0
      %1347 = vdwg.mxu0
      %s1348 = scalar_lea.vmem %s2, 48
      %v1349 = vld [vmem:[%s1348] sm:$0xf]
      %v1350 = vld [vmem:[%s1348 + $0x4] sm:$0xf]
      %v1351 = vld [vmem:[%s1348 + $0x8] sm:$0xf]
      %v1352 = vld [vmem:[%s1348 + $0xc] sm:$0xf]
      %v1357 = vunpack.c.l.b16 %v1349
      %v1358 = vunpack.c.l.b16 %v1350
      %v1359 = vunpack.c.l.b16 %v1351
      %v1360 = vunpack.c.l.b16 %v1352
      %v1361 = vpack.c.b16 %v1358, %v1357
      %v1362 = vpack.c.b16 %v1360, %v1359
      %1365 = vmatprep.subr.bf16.mxu0 0
      %1366 = vmatpush1.bf16.msra.mxu0 %v1361
      %1367 = vmatprep.subr.bf16.mxu0 0
      %1368 = vmatpush1.bf16.msra.mxu0 %v1362
      %1369 = vmatprep.subr.bf16.mxu0 0
      %1370 = vmatpush1.bf16.msra.mxu0 0
      %1371 = vmatprep.subr.bf16.mxu0 0
      %1372 = vmatpush1.bf16.msra.mxu0 0
      %1373 = vmatprep.subr.bf16.mxu0 0
      %1374 = vmatpush1.bf16.msra.mxu0 0
      %1375 = vmatprep.subr.bf16.mxu0 0
      %1376 = vmatpush1.bf16.msra.mxu0 0
      %1377 = vmatprep.subr.bf16.mxu0 0
      %1378 = vmatpush1.bf16.msra.mxu0 0
      %1379 = vmatprep.subr.bf16.mxu0 0
      %1380 = vmatpush1.bf16.msra.mxu0 0
      %1381 = vmatprep.subr.bf16.mxu0 0
      %1382 = vmatpush1.bf16.msra.mxu0 0
      %1383 = vmatprep.subr.bf16.mxu0 0
      %1384 = vmatpush1.bf16.msra.mxu0 0
      %1385 = vmatprep.subr.bf16.mxu0 0
      %1386 = vmatpush1.bf16.msra.mxu0 0
      %1387 = vmatprep.subr.bf16.mxu0 0
      %1388 = vmatpush1.bf16.msra.mxu0 0
      %1389 = vmatprep.subr.bf16.mxu0 0
      %1390 = vmatpush1.bf16.msra.mxu0 0
      %1391 = vmatprep.subr.bf16.mxu0 0
      %1392 = vmatpush1.bf16.msra.mxu0 0
      %1393 = vmatprep.subr.bf16.mxu0 0
      %1394 = vmatpush1.bf16.msra.mxu0 0
      %1395 = vmatprep.subr.bf16.mxu0 0
      %1396 = vmatpush1.bf16.msra.mxu0 0
      %1397 = vmatprep.mubr.bf16.mxu0 0
      %1398 = vmatmul.mubr.bf16.gmra.mrb[0].mxu0 %v322
      %v1399 = vpop.f32.mrb[0].mxu0
      %v1400 = vadd.f32 0.0, %v1399
      %v1401 = vpop.f32.mrb[0].mxu0
      %v1402 = vpop.f32.mrb[0].mxu0
      %v1403 = vpop.f32.mrb[0].mxu0
      %1404 = vdwg.mxu0
      %s1405 = scalar_lea.vmem %s3, 48
      %v1406 = vld [vmem:[%s1405] sm:$0xf]
      %v1407 = vld [vmem:[%s1405 + $0x4] sm:$0xf]
      %v1408 = vld [vmem:[%s1405 + $0x8] sm:$0xf]
      %v1409 = vld [vmem:[%s1405 + $0xc] sm:$0xf]
      %v1414 = vunpack.c.l.b16 %v1406
      %v1415 = vunpack.c.l.b16 %v1407
      %v1416 = vunpack.c.l.b16 %v1408
      %v1417 = vunpack.c.l.b16 %v1409
      %v1418 = vpack.c.b16 %v1415, %v1414
      %v1419 = vpack.c.b16 %v1417, %v1416
      %1422 = vmatprep.subr.bf16.mxu0 0
      %1423 = vmatpush1.bf16.msra.mxu0 %v1418
      %1424 = vmatprep.subr.bf16.mxu0 0
      %1425 = vmatpush1.bf16.msra.mxu0 %v1419
      %1426 = vmatprep.subr.bf16.mxu0 0
      %1427 = vmatpush1.bf16.msra.mxu0 0
      %1428 = vmatprep.subr.bf16.mxu0 0
      %1429 = vmatpush1.bf16.msra.mxu0 0
      %1430 = vmatprep.subr.bf16.mxu0 0
      %1431 = vmatpush1.bf16.msra.mxu0 0
      %1432 = vmatprep.subr.bf16.mxu0 0
      %1433 = vmatpush1.bf16.msra.mxu0 0
      %1434 = vmatprep.subr.bf16.mxu0 0
      %1435 = vmatpush1.bf16.msra.mxu0 0
      %1436 = vmatprep.subr.bf16.mxu0 0
      %1437 = vmatpush1.bf16.msra.mxu0 0
      %1438 = vmatprep.subr.bf16.mxu0 0
      %1439 = vmatpush1.bf16.msra.mxu0 0
      %1440 = vmatprep.subr.bf16.mxu0 0
      %1441 = vmatpush1.bf16.msra.mxu0 0
      %1442 = vmatprep.subr.bf16.mxu0 0
      %1443 = vmatpush1.bf16.msra.mxu0 0
      %1444 = vmatprep.subr.bf16.mxu0 0
      %1445 = vmatpush1.bf16.msra.mxu0 0
      %1446 = vmatprep.subr.bf16.mxu0 0
      %1447 = vmatpush1.bf16.msra.mxu0 0
      %1448 = vmatprep.subr.bf16.mxu0 0
      %1449 = vmatpush1.bf16.msra.mxu0 0
      %1450 = vmatprep.subr.bf16.mxu0 0
      %1451 = vmatpush1.bf16.msra.mxu0 0
      %1452 = vmatprep.subr.bf16.mxu0 0
      %1453 = vmatpush1.bf16.msra.mxu0 0
      %1454 = vmatprep.mubr.bf16.mxu0 0
      %1455 = vmatmul.mubr.bf16.gmra.mrb[0].mxu0 %v322
      %v1456 = vpop.f32.mrb[0].mxu0
      %v1457 = vadd.f32 0.0, %v1456
      %v1458 = vpop.f32.mrb[0].mxu0
      %v1459 = vpop.f32.mrb[0].mxu0
      %v1460 = vpop.f32.mrb[0].mxu0
      %1461 = vdwg.mxu0
      %v1462 = vpack.c.bf16 %v1343, %v1343
      %v1463 = vpack.c.bf16 %v1400, %v1400
      %v1465 = vsel %vm478, %v1462, 0
      %v1468 = vsel %vm478, %v1463, 0
      %1470 = vmatprep.subr.bf16.mxu0 0
      %1471 = vmatpush1.bf16.xpose.msra.mxu0 %v1468
      %1472 = vmatprep.subr.bf16.mxu0 0
      %1473 = vmatpush1.bf16.xpose.msra.mxu0 0
      %1474 = vmatprep.subr.bf16.mxu0 0
      %1475 = vmatpush1.bf16.xpose.msra.mxu0 0
      %1476 = vmatprep.subr.bf16.mxu0 0
      %1477 = vmatpush1.bf16.xpose.msra.mxu0 0
      %1478 = vmatprep.subr.bf16.mxu0 0
      %1479 = vmatpush1.bf16.xpose.msra.mxu0 0
      %1480 = vmatprep.subr.bf16.mxu0 0
      %1481 = vmatpush1.bf16.xpose.msra.mxu0 0
      %1482 = vmatprep.subr.bf16.mxu0 0
      %1483 = vmatpush1.bf16.xpose.msra.mxu0 0
      %1484 = vmatprep.subr.bf16.mxu0 0
      %1485 = vmatpush1.bf16.xpose.msra.mxu0 0
      %1486 = vmatprep.subr.bf16.mxu0 0
      %1487 = vmatpush1.bf16.xpose.msra.mxu0 0
      %1488 = vmatprep.subr.bf16.mxu0 0
      %1489 = vmatpush1.bf16.xpose.msra.mxu0 0
      %1490 = vmatprep.subr.bf16.mxu0 0
      %1491 = vmatpush1.bf16.xpose.msra.mxu0 0
      %1492 = vmatprep.subr.bf16.mxu0 0
      %1493 = vmatpush1.bf16.xpose.msra.mxu0 0
      %1494 = vmatprep.subr.bf16.mxu0 0
      %1495 = vmatpush1.bf16.xpose.msra.mxu0 0
      %1496 = vmatprep.subr.bf16.mxu0 0
      %1497 = vmatpush1.bf16.xpose.msra.mxu0 0
      %1498 = vmatprep.subr.bf16.mxu0 0
      %1499 = vmatpush1.bf16.xpose.msra.mxu0 0
      %1500 = vmatprep.subr.bf16.mxu0 0
      %1501 = vmatpush1.bf16.xpose.msra.mxu0 0
      %1502 = vmatprep.mubr.bf16.mxu0 0
      %1503 = vmatmul.mubr.bf16.gmra.mrb[0].mxu0 %v1465
      %v1504 = vpop.f32.mrb[0].mxu0
      %v1505 = vadd.f32 0.0, %v1504
      %v1506 = vpop.f32.mrb[0].mxu0
      %v1507 = vpop.f32.mrb[0].mxu0
      %v1508 = vpop.f32.mrb[0].mxu0
      %1509 = vdwg.mxu0
      %v1510 = vmul.f32 %v1505, 0.35355338
      %v1511 = vsel %vm478, %v1510, -inf
      %1512 = vmax.xlane.f32.xlu0 %v1511
      %v1513 = vpop.xlane.xlu0 %1512
      %v1514 = vsub.f32 %v1510, %v1513
      %v1515 = vmul.f32 %v1514, 1.442695
      %v1516 = vpow.pop %v1515
      %v1517 = vsel %vm478, %v1516, 0.0
      %1518 = vadd.xlane.f32.xlu0 %v1517
      %v1519 = vpop.xlane.xlu0 %1518
      %v1520 = vrcp.pop %v1519
      %v1521 = vmul.f32 %v1516, %v1520
      %v1522 = vpack.c.bf16 %v1521, %v1521
      %v1523 = vpack.c.bf16 %v1457, %v1457
      %v1525 = vsel %vm478, %v1522, 0
      %v1528 = vsel %vm542, %v1523, 0
      %1530 = vmatprep.subr.bf16.mxu0 0
      %1531 = vmatpush1.bf16.msra.mxu0 %v1528
      %1532 = vmatprep.subr.bf16.mxu0 0
      %1533 = vmatpush1.bf16.msra.mxu0 0
      %1534 = vmatprep.subr.bf16.mxu0 0
      %1535 = vmatpush1.bf16.msra.mxu0 0
      %1536 = vmatprep.subr.bf16.mxu0 0
      %1537 = vmatpush1.bf16.msra.mxu0 0
      %1538 = vmatprep.subr.bf16.mxu0 0
      %1539 = vmatpush1.bf16.msra.mxu0 0
      %1540 = vmatprep.subr.bf16.mxu0 0
      %1541 = vmatpush1.bf16.msra.mxu0 0
      %1542 = vmatprep.subr.bf16.mxu0 0
      %1543 = vmatpush1.bf16.msra.mxu0 0
      %1544 = vmatprep.subr.bf16.mxu0 0
      %1545 = vmatpush1.bf16.msra.mxu0 0
      %1546 = vmatprep.subr.bf16.mxu0 0
      %1547 = vmatpush1.bf16.msra.mxu0 0
      %1548 = vmatprep.subr.bf16.mxu0 0
      %1549 = vmatpush1.bf16.msra.mxu0 0
      %1550 = vmatprep.subr.bf16.mxu0 0
      %1551 = vmatpush1.bf16.msra.mxu0 0
      %1552 = vmatprep.subr.bf16.mxu0 0
      %1553 = vmatpush1.bf16.msra.mxu0 0
      %1554 = vmatprep.subr.bf16.mxu0 0
      %1555 = vmatpush1.bf16.msra.mxu0 0
      %1556 = vmatprep.subr.bf16.mxu0 0
      %1557 = vmatpush1.bf16.msra.mxu0 0
      %1558 = vmatprep.subr.bf16.mxu0 0
      %1559 = vmatpush1.bf16.msra.mxu0 0
      %1560 = vmatprep.subr.bf16.mxu0 0
      %1561 = vmatpush1.bf16.msra.mxu0 0
      %1562 = vmatprep.mubr.bf16.mxu0 0
      %1563 = vmatmul.mubr.bf16.gmra.mrb[0].mxu0 %v1525
      %v1564 = vpop.f32.mrb[0].mxu0
      %v1565 = vadd.f32 0.0, %v1564
      %v1566 = vpop.f32.mrb[0].mxu0
      %v1567 = vpop.f32.mrb[0].mxu0
      %v1568 = vpop.f32.mrb[0].mxu0
      %1569 = vdwg.mxu0
      %v1570 = vpack.c.bf16 %v1565, %v1565
      %s1571 = scalar_lea.vmem %s4, 12
      %v1572 = vld [vmem:[%s1571] sm:$0xf]
      %v1574 = vsel %vm478, %v1570, 0
      %v1577 = vsel %vm542, %v1572, 0
      %1579 = vmatprep.subr.bf16.mxu0 0
      %1580 = vmatpush1.bf16.msra.mxu0 %v1577
      %1581 = vmatprep.subr.bf16.mxu0 0
      %1582 = vmatpush1.bf16.msra.mxu0 0
      %1583 = vmatprep.subr.bf16.mxu0 0
      %1584 = vmatpush1.bf16.msra.mxu0 0
      %1585 = vmatprep.subr.bf16.mxu0 0
      %1586 = vmatpush1.bf16.msra.mxu0 0
      %1587 = vmatprep.subr.bf16.mxu0 0
      %1588 = vmatpush1.bf16.msra.mxu0 0
      %1589 = vmatprep.subr.bf16.mxu0 0
      %1590 = vmatpush1.bf16.msra.mxu0 0
      %1591 = vmatprep.subr.bf16.mxu0 0
      %1592 = vmatpush1.bf16.msra.mxu0 0
      %1593 = vmatprep.subr.bf16.mxu0 0
      %1594 = vmatpush1.bf16.msra.mxu0 0
      %1595 = vmatprep.subr.bf16.mxu0 0
      %1596 = vmatpush1.bf16.msra.mxu0 0
      %1597 = vmatprep.subr.bf16.mxu0 0
      %1598 = vmatpush1.bf16.msra.mxu0 0
      %1599 = vmatprep.subr.bf16.mxu0 0
      %1600 = vmatpush1.bf16.msra.mxu0 0
      %1601 = vmatprep.subr.bf16.mxu0 0
      %1602 = vmatpush1.bf16.msra.mxu0 0
      %1603 = vmatprep.subr.bf16.mxu0 0
      %1604 = vmatpush1.bf16.msra.mxu0 0
      %1605 = vmatprep.subr.bf16.mxu0 0
      %1606 = vmatpush1.bf16.msra.mxu0 0
      %1607 = vmatprep.subr.bf16.mxu0 0
      %1608 = vmatpush1.bf16.msra.mxu0 0
      %1609 = vmatprep.subr.bf16.mxu0 0
      %1610 = vmatpush1.bf16.msra.mxu0 0
      %1611 = vmatprep.mubr.bf16.mxu0 0
      %1612 = vmatmul.mubr.bf16.gmra.mrb[0].mxu0 %v1574
      %v1613 = vpop.f32.mrb[0].mxu0
      %v1614 = vadd.f32 0.0, %v1613
      %v1615 = vpop.f32.mrb[0].mxu0
      %v1616 = vpop.f32.mrb[0].mxu0
      %v1617 = vpop.f32.mrb[0].mxu0
      %1618 = vdwg.mxu0
      %v1619 = vadd.f32 %v1290, %v1614
      %v1620 = vld [vmem:[%s5] sm:$0x1]
      %v1622 = vlaneseq
      %v1623 = vshrl.u32 %v1622, 7
      %v1624 = vsub.s32 0, %v1623
      %v1625 = vrot.slane %v1620, %v1624
      %v1627 = vadd.f32 %v1619, %v1625
      %v1628 = vadd.f32 %v303, %v1627
      %v1629 = vld [vmem:[%s6] sm:$0x1]
      %v1630 = vld [vmem:[%s7] sm:$0x1]
      %v1631 = vsel %vm320, %v1628, 0.0
      %1632 = vadd.xlane.f32.xlu0 %v1631
      %v1633 = vpop.xlane.xlu0 %1632
      %v1634 = vrcp.pop 32.0
      %v1635 = vmul.f32 %v1633, %v1634
      %v1636 = vsub.f32 %v1628, %v1635
      %v1637 = vmul.f32 %v1636, %v1636
      %v1638 = vsel %vm320, %v1637, 0.0
      %1639 = vadd.xlane.f32.xlu0 %v1638
      %v1640 = vpop.xlane.xlu0 %1639
      %v1641 = vmul.f32 %v1640, %v1634
      %v1642 = vadd.f32 %v1641, 1e-05
      %v1643 = vrsqrt.pop %v1642
      %v1644 = vmul.f32 %v1642, %v1643
      %vm1645 = vcmp.eq.f32.partialorder %v1642, inf
      %v1646 = vsel %vm1645, %v1642, %v1644
      %vm1647 = vcmp.eq.f32.partialorder %v1642, 0.0
      %v1648 = vand.u32 %v1642, 2147483648
      %v1649 = vsel %vm1647, %v1648, %v1646
      %v1650 = vrcp.pop %v1649
      %v1651 = vmul.f32 %v1636, %v1650
      %v1653 = vlaneseq
      %v1654 = vshrl.u32 %v1653, 7
      %v1655 = vsub.s32 0, %v1654
      %v1656 = vrot.slane %v1629, %v1655
      %v1658 = vmul.f32 %v1651, %v1656
      %v1660 = vlaneseq
      %v1661 = vshrl.u32 %v1660, 7
      %v1662 = vsub.s32 0, %v1661
      %v1663 = vrot.slane %v1630, %v1662
      %v1665 = vadd.f32 %v1658, %v1663
      %v1666 = vpack.c.bf16 %v1665, %v1665
      %vm1667 = vcmask 257024
      %1668 = vst.msk [vmem:[%s300] sm:$0xf] %vm1667, %v1666
      %p1669 = scmp.lt.s32.totalorder %s19, 1
      %s1670 = scalar_select %p1669, %s19, 1
      %s1671 = smul.addr %s1670, 4
      %s1672 = scalar_lea.vmem %s8, %s1671
      // Predicated region
      $region53: #{anomaly_transformer_forward.7} parent=51 // pred_check
        %p1673 = pneg %p210
      $region54: #{anomaly_transformer_forward.7} parent=51 // pred_check_branch
        %1675 = sbr.rel (%p1673) target = $region56
      $region55: #{anomaly_transformer_forward.7} parent=51 // pred_region
        _
      $region56: #{anomaly_transformer_forward.7} parent=51 // pred_fallthru
        _
    $region52: #{anomaly_transformer_forward.7} parent=5 // pred_fallthru
      _
    %p1676 = scmp.le.s32.totalorder 2, %s14
    // Predicated region
    $region57: #{anomaly_transformer_forward.7} parent=5 // pred_check
      %p1677 = pneg %p1676
    $region58: #{anomaly_transformer_forward.7} parent=5 // pred_check_branch
      %1679 = sbr.rel (%p1677) target = $region60
    $region59: #{anomaly_transformer_forward.7} parent=5 // pred_region
      %s1680 = ssub.s32 %s14, 2
      // Predicated region
      $region61: #{anomaly_transformer_forward.7} parent=59 // pred_check
        %p1681 = pneg %p216
      $region62: #{anomaly_transformer_forward.7} parent=59 // pred_check_branch
        %1683 = sbr.rel (%p1681) target = $region64
      $region63: #{anomaly_transformer_forward.7} parent=59 // pred_region
        %p1684 = scmp.lt.s32.totalorder %s20, 1
        %s1685 = scalar_select %p1684, %s20, 1
        %s1686 = smul.addr %s1685, 4
        %s1687 = scalar_lea.vmem %s8, %s1686
      $region64: #{anomaly_transformer_forward.7} parent=59 // pred_fallthru
        _
    $region60: #{anomaly_transformer_forward.7} parent=5 // pred_fallthru
      _
  $region6: #{anomaly_transformer_forward.7} parent=0 // loop_footer
    %s18 = sadd.s32 1, %s14
  $region7: #{anomaly_transformer_forward.7} parent=0 // loop_footer_branch
    %13 = sbr.rel target = $region3
  $region8: #{anomaly_transformer_forward.7} parent=0 // loop_exit
    _

</llo_original>
